<compile_context>
chip_gen: v7x
topology: tpu7x:2x2x1
jax: 0.10.0
libtpu: 0.0.40
codegen_flags: <defaults>
</compile_context>

<pallas_src>
import numpy as np
import jax
import jax.numpy as jnp
from jax.experimental import pallas as pl
from jax.experimental.pallas import tpu as pltpu


_SELU_ALPHA = 1.6732632423543772
_SELU_SCALE = 1.0507009873554805


def _selu(y):
    return _SELU_SCALE * jnp.where(y > 0.0, y, _SELU_ALPHA * (jnp.exp(y) - 1.0))


def _log_softmax(y):
    m = jnp.max(y, axis=-1, keepdims=True)
    return y - (jnp.log(jnp.sum(jnp.exp(y - m), axis=-1, keepdims=True)) + m)


def _round_up(v, m):
    return ((v + m - 1) // m) * m


# ----------------------------------------------------------------------------
# Single fused kernel: whole ConvNet forward for one batch tile, all in VMEM.
# ----------------------------------------------------------------------------
def _convnet_kernel(x_ref, w1_ref, b1_ref, w2_ref, b2_ref,
                    wf1_ref, bf1_ref, wf2_ref, bf2_ref, wf3_ref, bf3_ref,
                    o_ref):
    """
    x_ref  : (4, 7*tb, 28) bf16 - phase p holds image rows ih = 4*q + p,
             rows inside a phase ordered (q, b_local).
    w1_ref : (5*28, 144) bf16   banded conv1 weights, cols = dx1*72 + c1*12 + pw1
    b1_ref : (1, 72)     f32    conv1 bias broadcast over (c1, pw1)
    w2_ref : (5*72, 128) bf16   banded conv2 weights, cols = dx2*64 + c2*4 + pw2
    b2_ref : (1, 64)     f32
    wf1_ref: (4*64, 120) bf16   fc1 weights, rows = ph2*64 + c2*4 + pw2
    o_ref  : (tb, 10)    f32    log-probabilities
    """
    tb = o_ref.shape[0]

    xv = x_ref[...]
    w1 = w1_ref[...]
    w2 = w2_ref[...]
    wf1 = wf1_ref[...]

    # ---------------- conv1 + ReLU + 2x2 maxpool -----------------------------
    # p1[r]: (6*tb, 72) bf16, rows (qh, b) with pooled row ph1 = 2*qh + r,
    # cols c1*12 + pw1.
    p1 = []
    for r in range(2):                       # parity of pooled output row ph1
        best = None
        for dy in range(2):                  # pool candidate row within the 2x2
            s = 2 * r + dy
            acc = None
            for kh in range(5):
                t = s + kh                   # needed input row: ih = 4*qh + t
                ph, q0 = t % 4, t // 4
                lhs = xv[ph, q0 * tb:(q0 + 6) * tb, :]              # (6tb, 28)
                rhs = w1[kh * 28:(kh + 1) * 28, :]                  # (28, 144)
                d = jnp.dot(lhs, rhs, preferred_element_type=jnp.float32)
                acc = d if acc is None else acc + d
            wp = jnp.maximum(acc[:, 0:72], acc[:, 72:144])          # pool over dx1
            best = wp if best is None else jnp.maximum(best, wp)    # pool over dy1
        p1.append(jnp.maximum(best + b1_ref[...], 0.0).astype(jnp.bfloat16))

    # ---------------- conv2 + ReLU + 2x2 maxpool -----------------------------
    # p2: (4*tb, 64) bf16, rows (ph2, b), cols c2*4 + pw2.
    best2 = None
    for dy in range(2):
        acc = None
        for kh in range(5):
            u = dy + kh                      # needed input row: ph1 = 2*ph2 + u
            r, q0 = u % 2, u // 2
            lhs = p1[r][q0 * tb:(q0 + 4) * tb, :]                   # (4tb, 72)
            rhs = w2[kh * 72:(kh + 1) * 72, :]                      # (72, 128)
            d = jnp.dot(lhs, rhs, preferred_element_type=jnp.float32)
            acc = d if acc is None else acc + d
        wp = jnp.maximum(acc[:, 0:64], acc[:, 64:128])              # pool over dx2
        best2 = wp if best2 is None else jnp.maximum(best2, wp)     # pool over dy2
    p2 = jnp.maximum(best2 + b2_ref[...], 0.0).astype(jnp.bfloat16)

    # ---------------- fc1 + ReLU: 4 accumulated matmuls ----------------------
    h = None
    for ph2 in range(4):
        d = jnp.dot(p2[ph2 * tb:(ph2 + 1) * tb, :],
                    wf1[ph2 * 64:(ph2 + 1) * 64, :],
                    preferred_element_type=jnp.float32)
        h = d if h is None else h + d
    h = jnp.maximum(h + bf1_ref[...], 0.0)                          # (tb, 120)

    # ---------------- fc2 + SELU, fc3 + log_softmax --------------------------
    h = jnp.dot(h.astype(jnp.bfloat16), wf2_ref[...],
                preferred_element_type=jnp.float32) + bf2_ref[...]
    h = _selu(h)                                                    # (tb, 84)
    h = jnp.dot(h.astype(jnp.bfloat16), wf3_ref[...],
                preferred_element_type=jnp.float32) + bf3_ref[...]
    o_ref[...] = _log_softmax(h)                                    # (tb, 10)


# ----------------------------------------------------------------------------
# Parameter preparation (once, OUTSIDE jit): banded conv weights, fc1 permute.
# ----------------------------------------------------------------------------
def prepare_params(params):
    w1 = np.asarray(params["conv1_w"], np.float32)       # (6, 1, 5, 5)
    b1 = np.asarray(params["conv1_b"], np.float32)       # (6,)
    w2 = np.asarray(params["conv2_w"], np.float32)       # (16, 6, 5, 5)
    b2 = np.asarray(params["conv2_b"], np.float32)       # (16,)
    f1w = np.asarray(params["fc1_w"], np.float32)        # (120, 256)
    f2w = np.asarray(params["fc2_w"], np.float32)        # (84, 120)
    f3w = np.asarray(params["fc3_w"], np.float32)        # (10, 84)

    # conv1 banded matmul weights: rows (kh, iw), cols dx1*72 + c1*12 + pw1
    W1 = np.zeros((5, 28, 144), np.float32)
    for kh in range(5):
        for c in range(6):
            for pw in range(12):
                for dx in range(2):
                    ow = 2 * pw + dx
                    col = dx * 72 + c * 12 + pw
                    W1[kh, ow:ow + 5, col] = w1[c, 0, kh, :]

    # conv2 banded matmul weights: rows (kh, c1*12 + iw), cols dx2*64 + c2*4 + pw2
    W2 = np.zeros((5, 72, 128), np.float32)
    for kh in range(5):
        for c2 in range(16):
            for c1 in range(6):
                for pw in range(4):
                    for dx in range(2):
                        ow = 2 * pw + dx
                        col = dx * 64 + c2 * 4 + pw
                        W2[kh, c1 * 12 + ow:c1 * 12 + ow + 5, col] = w2[c2, c1, kh, :]

    # fc1: kernel row order (ph2, c2, pw2); torch column order c2*16 + ph2*4 + pw2
    Wf1 = f1w.reshape(120, 16, 4, 4).transpose(2, 1, 3, 0).reshape(256, 120)

    return {
        "w1": jnp.asarray(W1.reshape(140, 144), jnp.bfloat16),
        "b1": jnp.asarray(np.repeat(b1, 12).reshape(1, 72), jnp.float32),
        "w2": jnp.asarray(W2.reshape(360, 128), jnp.bfloat16),
        "b2": jnp.asarray(np.repeat(b2, 4).reshape(1, 64), jnp.float32),
        "wf1": jnp.asarray(Wf1, jnp.bfloat16),
        "bf1": jnp.asarray(np.asarray(params["fc1_b"], np.float32).reshape(1, 120)),
        "wf2": jnp.asarray(f2w.T, jnp.bfloat16),
        "bf2": jnp.asarray(np.asarray(params["fc2_b"], np.float32).reshape(1, 84)),
        "wf3": jnp.asarray(f3w.T, jnp.bfloat16),
        "bf3": jnp.asarray(np.asarray(params["fc3_b"], np.float32).reshape(1, 10)),
    }


# ----------------------------------------------------------------------------
# Full forward pass (matches ConvNet.forward); x_nchw: (B, 1, 28, 28) f32
# ----------------------------------------------------------------------------
def convnet_forward(x_nchw, kp, *, tb_max=64):
    b = x_nchw.shape[0]
    # Batch tile: multiple of 16, capped, aiming for >=2 grid steps when possible.
    tb = max(16, min(tb_max, _round_up(max(1, (b + 1) // 2), 16)))
    bp = _round_up(b, tb)
    nbt = bp // tb

    x = x_nchw.reshape(b, 28, 28).astype(jnp.bfloat16)
    if bp != b:
        x = jnp.pad(x, ((0, bp - b), (0, 0), (0, 0)))
    # Row-phase split (ih = 4*q + p); within a tile rows are ordered (q, b_local):
    #   x4[p, i*7*tb + q*tb + bl, :] = x[i*tb + bl, 4*q + p, :]
    x4 = (x.reshape(nbt, tb, 7, 4, 28)
           .transpose(3, 0, 2, 1, 4)
           .reshape(4, nbt * 7 * tb, 28))

    out = pl.pallas_call(
        _convnet_kernel,
        out_shape=jax.ShapeDtypeStruct((bp, 10), jnp.float32),
        grid=(nbt,),
        in_specs=[
            pl.BlockSpec((4, 7 * tb, 28), lambda i: (0, i, 0)),
            pl.BlockSpec(kp["w1"].shape, lambda i: (0, 0)),
            pl.BlockSpec(kp["b1"].shape, lambda i: (0, 0)),
            pl.BlockSpec(kp["w2"].shape, lambda i: (0, 0)),
            pl.BlockSpec(kp["b2"].shape, lambda i: (0, 0)),
            pl.BlockSpec(kp["wf1"].shape, lambda i: (0, 0)),
            pl.BlockSpec(kp["bf1"].shape, lambda i: (0, 0)),
            pl.BlockSpec(kp["wf2"].shape, lambda i: (0, 0)),
            pl.BlockSpec(kp["bf2"].shape, lambda i: (0, 0)),
            pl.BlockSpec(kp["wf3"].shape, lambda i: (0, 0)),
            pl.BlockSpec(kp["bf3"].shape, lambda i: (0, 0)),
        ],
        out_specs=pl.BlockSpec((tb, 10), lambda i: (i, 0)),
        compiler_params=pltpu.CompilerParams(
            dimension_semantics=("parallel",),
            vmem_limit_bytes=32 * 1024 * 1024),
    )(x4, kp["w1"], kp["b1"], kp["w2"], kp["b2"],
      kp["wf1"], kp["bf1"], kp["wf2"], kp["bf2"], kp["wf3"], kp["bf3"])
    return out[:b]


# ----------------------------------------------------------------------------
# Pure-JAX reference (correctness check only)
# ----------------------------------------------------------------------------
def reference_forward(x, params):
    dn = ("NCHW", "OIHW", "NCHW")
    hp = jax.lax.Precision.HIGHEST
    y = jax.lax.conv_general_dilated(x, params["conv1_w"], (1, 1), "VALID",
                                     dimension_numbers=dn, precision=hp)
    y = jax.nn.relu(y + params["conv1_b"].reshape(1, -1, 1, 1))
    y = jax.lax.reduce_window(y, -jnp.inf, jax.lax.max,
                              (1, 1, 2, 2), (1, 1, 2, 2), "VALID")
    y = jax.lax.conv_general_dilated(y, params["conv2_w"], (1, 1), "VALID",
                                     dimension_numbers=dn, precision=hp)
    y = jax.nn.relu(y + params["conv2_b"].reshape(1, -1, 1, 1))
    y = jax.lax.reduce_window(y, -jnp.inf, jax.lax.max,
                              (1, 1, 2, 2), (1, 1, 2, 2), "VALID")
    y = y.reshape(y.shape[0], -1)
    y = jax.nn.relu(jnp.dot(y, params["fc1_w"].T, precision=hp) + params["fc1_b"])
    y = jax.nn.selu(jnp.dot(y, params["fc2_w"].T, precision=hp) + params["fc2_b"])
    y = jnp.dot(y, params["fc3_w"].T, precision=hp) + params["fc3_b"]
    return jax.nn.log_softmax(y, axis=1)


# ----------------------------------------------------------------------------
# Deterministic parameter init (PyTorch-default-style uniform(-1/sqrt(fan_in)))
# ----------------------------------------------------------------------------
def init_params(key):
    def uinit(k, shape, fan_in):
        bound = 1.0 / np.sqrt(fan_in)
        return jax.random.uniform(k, shape, jnp.float32, -bound, bound)

    ks = jax.random.split(key, 10)
    return {
        "conv1_w": uinit(ks[0], (6, 1, 5, 5), 1 * 5 * 5),
        "conv1_b": uinit(ks[1], (6,), 1 * 5 * 5),
        "conv2_w": uinit(ks[2], (16, 6, 5, 5), 6 * 5 * 5),
        "conv2_b": uinit(ks[3], (16,), 6 * 5 * 5),
        "fc1_w": uinit(ks[4], (120, 256), 256),
        "fc1_b": uinit(ks[5], (120,), 256),
        "fc2_w": uinit(ks[6], (84, 120), 120),
        "fc2_b": uinit(ks[7], (84,), 120),
        "fc3_w": uinit(ks[8], (10, 84), 84),
        "fc3_b": uinit(ks[9], (10,), 84),
    }


if __name__ == "__main__":
    key = jax.random.PRNGKey(0)
    k_x, k_p = jax.random.split(key)

    params = init_params(k_p)
    kparams = prepare_params(params)        # one-time weight repack, outside jit
    fwd = jax.jit(convnet_forward)

    # Small smoke test consistent with the module (fc1 expects 16*4*4 -> 28x28).
    x = jax.random.normal(k_x, (2, 1, 28, 28), dtype=jnp.float32)
    out = jax.block_until_ready(fwd(x, kparams))
    assert out.shape == (2, 10), out.shape
    probs = np.exp(np.asarray(out, dtype=np.float64)).sum(axis=1)
    assert np.allclose(probs, 1.0, atol=1e-3), probs
    ref = jax.block_until_ready(jax.jit(reference_forward)(x, params))
    assert np.allclose(np.asarray(out), np.asarray(ref), atol=5e-2, rtol=5e-2), (
        float(np.max(np.abs(np.asarray(out) - np.asarray(ref)))))

    # Larger, non-multiple batch: exercises padding and a grid of 2 batch tiles
    # (so dimension_semantics=("parallel",) actually spans both v7x TensorCores).
    x2 = jax.random.normal(k_x, (37, 1, 28, 28), dtype=jnp.float32)
    out2 = jax.block_until_ready(fwd(x2, kparams))
    ref2 = jax.block_until_ready(jax.jit(reference_forward)(x2, params))
    assert out2.shape == (37, 10), out2.shape
    assert np.allclose(np.asarray(out2), np.asarray(ref2), atol=5e-2, rtol=5e-2), (
        float(np.max(np.abs(np.asarray(out2) - np.asarray(ref2)))))

    print("KERNEL_OK")
</pallas_src>

<mosaic_0001>
module attributes {stable_mosaic.version = 11 : i64} {
  func.func @_convnet_kernel(%arg0: i32, %arg1: memref<4x112x28xbf16, #tpu.memory_space<vmem>>, %arg2: memref<140x144xbf16, #tpu.memory_space<vmem>>, %arg3: memref<1x72xf32, #tpu.memory_space<vmem>>, %arg4: memref<360x128xbf16, #tpu.memory_space<vmem>>, %arg5: memref<1x64xf32, #tpu.memory_space<vmem>>, %arg6: memref<256x120xbf16, #tpu.memory_space<vmem>>, %arg7: memref<1x120xf32, #tpu.memory_space<vmem>>, %arg8: memref<120x84xbf16, #tpu.memory_space<vmem>>, %arg9: memref<1x84xf32, #tpu.memory_space<vmem>>, %arg10: memref<84x10xbf16, #tpu.memory_space<vmem>>, %arg11: memref<1x10xf32, #tpu.memory_space<vmem>>, %arg12: memref<16x10xf32, #tpu.memory_space<vmem>>) attributes {dimension_semantics = [#tpu.dimension_semantics<parallel>], iteration_bounds = array<i64: 1>, scalar_prefetch = 0 : i64, scratch_operands = 0 : i64, tpu.core_type = #tpu.core_type<tc>, window_params = [{transform_indices = @transform_0, window_bounds = array<i64: 4, 112, 28>}, {pipeline_mode = #tpu.pipeline_mode<synchronous>, transform_indices = @transform_1, window_bounds = array<i64: 140, 144>}, {pipeline_mode = #tpu.pipeline_mode<synchronous>, transform_indices = @transform_2, window_bounds = array<i64: 1, 72>}, {pipeline_mode = #tpu.pipeline_mode<synchronous>, transform_indices = @transform_3, window_bounds = array<i64: 360, 128>}, {pipeline_mode = #tpu.pipeline_mode<synchronous>, transform_indices = @transform_4, window_bounds = array<i64: 1, 64>}, {pipeline_mode = #tpu.pipeline_mode<synchronous>, transform_indices = @transform_5, window_bounds = array<i64: 256, 120>}, {pipeline_mode = #tpu.pipeline_mode<synchronous>, transform_indices = @transform_6, window_bounds = array<i64: 1, 120>}, {pipeline_mode = #tpu.pipeline_mode<synchronous>, transform_indices = @transform_7, window_bounds = array<i64: 120, 84>}, {pipeline_mode = #tpu.pipeline_mode<synchronous>, transform_indices = @transform_8, window_bounds = array<i64: 1, 84>}, {pipeline_mode = #tpu.pipeline_mode<synchronous>, transform_indices = @transform_9, window_bounds = array<i64: 84, 10>}, {pipeline_mode = #tpu.pipeline_mode<synchronous>, transform_indices = @transform_10, window_bounds = array<i64: 1, 10>}, {transform_indices = @transform_11, window_bounds = array<i64: 16, 10>}]} {
    %c0 = arith.constant 0 : index
    %c0_0 = arith.constant 0 : index
    %c0_1 = arith.constant 0 : index
    %0 = vector.load %arg1[%c0, %c0_0, %c0_1] : memref<4x112x28xbf16, #tpu.memory_space<vmem>>, vector<4x112x28xbf16>
    %c0_2 = arith.constant 0 : index
    %c0_3 = arith.constant 0 : index
    %1 = vector.load %arg2[%c0_2, %c0_3] : memref<140x144xbf16, #tpu.memory_space<vmem>>, vector<140x144xbf16>
    %c0_4 = arith.constant 0 : index
    %c0_5 = arith.constant 0 : index
    %2 = vector.load %arg4[%c0_4, %c0_5] : memref<360x128xbf16, #tpu.memory_space<vmem>>, vector<360x128xbf16>
    %c0_6 = arith.constant 0 : index
    %c0_7 = arith.constant 0 : index
    %3 = vector.load %arg6[%c0_6, %c0_7] : memref<256x120xbf16, #tpu.memory_space<vmem>>, vector<256x120xbf16>
    %4 = vector.extract_strided_slice %0 {offsets = [0, 0, 0], sizes = [1, 96, 28], strides = [1, 1, 1]} : vector<4x112x28xbf16> to vector<1x96x28xbf16>
    %5 = vector.shape_cast %4 : vector<1x96x28xbf16> to vector<96x28xbf16>
    %6 = vector.extract_strided_slice %1 {offsets = [0, 0], sizes = [28, 144], strides = [1, 1]} : vector<140x144xbf16> to vector<28x144xbf16>
    %cst = arith.constant dense<0.000000e+00> : vector<96x144xf32>
    %7 = tpu.matmul %5, %6, %cst {dimension_numbers = #tpu.dot_dimension_numbers<[1], [0], [0], [1], [0, 0, 1, 1], [], []>} : vector<96x28xbf16>, vector<28x144xbf16>, vector<96x144xf32> -> vector<96x144xf32>
    %8 = vector.extract_strided_slice %0 {offsets = [1, 0, 0], sizes = [1, 96, 28], strides = [1, 1, 1]} : vector<4x112x28xbf16> to vector<1x96x28xbf16>
    %9 = vector.shape_cast %8 : vector<1x96x28xbf16> to vector<96x28xbf16>
    %10 = vector.extract_strided_slice %1 {offsets = [28, 0], sizes = [28, 144], strides = [1, 1]} : vector<140x144xbf16> to vector<28x144xbf16>
    %cst_8 = arith.constant dense<0.000000e+00> : vector<96x144xf32>
    %11 = tpu.matmul %9, %10, %cst_8 {dimension_numbers = #tpu.dot_dimension_numbers<[1], [0], [0], [1], [0, 0, 1, 1], [], []>} : vector<96x28xbf16>, vector<28x144xbf16>, vector<96x144xf32> -> vector<96x144xf32>
    %12 = arith.addf %7, %11 : vector<96x144xf32>
    %13 = vector.extract_strided_slice %0 {offsets = [2, 0, 0], sizes = [1, 96, 28], strides = [1, 1, 1]} : vector<4x112x28xbf16> to vector<1x96x28xbf16>
    %14 = vector.shape_cast %13 : vector<1x96x28xbf16> to vector<96x28xbf16>
    %15 = vector.extract_strided_slice %1 {offsets = [56, 0], sizes = [28, 144], strides = [1, 1]} : vector<140x144xbf16> to vector<28x144xbf16>
    %cst_9 = arith.constant dense<0.000000e+00> : vector<96x144xf32>
    %16 = tpu.matmul %14, %15, %cst_9 {dimension_numbers = #tpu.dot_dimension_numbers<[1], [0], [0], [1], [0, 0, 1, 1], [], []>} : vector<96x28xbf16>, vector<28x144xbf16>, vector<96x144xf32> -> vector<96x144xf32>
    %17 = arith.addf %12, %16 : vector<96x144xf32>
    %18 = vector.extract_strided_slice %0 {offsets = [3, 0, 0], sizes = [1, 96, 28], strides = [1, 1, 1]} : vector<4x112x28xbf16> to vector<1x96x28xbf16>
    %19 = vector.shape_cast %18 : vector<1x96x28xbf16> to vector<96x28xbf16>
    %20 = vector.extract_strided_slice %1 {offsets = [84, 0], sizes = [28, 144], strides = [1, 1]} : vector<140x144xbf16> to vector<28x144xbf16>
    %cst_10 = arith.constant dense<0.000000e+00> : vector<96x144xf32>
    %21 = tpu.matmul %19, %20, %cst_10 {dimension_numbers = #tpu.dot_dimension_numbers<[1], [0], [0], [1], [0, 0, 1, 1], [], []>} : vector<96x28xbf16>, vector<28x144xbf16>, vector<96x144xf32> -> vector<96x144xf32>
    %22 = arith.addf %17, %21 : vector<96x144xf32>
    %23 = vector.extract_strided_slice %0 {offsets = [0, 16, 0], sizes = [1, 96, 28], strides = [1, 1, 1]} : vector<4x112x28xbf16> to vector<1x96x28xbf16>
    %24 = vector.shape_cast %23 : vector<1x96x28xbf16> to vector<96x28xbf16>
    %25 = vector.extract_strided_slice %1 {offsets = [112, 0], sizes = [28, 144], strides = [1, 1]} : vector<140x144xbf16> to vector<28x144xbf16>
    %cst_11 = arith.constant dense<0.000000e+00> : vector<96x144xf32>
    %26 = tpu.matmul %24, %25, %cst_11 {dimension_numbers = #tpu.dot_dimension_numbers<[1], [0], [0], [1], [0, 0, 1, 1], [], []>} : vector<96x28xbf16>, vector<28x144xbf16>, vector<96x144xf32> -> vector<96x144xf32>
    %27 = arith.addf %22, %26 : vector<96x144xf32>
    %28 = vector.extract_strided_slice %27 {offsets = [0, 0], sizes = [96, 72], strides = [1, 1]} : vector<96x144xf32> to vector<96x72xf32>
    %29 = vector.extract_strided_slice %27 {offsets = [0, 72], sizes = [96, 72], strides = [1, 1]} : vector<96x144xf32> to vector<96x72xf32>
    %30 = arith.maximumf %28, %29 : vector<96x72xf32>
    %31 = vector.extract_strided_slice %0 {offsets = [1, 0, 0], sizes = [1, 96, 28], strides = [1, 1, 1]} : vector<4x112x28xbf16> to vector<1x96x28xbf16>
    %32 = vector.shape_cast %31 : vector<1x96x28xbf16> to vector<96x28xbf16>
    %33 = vector.extract_strided_slice %1 {offsets = [0, 0], sizes = [28, 144], strides = [1, 1]} : vector<140x144xbf16> to vector<28x144xbf16>
    %cst_12 = arith.constant dense<0.000000e+00> : vector<96x144xf32>
    %34 = tpu.matmul %32, %33, %cst_12 {dimension_numbers = #tpu.dot_dimension_numbers<[1], [0], [0], [1], [0, 0, 1, 1], [], []>} : vector<96x28xbf16>, vector<28x144xbf16>, vector<96x144xf32> -> vector<96x144xf32>
    %35 = vector.extract_strided_slice %0 {offsets = [2, 0, 0], sizes = [1, 96, 28], strides = [1, 1, 1]} : vector<4x112x28xbf16> to vector<1x96x28xbf16>
    %36 = vector.shape_cast %35 : vector<1x96x28xbf16> to vector<96x28xbf16>
    %37 = vector.extract_strided_slice %1 {offsets = [28, 0], sizes = [28, 144], strides = [1, 1]} : vector<140x144xbf16> to vector<28x144xbf16>
    %cst_13 = arith.constant dense<0.000000e+00> : vector<96x144xf32>
    %38 = tpu.matmul %36, %37, %cst_13 {dimension_numbers = #tpu.dot_dimension_numbers<[1], [0], [0], [1], [0, 0, 1, 1], [], []>} : vector<96x28xbf16>, vector<28x144xbf16>, vector<96x144xf32> -> vector<96x144xf32>
    %39 = arith.addf %34, %38 : vector<96x144xf32>
    %40 = vector.extract_strided_slice %0 {offsets = [3, 0, 0], sizes = [1, 96, 28], strides = [1, 1, 1]} : vector<4x112x28xbf16> to vector<1x96x28xbf16>
    %41 = vector.shape_cast %40 : vector<1x96x28xbf16> to vector<96x28xbf16>
    %42 = vector.extract_strided_slice %1 {offsets = [56, 0], sizes = [28, 144], strides = [1, 1]} : vector<140x144xbf16> to vector<28x144xbf16>
    %cst_14 = arith.constant dense<0.000000e+00> : vector<96x144xf32>
    %43 = tpu.matmul %41, %42, %cst_14 {dimension_numbers = #tpu.dot_dimension_numbers<[1], [0], [0], [1], [0, 0, 1, 1], [], []>} : vector<96x28xbf16>, vector<28x144xbf16>, vector<96x144xf32> -> vector<96x144xf32>
    %44 = arith.addf %39, %43 : vector<96x144xf32>
    %45 = vector.extract_strided_slice %0 {offsets = [0, 16, 0], sizes = [1, 96, 28], strides = [1, 1, 1]} : vector<4x112x28xbf16> to vector<1x96x28xbf16>
    %46 = vector.shape_cast %45 : vector<1x96x28xbf16> to vector<96x28xbf16>
    %47 = vector.extract_strided_slice %1 {offsets = [84, 0], sizes = [28, 144], strides = [1, 1]} : vector<140x144xbf16> to vector<28x144xbf16>
    %cst_15 = arith.constant dense<0.000000e+00> : vector<96x144xf32>
    %48 = tpu.matmul %46, %47, %cst_15 {dimension_numbers = #tpu.dot_dimension_numbers<[1], [0], [0], [1], [0, 0, 1, 1], [], []>} : vector<96x28xbf16>, vector<28x144xbf16>, vector<96x144xf32> -> vector<96x144xf32>
    %49 = arith.addf %44, %48 : vector<96x144xf32>
    %50 = vector.extract_strided_slice %0 {offsets = [1, 16, 0], sizes = [1, 96, 28], strides = [1, 1, 1]} : vector<4x112x28xbf16> to vector<1x96x28xbf16>
    %51 = vector.shape_cast %50 : vector<1x96x28xbf16> to vector<96x28xbf16>
    %52 = vector.extract_strided_slice %1 {offsets = [112, 0], sizes = [28, 144], strides = [1, 1]} : vector<140x144xbf16> to vector<28x144xbf16>
    %cst_16 = arith.constant dense<0.000000e+00> : vector<96x144xf32>
    %53 = tpu.matmul %51, %52, %cst_16 {dimension_numbers = #tpu.dot_dimension_numbers<[1], [0], [0], [1], [0, 0, 1, 1], [], []>} : vector<96x28xbf16>, vector<28x144xbf16>, vector<96x144xf32> -> vector<96x144xf32>
    %54 = arith.addf %49, %53 : vector<96x144xf32>
    %55 = vector.extract_strided_slice %54 {offsets = [0, 0], sizes = [96, 72], strides = [1, 1]} : vector<96x144xf32> to vector<96x72xf32>
    %56 = vector.extract_strided_slice %54 {offsets = [0, 72], sizes = [96, 72], strides = [1, 1]} : vector<96x144xf32> to vector<96x72xf32>
    %57 = arith.maximumf %55, %56 : vector<96x72xf32>
    %58 = arith.maximumf %30, %57 : vector<96x72xf32>
    %c0_17 = arith.constant 0 : index
    %c0_18 = arith.constant 0 : index
    %59 = vector.load %arg3[%c0_17, %c0_18] : memref<1x72xf32, #tpu.memory_space<vmem>>, vector<1x72xf32>
    %60 = vector.broadcast %59 : vector<1x72xf32> to vector<96x72xf32>
    %61 = arith.addf %58, %60 : vector<96x72xf32>
    %cst_19 = arith.constant 0.000000e+00 : f32
    %62 = vector.broadcast %cst_19 : f32 to vector<96x72xf32>
    %63 = arith.maximumf %61, %62 : vector<96x72xf32>
    %64 = arith.truncf %63 : vector<96x72xf32> to vector<96x72xbf16>
    %65 = vector.extract_strided_slice %0 {offsets = [2, 0, 0], sizes = [1, 96, 28], strides = [1, 1, 1]} : vector<4x112x28xbf16> to vector<1x96x28xbf16>
    %66 = vector.shape_cast %65 : vector<1x96x28xbf16> to vector<96x28xbf16>
    %67 = vector.extract_strided_slice %1 {offsets = [0, 0], sizes = [28, 144], strides = [1, 1]} : vector<140x144xbf16> to vector<28x144xbf16>
    %cst_20 = arith.constant dense<0.000000e+00> : vector<96x144xf32>
    %68 = tpu.matmul %66, %67, %cst_20 {dimension_numbers = #tpu.dot_dimension_numbers<[1], [0], [0], [1], [0, 0, 1, 1], [], []>} : vector<96x28xbf16>, vector<28x144xbf16>, vector<96x144xf32> -> vector<96x144xf32>
    %69 = vector.extract_strided_slice %0 {offsets = [3, 0, 0], sizes = [1, 96, 28], strides = [1, 1, 1]} : vector<4x112x28xbf16> to vector<1x96x28xbf16>
    %70 = vector.shape_cast %69 : vector<1x96x28xbf16> to vector<96x28xbf16>
    %71 = vector.extract_strided_slice %1 {offsets = [28, 0], sizes = [28, 144], strides = [1, 1]} : vector<140x144xbf16> to vector<28x144xbf16>
    %cst_21 = arith.constant dense<0.000000e+00> : vector<96x144xf32>
    %72 = tpu.matmul %70, %71, %cst_21 {dimension_numbers = #tpu.dot_dimension_numbers<[1], [0], [0], [1], [0, 0, 1, 1], [], []>} : vector<96x28xbf16>, vector<28x144xbf16>, vector<96x144xf32> -> vector<96x144xf32>
    %73 = arith.addf %68, %72 : vector<96x144xf32>
    %74 = vector.extract_strided_slice %0 {offsets = [0, 16, 0], sizes = [1, 96, 28], strides = [1, 1, 1]} : vector<4x112x28xbf16> to vector<1x96x28xbf16>
    %75 = vector.shape_cast %74 : vector<1x96x28xbf16> to vector<96x28xbf16>
    %76 = vector.extract_strided_slice %1 {offsets = [56, 0], sizes = [28, 144], strides = [1, 1]} : vector<140x144xbf16> to vector<28x144xbf16>
    %cst_22 = arith.constant dense<0.000000e+00> : vector<96x144xf32>
    %77 = tpu.matmul %75, %76, %cst_22 {dimension_numbers = #tpu.dot_dimension_numbers<[1], [0], [0], [1], [0, 0, 1, 1], [], []>} : vector<96x28xbf16>, vector<28x144xbf16>, vector<96x144xf32> -> vector<96x144xf32>
    %78 = arith.addf %73, %77 : vector<96x144xf32>
    %79 = vector.extract_strided_slice %0 {offsets = [1, 16, 0], sizes = [1, 96, 28], strides = [1, 1, 1]} : vector<4x112x28xbf16> to vector<1x96x28xbf16>
    %80 = vector.shape_cast %79 : vector<1x96x28xbf16> to vector<96x28xbf16>
    %81 = vector.extract_strided_slice %1 {offsets = [84, 0], sizes = [28, 144], strides = [1, 1]} : vector<140x144xbf16> to vector<28x144xbf16>
    %cst_23 = arith.constant dense<0.000000e+00> : vector<96x144xf32>
    %82 = tpu.matmul %80, %81, %cst_23 {dimension_numbers = #tpu.dot_dimension_numbers<[1], [0], [0], [1], [0, 0, 1, 1], [], []>} : vector<96x28xbf16>, vector<28x144xbf16>, vector<96x144xf32> -> vector<96x144xf32>
    %83 = arith.addf %78, %82 : vector<96x144xf32>
    %84 = vector.extract_strided_slice %0 {offsets = [2, 16, 0], sizes = [1, 96, 28], strides = [1, 1, 1]} : vector<4x112x28xbf16> to vector<1x96x28xbf16>
    %85 = vector.shape_cast %84 : vector<1x96x28xbf16> to vector<96x28xbf16>
    %86 = vector.extract_strided_slice %1 {offsets = [112, 0], sizes = [28, 144], strides = [1, 1]} : vector<140x144xbf16> to vector<28x144xbf16>
    %cst_24 = arith.constant dense<0.000000e+00> : vector<96x144xf32>
    %87 = tpu.matmul %85, %86, %cst_24 {dimension_numbers = #tpu.dot_dimension_numbers<[1], [0], [0], [1], [0, 0, 1, 1], [], []>} : vector<96x28xbf16>, vector<28x144xbf16>, vector<96x144xf32> -> vector<96x144xf32>
    %88 = arith.addf %83, %87 : vector<96x144xf32>
    %89 = vector.extract_strided_slice %88 {offsets = [0, 0], sizes = [96, 72], strides = [1, 1]} : vector<96x144xf32> to vector<96x72xf32>
    %90 = vector.extract_strided_slice %88 {offsets = [0, 72], sizes = [96, 72], strides = [1, 1]} : vector<96x144xf32> to vector<96x72xf32>
    %91 = arith.maximumf %89, %90 : vector<96x72xf32>
    %92 = vector.extract_strided_slice %0 {offsets = [3, 0, 0], sizes = [1, 96, 28], strides = [1, 1, 1]} : vector<4x112x28xbf16> to vector<1x96x28xbf16>
    %93 = vector.shape_cast %92 : vector<1x96x28xbf16> to vector<96x28xbf16>
    %94 = vector.extract_strided_slice %1 {offsets = [0, 0], sizes = [28, 144], strides = [1, 1]} : vector<140x144xbf16> to vector<28x144xbf16>
    %cst_25 = arith.constant dense<0.000000e+00> : vector<96x144xf32>
    %95 = tpu.matmul %93, %94, %cst_25 {dimension_numbers = #tpu.dot_dimension_numbers<[1], [0], [0], [1], [0, 0, 1, 1], [], []>} : vector<96x28xbf16>, vector<28x144xbf16>, vector<96x144xf32> -> vector<96x144xf32>
    %96 = vector.extract_strided_slice %0 {offsets = [0, 16, 0], sizes = [1, 96, 28], strides = [1, 1, 1]} : vector<4x112x28xbf16> to vector<1x96x28xbf16>
    %97 = vector.shape_cast %96 : vector<1x96x28xbf16> to vector<96x28xbf16>
    %98 = vector.extract_strided_slice %1 {offsets = [28, 0], sizes = [28, 144], strides = [1, 1]} : vector<140x144xbf16> to vector<28x144xbf16>
    %cst_26 = arith.constant dense<0.000000e+00> : vector<96x144xf32>
    %99 = tpu.matmul %97, %98, %cst_26 {dimension_numbers = #tpu.dot_dimension_numbers<[1], [0], [0], [1], [0, 0, 1, 1], [], []>} : vector<96x28xbf16>, vector<28x144xbf16>, vector<96x144xf32> -> vector<96x144xf32>
    %100 = arith.addf %95, %99 : vector<96x144xf32>
    %101 = vector.extract_strided_slice %0 {offsets = [1, 16, 0], sizes = [1, 96, 28], strides = [1, 1, 1]} : vector<4x112x28xbf16> to vector<1x96x28xbf16>
    %102 = vector.shape_cast %101 : vector<1x96x28xbf16> to vector<96x28xbf16>
    %103 = vector.extract_strided_slice %1 {offsets = [56, 0], sizes = [28, 144], strides = [1, 1]} : vector<140x144xbf16> to vector<28x144xbf16>
    %cst_27 = arith.constant dense<0.000000e+00> : vector<96x144xf32>
    %104 = tpu.matmul %102, %103, %cst_27 {dimension_numbers = #tpu.dot_dimension_numbers<[1], [0], [0], [1], [0, 0, 1, 1], [], []>} : vector<96x28xbf16>, vector<28x144xbf16>, vector<96x144xf32> -> vector<96x144xf32>
    %105 = arith.addf %100, %104 : vector<96x144xf32>
    %106 = vector.extract_strided_slice %0 {offsets = [2, 16, 0], sizes = [1, 96, 28], strides = [1, 1, 1]} : vector<4x112x28xbf16> to vector<1x96x28xbf16>
    %107 = vector.shape_cast %106 : vector<1x96x28xbf16> to vector<96x28xbf16>
    %108 = vector.extract_strided_slice %1 {offsets = [84, 0], sizes = [28, 144], strides = [1, 1]} : vector<140x144xbf16> to vector<28x144xbf16>
    %cst_28 = arith.constant dense<0.000000e+00> : vector<96x144xf32>
    %109 = tpu.matmul %107, %108, %cst_28 {dimension_numbers = #tpu.dot_dimension_numbers<[1], [0], [0], [1], [0, 0, 1, 1], [], []>} : vector<96x28xbf16>, vector<28x144xbf16>, vector<96x144xf32> -> vector<96x144xf32>
    %110 = arith.addf %105, %109 : vector<96x144xf32>
    %111 = vector.extract_strided_slice %0 {offsets = [3, 16, 0], sizes = [1, 96, 28], strides = [1, 1, 1]} : vector<4x112x28xbf16> to vector<1x96x28xbf16>
    %112 = vector.shape_cast %111 : vector<1x96x28xbf16> to vector<96x28xbf16>
    %113 = vector.extract_strided_slice %1 {offsets = [112, 0], sizes = [28, 144], strides = [1, 1]} : vector<140x144xbf16> to vector<28x144xbf16>
    %cst_29 = arith.constant dense<0.000000e+00> : vector<96x144xf32>
    %114 = tpu.matmul %112, %113, %cst_29 {dimension_numbers = #tpu.dot_dimension_numbers<[1], [0], [0], [1], [0, 0, 1, 1], [], []>} : vector<96x28xbf16>, vector<28x144xbf16>, vector<96x144xf32> -> vector<96x144xf32>
    %115 = arith.addf %110, %114 : vector<96x144xf32>
    %116 = vector.extract_strided_slice %115 {offsets = [0, 0], sizes = [96, 72], strides = [1, 1]} : vector<96x144xf32> to vector<96x72xf32>
    %117 = vector.extract_strided_slice %115 {offsets = [0, 72], sizes = [96, 72], strides = [1, 1]} : vector<96x144xf32> to vector<96x72xf32>
    %118 = arith.maximumf %116, %117 : vector<96x72xf32>
    %119 = arith.maximumf %91, %118 : vector<96x72xf32>
    %c0_30 = arith.constant 0 : index
    %c0_31 = arith.constant 0 : index
    %120 = vector.load %arg3[%c0_30, %c0_31] : memref<1x72xf32, #tpu.memory_space<vmem>>, vector<1x72xf32>
    %121 = vector.broadcast %120 : vector<1x72xf32> to vector<96x72xf32>
    %122 = arith.addf %119, %121 : vector<96x72xf32>
    %cst_32 = arith.constant 0.000000e+00 : f32
    %123 = vector.broadcast %cst_32 : f32 to vector<96x72xf32>
    %124 = arith.maximumf %122, %123 : vector<96x72xf32>
    %125 = arith.truncf %124 : vector<96x72xf32> to vector<96x72xbf16>
    %126 = vector.extract_strided_slice %64 {offsets = [0, 0], sizes = [64, 72], strides = [1, 1]} : vector<96x72xbf16> to vector<64x72xbf16>
    %127 = vector.extract_strided_slice %2 {offsets = [0, 0], sizes = [72, 128], strides = [1, 1]} : vector<360x128xbf16> to vector<72x128xbf16>
    %cst_33 = arith.constant dense<0.000000e+00> : vector<64x128xf32>
    %128 = tpu.matmul %126, %127, %cst_33 {dimension_numbers = #tpu.dot_dimension_numbers<[1], [0], [0], [1], [0, 0, 1, 1], [], []>} : vector<64x72xbf16>, vector<72x128xbf16>, vector<64x128xf32> -> vector<64x128xf32>
    %129 = vector.extract_strided_slice %125 {offsets = [0, 0], sizes = [64, 72], strides = [1, 1]} : vector<96x72xbf16> to vector<64x72xbf16>
    %130 = vector.extract_strided_slice %2 {offsets = [72, 0], sizes = [72, 128], strides = [1, 1]} : vector<360x128xbf16> to vector<72x128xbf16>
    %cst_34 = arith.constant dense<0.000000e+00> : vector<64x128xf32>
    %131 = tpu.matmul %129, %130, %cst_34 {dimension_numbers = #tpu.dot_dimension_numbers<[1], [0], [0], [1], [0, 0, 1, 1], [], []>} : vector<64x72xbf16>, vector<72x128xbf16>, vector<64x128xf32> -> vector<64x128xf32>
    %132 = arith.addf %128, %131 : vector<64x128xf32>
    %133 = vector.extract_strided_slice %64 {offsets = [16, 0], sizes = [64, 72], strides = [1, 1]} : vector<96x72xbf16> to vector<64x72xbf16>
    %134 = vector.extract_strided_slice %2 {offsets = [144, 0], sizes = [72, 128], strides = [1, 1]} : vector<360x128xbf16> to vector<72x128xbf16>
    %cst_35 = arith.constant dense<0.000000e+00> : vector<64x128xf32>
    %135 = tpu.matmul %133, %134, %cst_35 {dimension_numbers = #tpu.dot_dimension_numbers<[1], [0], [0], [1], [0, 0, 1, 1], [], []>} : vector<64x72xbf16>, vector<72x128xbf16>, vector<64x128xf32> -> vector<64x128xf32>
    %136 = arith.addf %132, %135 : vector<64x128xf32>
    %137 = vector.extract_strided_slice %125 {offsets = [16, 0], sizes = [64, 72], strides = [1, 1]} : vector<96x72xbf16> to vector<64x72xbf16>
    %138 = vector.extract_strided_slice %2 {offsets = [216, 0], sizes = [72, 128], strides = [1, 1]} : vector<360x128xbf16> to vector<72x128xbf16>
    %cst_36 = arith.constant dense<0.000000e+00> : vector<64x128xf32>
    %139 = tpu.matmul %137, %138, %cst_36 {dimension_numbers = #tpu.dot_dimension_numbers<[1], [0], [0], [1], [0, 0, 1, 1], [], []>} : vector<64x72xbf16>, vector<72x128xbf16>, vector<64x128xf32> -> vector<64x128xf32>
    %140 = arith.addf %136, %139 : vector<64x128xf32>
    %141 = vector.extract_strided_slice %64 {offsets = [32, 0], sizes = [64, 72], strides = [1, 1]} : vector<96x72xbf16> to vector<64x72xbf16>
    %142 = vector.extract_strided_slice %2 {offsets = [288, 0], sizes = [72, 128], strides = [1, 1]} : vector<360x128xbf16> to vector<72x128xbf16>
    %cst_37 = arith.constant dense<0.000000e+00> : vector<64x128xf32>
    %143 = tpu.matmul %141, %142, %cst_37 {dimension_numbers = #tpu.dot_dimension_numbers<[1], [0], [0], [1], [0, 0, 1, 1], [], []>} : vector<64x72xbf16>, vector<72x128xbf16>, vector<64x128xf32> -> vector<64x128xf32>
    %144 = arith.addf %140, %143 : vector<64x128xf32>
    %145 = vector.extract_strided_slice %144 {offsets = [0, 0], sizes = [64, 64], strides = [1, 1]} : vector<64x128xf32> to vector<64x64xf32>
    %146 = vector.extract_strided_slice %144 {offsets = [0, 64], sizes = [64, 64], strides = [1, 1]} : vector<64x128xf32> to vector<64x64xf32>
    %147 = arith.maximumf %145, %146 : vector<64x64xf32>
    %148 = vector.extract_strided_slice %125 {offsets = [0, 0], sizes = [64, 72], strides = [1, 1]} : vector<96x72xbf16> to vector<64x72xbf16>
    %149 = vector.extract_strided_slice %2 {offsets = [0, 0], sizes = [72, 128], strides = [1, 1]} : vector<360x128xbf16> to vector<72x128xbf16>
    %cst_38 = arith.constant dense<0.000000e+00> : vector<64x128xf32>
    %150 = tpu.matmul %148, %149, %cst_38 {dimension_numbers = #tpu.dot_dimension_numbers<[1], [0], [0], [1], [0, 0, 1, 1], [], []>} : vector<64x72xbf16>, vector<72x128xbf16>, vector<64x128xf32> -> vector<64x128xf32>
    %151 = vector.extract_strided_slice %64 {offsets = [16, 0], sizes = [64, 72], strides = [1, 1]} : vector<96x72xbf16> to vector<64x72xbf16>
    %152 = vector.extract_strided_slice %2 {offsets = [72, 0], sizes = [72, 128], strides = [1, 1]} : vector<360x128xbf16> to vector<72x128xbf16>
    %cst_39 = arith.constant dense<0.000000e+00> : vector<64x128xf32>
    %153 = tpu.matmul %151, %152, %cst_39 {dimension_numbers = #tpu.dot_dimension_numbers<[1], [0], [0], [1], [0, 0, 1, 1], [], []>} : vector<64x72xbf16>, vector<72x128xbf16>, vector<64x128xf32> -> vector<64x128xf32>
    %154 = arith.addf %150, %153 : vector<64x128xf32>
    %155 = vector.extract_strided_slice %125 {offsets = [16, 0], sizes = [64, 72], strides = [1, 1]} : vector<96x72xbf16> to vector<64x72xbf16>
    %156 = vector.extract_strided_slice %2 {offsets = [144, 0], sizes = [72, 128], strides = [1, 1]} : vector<360x128xbf16> to vector<72x128xbf16>
    %cst_40 = arith.constant dense<0.000000e+00> : vector<64x128xf32>
    %157 = tpu.matmul %155, %156, %cst_40 {dimension_numbers = #tpu.dot_dimension_numbers<[1], [0], [0], [1], [0, 0, 1, 1], [], []>} : vector<64x72xbf16>, vector<72x128xbf16>, vector<64x128xf32> -> vector<64x128xf32>
    %158 = arith.addf %154, %157 : vector<64x128xf32>
    %159 = vector.extract_strided_slice %64 {offsets = [32, 0], sizes = [64, 72], strides = [1, 1]} : vector<96x72xbf16> to vector<64x72xbf16>
    %160 = vector.extract_strided_slice %2 {offsets = [216, 0], sizes = [72, 128], strides = [1, 1]} : vector<360x128xbf16> to vector<72x128xbf16>
    %cst_41 = arith.constant dense<0.000000e+00> : vector<64x128xf32>
    %161 = tpu.matmul %159, %160, %cst_41 {dimension_numbers = #tpu.dot_dimension_numbers<[1], [0], [0], [1], [0, 0, 1, 1], [], []>} : vector<64x72xbf16>, vector<72x128xbf16>, vector<64x128xf32> -> vector<64x128xf32>
    %162 = arith.addf %158, %161 : vector<64x128xf32>
    %163 = vector.extract_strided_slice %125 {offsets = [32, 0], sizes = [64, 72], strides = [1, 1]} : vector<96x72xbf16> to vector<64x72xbf16>
    %164 = vector.extract_strided_slice %2 {offsets = [288, 0], sizes = [72, 128], strides = [1, 1]} : vector<360x128xbf16> to vector<72x128xbf16>
    %cst_42 = arith.constant dense<0.000000e+00> : vector<64x128xf32>
    %165 = tpu.matmul %163, %164, %cst_42 {dimension_numbers = #tpu.dot_dimension_numbers<[1], [0], [0], [1], [0, 0, 1, 1], [], []>} : vector<64x72xbf16>, vector<72x128xbf16>, vector<64x128xf32> -> vector<64x128xf32>
    %166 = arith.addf %162, %165 : vector<64x128xf32>
    %167 = vector.extract_strided_slice %166 {offsets = [0, 0], sizes = [64, 64], strides = [1, 1]} : vector<64x128xf32> to vector<64x64xf32>
    %168 = vector.extract_strided_slice %166 {offsets = [0, 64], sizes = [64, 64], strides = [1, 1]} : vector<64x128xf32> to vector<64x64xf32>
    %169 = arith.maximumf %167, %168 : vector<64x64xf32>
    %170 = arith.maximumf %147, %169 : vector<64x64xf32>
    %c0_43 = arith.constant 0 : index
    %c0_44 = arith.constant 0 : index
    %171 = vector.load %arg5[%c0_43, %c0_44] : memref<1x64xf32, #tpu.memory_space<vmem>>, vector<1x64xf32>
    %172 = vector.broadcast %171 : vector<1x64xf32> to vector<64x64xf32>
    %173 = arith.addf %170, %172 : vector<64x64xf32>
    %cst_45 = arith.constant 0.000000e+00 : f32
    %174 = vector.broadcast %cst_45 : f32 to vector<64x64xf32>
    %175 = arith.maximumf %173, %174 : vector<64x64xf32>
    %176 = arith.truncf %175 : vector<64x64xf32> to vector<64x64xbf16>
    %177 = vector.extract_strided_slice %176 {offsets = [0, 0], sizes = [16, 64], strides = [1, 1]} : vector<64x64xbf16> to vector<16x64xbf16>
    %178 = vector.extract_strided_slice %3 {offsets = [0, 0], sizes = [64, 120], strides = [1, 1]} : vector<256x120xbf16> to vector<64x120xbf16>
    %cst_46 = arith.constant dense<0.000000e+00> : vector<16x120xf32>
    %179 = tpu.matmul %177, %178, %cst_46 {dimension_numbers = #tpu.dot_dimension_numbers<[1], [0], [0], [1], [0, 0, 1, 1], [], []>} : vector<16x64xbf16>, vector<64x120xbf16>, vector<16x120xf32> -> vector<16x120xf32>
    %180 = vector.extract_strided_slice %176 {offsets = [16, 0], sizes = [16, 64], strides = [1, 1]} : vector<64x64xbf16> to vector<16x64xbf16>
    %181 = vector.extract_strided_slice %3 {offsets = [64, 0], sizes = [64, 120], strides = [1, 1]} : vector<256x120xbf16> to vector<64x120xbf16>
    %cst_47 = arith.constant dense<0.000000e+00> : vector<16x120xf32>
    %182 = tpu.matmul %180, %181, %cst_47 {dimension_numbers = #tpu.dot_dimension_numbers<[1], [0], [0], [1], [0, 0, 1, 1], [], []>} : vector<16x64xbf16>, vector<64x120xbf16>, vector<16x120xf32> -> vector<16x120xf32>
    %183 = arith.addf %179, %182 : vector<16x120xf32>
    %184 = vector.extract_strided_slice %176 {offsets = [32, 0], sizes = [16, 64], strides = [1, 1]} : vector<64x64xbf16> to vector<16x64xbf16>
    %185 = vector.extract_strided_slice %3 {offsets = [128, 0], sizes = [64, 120], strides = [1, 1]} : vector<256x120xbf16> to vector<64x120xbf16>
    %cst_48 = arith.constant dense<0.000000e+00> : vector<16x120xf32>
    %186 = tpu.matmul %184, %185, %cst_48 {dimension_numbers = #tpu.dot_dimension_numbers<[1], [0], [0], [1], [0, 0, 1, 1], [], []>} : vector<16x64xbf16>, vector<64x120xbf16>, vector<16x120xf32> -> vector<16x120xf32>
    %187 = arith.addf %183, %186 : vector<16x120xf32>
    %188 = vector.extract_strided_slice %176 {offsets = [48, 0], sizes = [16, 64], strides = [1, 1]} : vector<64x64xbf16> to vector<16x64xbf16>
    %189 = vector.extract_strided_slice %3 {offsets = [192, 0], sizes = [64, 120], strides = [1, 1]} : vector<256x120xbf16> to vector<64x120xbf16>
    %cst_49 = arith.constant dense<0.000000e+00> : vector<16x120xf32>
    %190 = tpu.matmul %188, %189, %cst_49 {dimension_numbers = #tpu.dot_dimension_numbers<[1], [0], [0], [1], [0, 0, 1, 1], [], []>} : vector<16x64xbf16>, vector<64x120xbf16>, vector<16x120xf32> -> vector<16x120xf32>
    %191 = arith.addf %187, %190 : vector<16x120xf32>
    %c0_50 = arith.constant 0 : index
    %c0_51 = arith.constant 0 : index
    %192 = vector.load %arg7[%c0_50, %c0_51] : memref<1x120xf32, #tpu.memory_space<vmem>>, vector<1x120xf32>
    %193 = vector.broadcast %192 : vector<1x120xf32> to vector<16x120xf32>
    %194 = arith.addf %191, %193 : vector<16x120xf32>
    %cst_52 = arith.constant 0.000000e+00 : f32
    %195 = vector.broadcast %cst_52 : f32 to vector<16x120xf32>
    %196 = arith.maximumf %194, %195 : vector<16x120xf32>
    %197 = arith.truncf %196 : vector<16x120xf32> to vector<16x120xbf16>
    %c0_53 = arith.constant 0 : index
    %c0_54 = arith.constant 0 : index
    %198 = vector.load %arg8[%c0_53, %c0_54] : memref<120x84xbf16, #tpu.memory_space<vmem>>, vector<120x84xbf16>
    %cst_55 = arith.constant dense<0.000000e+00> : vector<16x84xf32>
    %199 = tpu.matmul %197, %198, %cst_55 {dimension_numbers = #tpu.dot_dimension_numbers<[1], [0], [0], [1], [0, 0, 1, 1], [], []>} : vector<16x120xbf16>, vector<120x84xbf16>, vector<16x84xf32> -> vector<16x84xf32>
    %c0_56 = arith.constant 0 : index
    %c0_57 = arith.constant 0 : index
    %200 = vector.load %arg9[%c0_56, %c0_57] : memref<1x84xf32, #tpu.memory_space<vmem>>, vector<1x84xf32>
    %201 = vector.broadcast %200 : vector<1x84xf32> to vector<16x84xf32>
    %202 = arith.addf %199, %201 : vector<16x84xf32>
    %cst_58 = arith.constant 0.000000e+00 : f32
    %203 = vector.broadcast %cst_58 : f32 to vector<16x84xf32>
    %204 = arith.cmpf ogt, %202, %203 : vector<16x84xf32>
    %205 = math.exp %202 : vector<16x84xf32>
    %cst_59 = arith.constant 1.000000e+00 : f32
    %206 = vector.broadcast %cst_59 : f32 to vector<16x84xf32>
    %207 = arith.subf %205, %206 : vector<16x84xf32>
    %cst_60 = arith.constant 1.67326319 : f32
    %208 = vector.broadcast %cst_60 : f32 to vector<16x84xf32>
    %209 = arith.mulf %208, %207 : vector<16x84xf32>
    %210 = arith.select %204, %202, %209 : vector<16x84xi1>, vector<16x84xf32>
    %cst_61 = arith.constant 1.05070102 : f32
    %211 = vector.broadcast %cst_61 : f32 to vector<16x84xf32>
    %212 = arith.mulf %211, %210 : vector<16x84xf32>
    %213 = arith.truncf %212 : vector<16x84xf32> to vector<16x84xbf16>
    %c0_62 = arith.constant 0 : index
    %c0_63 = arith.constant 0 : index
    %214 = vector.load %arg10[%c0_62, %c0_63] : memref<84x10xbf16, #tpu.memory_space<vmem>>, vector<84x10xbf16>
    %cst_64 = arith.constant dense<0.000000e+00> : vector<16x10xf32>
    %215 = tpu.matmul %213, %214, %cst_64 {dimension_numbers = #tpu.dot_dimension_numbers<[1], [0], [0], [1], [0, 0, 1, 1], [], []>} : vector<16x84xbf16>, vector<84x10xbf16>, vector<16x10xf32> -> vector<16x10xf32>
    %c0_65 = arith.constant 0 : index
    %c0_66 = arith.constant 0 : index
    %216 = vector.load %arg11[%c0_65, %c0_66] : memref<1x10xf32, #tpu.memory_space<vmem>>, vector<1x10xf32>
    %217 = vector.broadcast %216 : vector<1x10xf32> to vector<16x10xf32>
    %218 = arith.addf %215, %217 : vector<16x10xf32>
    %cst_67 = arith.constant dense<0xFF800000> : vector<16xf32>
    %219 = vector.multi_reduction <maximumf>, %218, %cst_67 [1] : vector<16x10xf32> to vector<16xf32>
    %220 = vector.shape_cast %219 : vector<16xf32> to vector<16x1xf32>
    %221 = vector.broadcast %220 : vector<16x1xf32> to vector<16x10xf32>
    %222 = arith.subf %218, %221 : vector<16x10xf32>
    %223 = math.exp %222 : vector<16x10xf32>
    %cst_68 = arith.constant dense<0.000000e+00> : vector<16xf32>
    %224 = vector.multi_reduction <add>, %223, %cst_68 [1] : vector<16x10xf32> to vector<16xf32>
    %225 = vector.shape_cast %224 : vector<16xf32> to vector<16x1xf32>
    %226 = math.log %225 : vector<16x1xf32>
    %227 = arith.addf %226, %220 : vector<16x1xf32>
    %228 = vector.broadcast %227 : vector<16x1xf32> to vector<16x10xf32>
    %229 = arith.subf %218, %228 : vector<16x10xf32>
    %c0_69 = arith.constant 0 : index
    %c0_70 = arith.constant 0 : index
    %230 = vector.load %arg12[%c0_69, %c0_70] : memref<16x10xf32, #tpu.memory_space<vmem>>, vector<16x10xf32>
    tpu.vector_store %arg12[%c0_69, %c0_70], %229 {strides = array<i32>} : memref<16x10xf32, #tpu.memory_space<vmem>>, vector<16x10xf32>,
    return
  }
  func.func @transform_0(%arg0: i32) -> (i32, i32, i32) {
    %c0_i32 = arith.constant 0 : i32
    %c0_i32_0 = arith.constant 0 : i32
    %c0_i32_1 = arith.constant 0 : i32
    return %c0_i32, %arg0, %c0_i32_0 : i32, i32, i32
  }
  func.func @transform_1(%arg0: i32) -> (i32, i32) {
    %c0_i32 = arith.constant 0 : i32
    %c0_i32_0 = arith.constant 0 : i32
    %c0_i32_1 = arith.constant 0 : i32
    return %c0_i32, %c0_i32_0 : i32, i32
  }
  func.func @transform_2(%arg0: i32) -> (i32, i32) {
    %c0_i32 = arith.constant 0 : i32
    %c0_i32_0 = arith.constant 0 : i32
    %c0_i32_1 = arith.constant 0 : i32
    return %c0_i32, %c0_i32_0 : i32, i32
  }
  func.func @transform_3(%arg0: i32) -> (i32, i32) {
    %c0_i32 = arith.constant 0 : i32
    %c0_i32_0 = arith.constant 0 : i32
    %c0_i32_1 = arith.constant 0 : i32
    return %c0_i32, %c0_i32_0 : i32, i32
  }
  func.func @transform_4(%arg0: i32) -> (i32, i32) {
    %c0_i32 = arith.constant 0 : i32
    %c0_i32_0 = arith.constant 0 : i32
    %c0_i32_1 = arith.constant 0 : i32
    return %c0_i32, %c0_i32_0 : i32, i32
  }
  func.func @transform_5(%arg0: i32) -> (i32, i32) {
    %c0_i32 = arith.constant 0 : i32
    %c0_i32_0 = arith.constant 0 : i32
    %c0_i32_1 = arith.constant 0 : i32
    return %c0_i32, %c0_i32_0 : i32, i32
  }
  func.func @transform_6(%arg0: i32) -> (i32, i32) {
    %c0_i32 = arith.constant 0 : i32
    %c0_i32_0 = arith.constant 0 : i32
    %c0_i32_1 = arith.constant 0 : i32
    return %c0_i32, %c0_i32_0 : i32, i32
  }
  func.func @transform_7(%arg0: i32) -> (i32, i32) {
    %c0_i32 = arith.constant 0 : i32
    %c0_i32_0 = arith.constant 0 : i32
    %c0_i32_1 = arith.constant 0 : i32
    return %c0_i32, %c0_i32_0 : i32, i32
  }
  func.func @transform_8(%arg0: i32) -> (i32, i32) {
    %c0_i32 = arith.constant 0 : i32
    %c0_i32_0 = arith.constant 0 : i32
    %c0_i32_1 = arith.constant 0 : i32
    return %c0_i32, %c0_i32_0 : i32, i32
  }
  func.func @transform_9(%arg0: i32) -> (i32, i32) {
    %c0_i32 = arith.constant 0 : i32
    %c0_i32_0 = arith.constant 0 : i32
    %c0_i32_1 = arith.constant 0 : i32
    return %c0_i32, %c0_i32_0 : i32, i32
  }
  func.func @transform_10(%arg0: i32) -> (i32, i32) {
    %c0_i32 = arith.constant 0 : i32
    %c0_i32_0 = arith.constant 0 : i32
    %c0_i32_1 = arith.constant 0 : i32
    return %c0_i32, %c0_i32_0 : i32, i32
  }
  func.func @transform_11(%arg0: i32) -> (i32, i32) {
    %c0_i32 = arith.constant 0 : i32
    %c0_i32_0 = arith.constant 0 : i32
    return %arg0, %c0_i32 : i32, i32
  }
}

</mosaic_0001>

<llo_original>
// kernel: convnet_forward.1
$region0: #{convnet_forward.1}
  #allocation0 [shape = 'u32[]', space=smem, size = 0x4, offset = 0x4, fixed_abs, tag = 'smem constant byte address 0x4 - core index']
  #allocation1 [shape = 'u32[144,128]{1,0:T(1,128)}', space=vmem, size = 0x12000, scoped, tag = 'internal scratch']
  %s0 = inlined_call_operand.vmem [shape: bf16[4,112,28], index: 0, kind: input, shape index: {}]
  %s1 = inlined_call_operand.vmem [shape: bf16[140,144], index: 1, kind: input, shape index: {}]
  %s2 = inlined_call_operand.vmem [shape: f32[1,72], index: 2, kind: input, shape index: {}]
  %s3 = inlined_call_operand.vmem [shape: bf16[360,128], index: 3, kind: input, shape index: {}]
  %s4 = inlined_call_operand.vmem [shape: f32[1,64], index: 4, kind: input, shape index: {}]
  %s5 = inlined_call_operand.vmem [shape: bf16[256,120], index: 5, kind: input, shape index: {}]
  %s6 = inlined_call_operand.vmem [shape: f32[1,120], index: 6, kind: input, shape index: {}]
  %s7 = inlined_call_operand.vmem [shape: bf16[120,84], index: 7, kind: input, shape index: {}]
  %s8 = inlined_call_operand.vmem [shape: f32[1,84], index: 8, kind: input, shape index: {}]
  %s9 = inlined_call_operand.vmem [shape: bf16[84,10], index: 9, kind: input, shape index: {}]
  %s10 = inlined_call_operand.vmem [shape: f32[1,10], index: 10, kind: input, shape index: {}]
  %s11 = inlined_call_operand.vmem [shape: f32[16,10], index: 11, kind: output, shape index: {}]
  %s12 = sld [smem:[#allocation0]]
  $region54: #{convnet_forward.1} parent=0
    _
  %s14 = ssub.s32 1, %s12
  %s15 = scalar_select 0, %s14, %s12
  // Predicated region
  $region2: #{convnet_forward.1} parent=0 // pred_check
    _
  $region3: #{convnet_forward.1} parent=0 // pred_check_branch
    %17 = sbr.rel (0) target = $region5
  $region4: #{convnet_forward.1} parent=0 // pred_region
    _
  $region5: #{convnet_forward.1} parent=0 // pred_fallthru
    _
  // Predicated region
  $region6: #{convnet_forward.1} parent=0 // pred_check
    _
  $region7: #{convnet_forward.1} parent=0 // pred_check_branch
    %19 = sbr.rel (0) target = $region9
  $region8: #{convnet_forward.1} parent=0 // pred_region
    _
  $region9: #{convnet_forward.1} parent=0 // pred_fallthru
    _
  // Predicated region
  $region10: #{convnet_forward.1} parent=0 // pred_check
    _
  $region11: #{convnet_forward.1} parent=0 // pred_check_branch
    %21 = sbr.rel (0) target = $region13
  $region12: #{convnet_forward.1} parent=0 // pred_region
    _
  $region13: #{convnet_forward.1} parent=0 // pred_fallthru
    _
  // Predicated region
  $region14: #{convnet_forward.1} parent=0 // pred_check
    _
  $region15: #{convnet_forward.1} parent=0 // pred_check_branch
    %23 = sbr.rel (0) target = $region17
  $region16: #{convnet_forward.1} parent=0 // pred_region
    _
  $region17: #{convnet_forward.1} parent=0 // pred_fallthru
    _
  // Predicated region
  $region18: #{convnet_forward.1} parent=0 // pred_check
    _
  $region19: #{convnet_forward.1} parent=0 // pred_check_branch
    %25 = sbr.rel (0) target = $region21
  $region20: #{convnet_forward.1} parent=0 // pred_region
    _
  $region21: #{convnet_forward.1} parent=0 // pred_fallthru
    _
  // Predicated region
  $region22: #{convnet_forward.1} parent=0 // pred_check
    _
  $region23: #{convnet_forward.1} parent=0 // pred_check_branch
    %27 = sbr.rel (0) target = $region25
  $region24: #{convnet_forward.1} parent=0 // pred_region
    _
  $region25: #{convnet_forward.1} parent=0 // pred_fallthru
    _
  // Predicated region
  $region26: #{convnet_forward.1} parent=0 // pred_check
    _
  $region27: #{convnet_forward.1} parent=0 // pred_check_branch
    %29 = sbr.rel (0) target = $region29
  $region28: #{convnet_forward.1} parent=0 // pred_region
    _
  $region29: #{convnet_forward.1} parent=0 // pred_fallthru
    _
  // Predicated region
  $region30: #{convnet_forward.1} parent=0 // pred_check
    _
  $region31: #{convnet_forward.1} parent=0 // pred_check_branch
    %31 = sbr.rel (0) target = $region33
  $region32: #{convnet_forward.1} parent=0 // pred_region
    _
  $region33: #{convnet_forward.1} parent=0 // pred_fallthru
    _
  // Predicated region
  $region34: #{convnet_forward.1} parent=0 // pred_check
    _
  $region35: #{convnet_forward.1} parent=0 // pred_check_branch
    %33 = sbr.rel (0) target = $region37
  $region36: #{convnet_forward.1} parent=0 // pred_region
    _
  $region37: #{convnet_forward.1} parent=0 // pred_fallthru
    _
  // Predicated region
  $region38: #{convnet_forward.1} parent=0 // pred_check
    _
  $region39: #{convnet_forward.1} parent=0 // pred_check_branch
    %35 = sbr.rel (0) target = $region41
  $region40: #{convnet_forward.1} parent=0 // pred_region
    _
  $region41: #{convnet_forward.1} parent=0 // pred_fallthru
    _
  // Predicated region
  $region42: #{convnet_forward.1} parent=0 // pred_check
    _
  $region43: #{convnet_forward.1} parent=0 // pred_check_branch
    %37 = sbr.rel (0) target = $region45
  $region44: #{convnet_forward.1} parent=0 // pred_region
    _
  $region45: #{convnet_forward.1} parent=0 // pred_fallthru
    _
  %v39 = vld [vmem:[%s0] sm:$0xf]
  %v40 = vld [vmem:[%s0 + $0x4] sm:$0xf]
  %v41 = vld [vmem:[%s0 + $0x8] sm:$0xf]
  %v42 = vld [vmem:[%s0 + $0xc] sm:$0xf]
  %v43 = vld [vmem:[%s0 + $0x10] sm:$0xf]
  %v44 = vld [vmem:[%s0 + $0x14] sm:$0xf]
  %v45 = vld [vmem:[%s0 + $0x18] sm:$0xf]
  %v46 = vld [vmem:[%s0 + $0x1c] sm:$0xf]
  %v47 = vld [vmem:[%s0 + $0x20] sm:$0xf]
  %v48 = vld [vmem:[%s0 + $0x24] sm:$0xf]
  %v49 = vld [vmem:[%s0 + $0x28] sm:$0xf]
  %v50 = vld [vmem:[%s0 + $0x2c] sm:$0xf]
  %v51 = vld [vmem:[%s0 + $0x30] sm:$0xf]
  %v52 = vld [vmem:[%s0 + $0x34] sm:$0xf]
  %v53 = vld [vmem:[%s0 + $0x38] sm:$0xf]
  %v54 = vld [vmem:[%s0 + $0x3c] sm:$0xf]
  %v55 = vld [vmem:[%s0 + $0x40] sm:$0xf]
  %v56 = vld [vmem:[%s0 + $0x44] sm:$0xf]
  %v57 = vld [vmem:[%s0 + $0x48] sm:$0xf]
  %v58 = vld [vmem:[%s0 + $0x4c] sm:$0xf]
  %v59 = vld [vmem:[%s0 + $0x50] sm:$0xf]
  %v60 = vld [vmem:[%s0 + $0x54] sm:$0xf]
  %v61 = vld [vmem:[%s0 + $0x58] sm:$0xf]
  %v62 = vld [vmem:[%s0 + $0x5c] sm:$0xf]
  %v63 = vld [vmem:[%s0 + $0x60] sm:$0xf]
  %v64 = vld [vmem:[%s0 + $0x64] sm:$0xf]
  %v65 = vld [vmem:[%s0 + $0x68] sm:$0xf]
  %v66 = vld [vmem:[%s0 + $0x6c] sm:$0xf]
  %v67 = vld [vmem:[%s0 + $0x70] sm:$0xf]
  %v68 = vld [vmem:[%s0 + $0x74] sm:$0xf]
  %v69 = vld [vmem:[%s0 + $0x78] sm:$0xf]
  %v70 = vld [vmem:[%s0 + $0x7c] sm:$0xf]
  %v71 = vld [vmem:[%s0 + $0x80] sm:$0xf]
  %v72 = vld [vmem:[%s0 + $0x84] sm:$0xf]
  %v73 = vld [vmem:[%s0 + $0x88] sm:$0xf]
  %v74 = vld [vmem:[%s0 + $0x8c] sm:$0xf]
  %v75 = vld [vmem:[%s0 + $0x90] sm:$0xf]
  %v76 = vld [vmem:[%s0 + $0x94] sm:$0xf]
  %v77 = vld [vmem:[%s0 + $0x98] sm:$0xf]
  %v78 = vld [vmem:[%s0 + $0x9c] sm:$0xf]
  %v79 = vld [vmem:[%s0 + $0xa0] sm:$0xf]
  %v80 = vld [vmem:[%s0 + $0xa4] sm:$0xf]
  %v81 = vld [vmem:[%s0 + $0xa8] sm:$0xf]
  %v82 = vld [vmem:[%s0 + $0xac] sm:$0xf]
  %v83 = vld [vmem:[%s0 + $0xb0] sm:$0xf]
  %v84 = vld [vmem:[%s0 + $0xb4] sm:$0xf]
  %v85 = vld [vmem:[%s0 + $0xb8] sm:$0xf]
  %v86 = vld [vmem:[%s0 + $0xbc] sm:$0xf]
  %v87 = vld [vmem:[%s0 + $0xc0] sm:$0xf]
  %v88 = vld [vmem:[%s0 + $0xc4] sm:$0xf]
  %v89 = vld [vmem:[%s0 + $0xc8] sm:$0xf]
  %v90 = vld [vmem:[%s0 + $0xcc] sm:$0xf]
  %v91 = vld [vmem:[%s0 + $0xd0] sm:$0xf]
  %v92 = vld [vmem:[%s0 + $0xd4] sm:$0xf]
  %v93 = vld [vmem:[%s0 + $0xd8] sm:$0xf]
  %v94 = vld [vmem:[%s0 + $0xdc] sm:$0xf]
  %v95 = vld [vmem:[%s1] sm:$0xff]
  %v96 = vld [vmem:[%s1 + $0x8] sm:$0xff]
  %v97 = vld [vmem:[%s1 + $0x10] sm:$0xff]
  %v98 = vld [vmem:[%s1 + $0x18] sm:$0xff]
  %v99 = vld [vmem:[%s1 + $0x20] sm:$0xff]
  %v100 = vld [vmem:[%s1 + $0x28] sm:$0xff]
  %v101 = vld [vmem:[%s1 + $0x30] sm:$0xff]
  %v102 = vld [vmem:[%s1 + $0x38] sm:$0xff]
  %v103 = vld [vmem:[%s1 + $0x40] sm:$0xff]
  %v104 = vld [vmem:[%s1 + $0x48] sm:$0xff]
  %v105 = vld [vmem:[%s1 + $0x50] sm:$0xff]
  %v106 = vld [vmem:[%s1 + $0x58] sm:$0xff]
  %v107 = vld [vmem:[%s1 + $0x60] sm:$0xff]
  %v108 = vld [vmem:[%s1 + $0x68] sm:$0xff]
  %v109 = vld [vmem:[%s1 + $0x70] sm:$0xff]
  %v110 = vld [vmem:[%s1 + $0x78] sm:$0xff]
  %v111 = vld [vmem:[%s1 + $0x80] sm:$0xff]
  %v112 = vld [vmem:[%s1 + $0x88] sm:$0x33]
  %v113 = vld [vmem:[%s3] sm:$0xf]
  %v114 = vld [vmem:[%s3 + $0x4] sm:$0xf]
  %v115 = vld [vmem:[%s3 + $0x8] sm:$0xf]
  %v116 = vld [vmem:[%s3 + $0xc] sm:$0xf]
  %v117 = vld [vmem:[%s3 + $0x10] sm:$0xf]
  %v118 = vld [vmem:[%s3 + $0x14] sm:$0xf]
  %v119 = vld [vmem:[%s3 + $0x18] sm:$0xf]
  %v120 = vld [vmem:[%s3 + $0x1c] sm:$0xf]
  %v121 = vld [vmem:[%s3 + $0x20] sm:$0xf]
  %v122 = vld [vmem:[%s3 + $0x24] sm:$0xf]
  %v123 = vld [vmem:[%s3 + $0x28] sm:$0xf]
  %v124 = vld [vmem:[%s3 + $0x2c] sm:$0xf]
  %v125 = vld [vmem:[%s3 + $0x30] sm:$0xf]
  %v126 = vld [vmem:[%s3 + $0x34] sm:$0xf]
  %v127 = vld [vmem:[%s3 + $0x38] sm:$0xf]
  %v128 = vld [vmem:[%s3 + $0x3c] sm:$0xf]
  %v129 = vld [vmem:[%s3 + $0x40] sm:$0xf]
  %v130 = vld [vmem:[%s3 + $0x44] sm:$0xf]
  %v131 = vld [vmem:[%s3 + $0x48] sm:$0xf]
  %v132 = vld [vmem:[%s3 + $0x4c] sm:$0xf]
  %v133 = vld [vmem:[%s3 + $0x50] sm:$0xf]
  %v134 = vld [vmem:[%s3 + $0x54] sm:$0xf]
  %v135 = vld [vmem:[%s3 + $0x58] sm:$0xf]
  %v136 = vld [vmem:[%s3 + $0x5c] sm:$0xf]
  %v137 = vld [vmem:[%s3 + $0x60] sm:$0xf]
  %v138 = vld [vmem:[%s3 + $0x64] sm:$0xf]
  %v139 = vld [vmem:[%s3 + $0x68] sm:$0xf]
  %v140 = vld [vmem:[%s3 + $0x6c] sm:$0xf]
  %v141 = vld [vmem:[%s3 + $0x70] sm:$0xf]
  %v142 = vld [vmem:[%s3 + $0x74] sm:$0xf]
  %v143 = vld [vmem:[%s3 + $0x78] sm:$0xf]
  %v144 = vld [vmem:[%s3 + $0x7c] sm:$0xf]
  %v145 = vld [vmem:[%s3 + $0x80] sm:$0xf]
  %v146 = vld [vmem:[%s3 + $0x84] sm:$0xf]
  %v147 = vld [vmem:[%s3 + $0x88] sm:$0xf]
  %v148 = vld [vmem:[%s3 + $0x8c] sm:$0xf]
  %v149 = vld [vmem:[%s3 + $0x90] sm:$0xf]
  %v150 = vld [vmem:[%s3 + $0x94] sm:$0xf]
  %v151 = vld [vmem:[%s3 + $0x98] sm:$0xf]
  %v152 = vld [vmem:[%s3 + $0x9c] sm:$0xf]
  %v153 = vld [vmem:[%s3 + $0xa0] sm:$0xf]
  %v154 = vld [vmem:[%s3 + $0xa4] sm:$0xf]
  %v155 = vld [vmem:[%s3 + $0xa8] sm:$0xf]
  %v156 = vld [vmem:[%s3 + $0xac] sm:$0xf]
  %v157 = vld [vmem:[%s3 + $0xb0] sm:$0xf]
  %v158 = vld [vmem:[%s5] sm:$0xf]
  %v159 = vld [vmem:[%s5 + $0x4] sm:$0xf]
  %v160 = vld [vmem:[%s5 + $0x8] sm:$0xf]
  %v161 = vld [vmem:[%s5 + $0xc] sm:$0xf]
  %v162 = vld [vmem:[%s5 + $0x10] sm:$0xf]
  %v163 = vld [vmem:[%s5 + $0x14] sm:$0xf]
  %v164 = vld [vmem:[%s5 + $0x18] sm:$0xf]
  %v165 = vld [vmem:[%s5 + $0x1c] sm:$0xf]
  %v166 = vld [vmem:[%s5 + $0x20] sm:$0xf]
  %v167 = vld [vmem:[%s5 + $0x24] sm:$0xf]
  %v168 = vld [vmem:[%s5 + $0x28] sm:$0xf]
  %v169 = vld [vmem:[%s5 + $0x2c] sm:$0xf]
  %v170 = vld [vmem:[%s5 + $0x30] sm:$0xf]
  %v171 = vld [vmem:[%s5 + $0x34] sm:$0xf]
  %v172 = vld [vmem:[%s5 + $0x38] sm:$0xf]
  %v173 = vld [vmem:[%s5 + $0x3c] sm:$0xf]
  %v174 = vld [vmem:[%s5 + $0x40] sm:$0xf]
  %v175 = vld [vmem:[%s5 + $0x44] sm:$0xf]
  %v176 = vld [vmem:[%s5 + $0x48] sm:$0xf]
  %v177 = vld [vmem:[%s5 + $0x4c] sm:$0xf]
  %v178 = vld [vmem:[%s5 + $0x50] sm:$0xf]
  %v179 = vld [vmem:[%s5 + $0x54] sm:$0xf]
  %v180 = vld [vmem:[%s5 + $0x58] sm:$0xf]
  %v181 = vld [vmem:[%s5 + $0x5c] sm:$0xf]
  %v182 = vld [vmem:[%s5 + $0x60] sm:$0xf]
  %v183 = vld [vmem:[%s5 + $0x64] sm:$0xf]
  %v184 = vld [vmem:[%s5 + $0x68] sm:$0xf]
  %v185 = vld [vmem:[%s5 + $0x6c] sm:$0xf]
  %v186 = vld [vmem:[%s5 + $0x70] sm:$0xf]
  %v187 = vld [vmem:[%s5 + $0x74] sm:$0xf]
  %v188 = vld [vmem:[%s5 + $0x78] sm:$0xf]
  %v189 = vld [vmem:[%s5 + $0x7c] sm:$0xf]
  %v202 = vunpack.c.l.b16 %v53
  %v203 = vunpack.c.l.b16 %v54
  %v204 = vunpack.c.l.b16 %v55
  %v205 = vunpack.c.l.b16 %v56
  %v206 = vunpack.c.l.b16 %v57
  %v207 = vunpack.c.l.b16 %v58
  %v208 = vunpack.c.l.b16 %v59
  %v209 = vunpack.c.l.b16 %v60
  %v210 = vunpack.c.l.b16 %v61
  %v211 = vunpack.c.l.b16 %v62
  %v212 = vunpack.c.l.b16 %v63
  %v213 = vunpack.c.l.b16 %v64
  %v214 = vpack.c.b16 %v203, %v202
  %v215 = vpack.c.b16 %v205, %v204
  %v216 = vpack.c.b16 %v207, %v206
  %v217 = vpack.c.b16 %v209, %v208
  %v218 = vpack.c.b16 %v211, %v210
  %v219 = vpack.c.b16 %v213, %v212
  %v224 = vunpack.c.l.b16 %v98
  %v225 = vunpack.c.h.b16 %v98
  %v226 = vunpack.c.l.b16 %v99
  %v227 = vunpack.c.h.b16 %v99
  %v228 = vunpack.c.l.b16 %v100
  %v229 = vunpack.c.h.b16 %v100
  %v230 = vunpack.c.l.b16 %v101
  %v231 = vunpack.c.h.b16 %v101
  %v232 = vpack.c.b16 %v226, %v224
  %v233 = vpack.c.b16 %v227, %v225
  %v234 = vpack.c.b16 %v230, %v228
  %v235 = vpack.c.b16 %v231, %v229
  %vm236 = vcmask 1045504
  %v237 = vrot.slane %v232, 2
  %v238 = vrot.slane %v234, 2
  %v239 = vsel %vm236, %v237, %v238
  %v240 = vrot.slane %v233, 2
  %v241 = vrot.slane %v235, 2
  %v242 = vsel %vm236, %v240, %v241
  %vm245 = vcmask 228352
  %v247 = vsel %vm245, %v214, 0
  %v250 = vsel %vm245, %v215, 0
  %v253 = vsel %vm245, %v216, 0
  %v256 = vsel %vm245, %v217, 0
  %v259 = vsel %vm245, %v218, 0
  %v262 = vsel %vm245, %v219, 0
  %vm264 = vcmask 1045504
  %v266 = vsel %vm264, %v238, 0
  %v269 = vsel %vm264, %v241, 0
  %271 = vmatprep.subr.bf16.mxu0 %v242
  %272 = vmatpush1.bf16.msra.mxu0 %v239
  %273 = vmatprep.subr.bf16.mxu0 %v269
  %274 = vmatpush1.bf16.msra.mxu0 %v266
  %275 = vmatprep.subr.bf16.mxu0 0
  %276 = vmatpush1.bf16.msra.mxu0 0
  %277 = vmatprep.subr.bf16.mxu0 0
  %278 = vmatpush1.bf16.msra.mxu0 0
  %279 = vmatprep.subr.bf16.mxu0 0
  %280 = vmatpush1.bf16.msra.mxu0 0
  %281 = vmatprep.subr.bf16.mxu0 0
  %282 = vmatpush1.bf16.msra.mxu0 0
  %283 = vmatprep.subr.bf16.mxu0 0
  %284 = vmatpush1.bf16.msra.mxu0 0
  %285 = vmatprep.subr.bf16.mxu0 0
  %286 = vmatpush1.bf16.msra.mxu0 0
  %287 = vmatprep.subr.bf16.mxu0 0
  %288 = vmatpush1.bf16.msra.mxu0 0
  %289 = vmatprep.subr.bf16.mxu0 0
  %290 = vmatpush1.bf16.msra.mxu0 0
  %291 = vmatprep.subr.bf16.mxu0 0
  %292 = vmatpush1.bf16.msra.mxu0 0
  %293 = vmatprep.subr.bf16.mxu0 0
  %294 = vmatpush1.bf16.msra.mxu0 0
  %295 = vmatprep.subr.bf16.mxu0 0
  %296 = vmatpush1.bf16.msra.mxu0 0
  %297 = vmatprep.subr.bf16.mxu0 0
  %298 = vmatpush1.bf16.msra.mxu0 0
  %299 = vmatprep.subr.bf16.mxu0 0
  %300 = vmatpush1.bf16.msra.mxu0 0
  %301 = vmatprep.subr.bf16.mxu0 0
  %302 = vmatpush1.bf16.msra.mxu0 0
  %303 = vmatprep.mubr.bf16.mxu0 0
  %304 = vmatmul.mubr.bf16.gmra.mrb[0].mxu0 %v247
  %v305 = vpop.f32.mrb[0].mxu0
  %v306 = vadd.f32 0.0, %v305
  %v307 = vpop.f32.mrb[0].mxu0
  %v308 = vadd.f32 0.0, %v307
  %v309 = vpop.f32.mrb[0].mxu0
  %v310 = vadd.f32 0.0, %v309
  %v311 = vpop.f32.mrb[0].mxu0
  %v312 = vadd.f32 0.0, %v311
  %313 = vmatprep.mubr.bf16.mxu0 0
  %314 = vmatmul.mubr.bf16.gmra.mrb[0].mxu0 %v250
  %v315 = vpop.f32.mrb[0].mxu0
  %v316 = vadd.f32 0.0, %v315
  %v317 = vpop.f32.mrb[0].mxu0
  %v318 = vadd.f32 0.0, %v317
  %v319 = vpop.f32.mrb[0].mxu0
  %v320 = vadd.f32 0.0, %v319
  %v321 = vpop.f32.mrb[0].mxu0
  %v322 = vadd.f32 0.0, %v321
  %323 = vmatprep.mubr.bf16.mxu0 0
  %324 = vmatmul.mubr.bf16.gmra.mrb[0].mxu0 %v253
  %v325 = vpop.f32.mrb[0].mxu0
  %v326 = vadd.f32 0.0, %v325
  %v327 = vpop.f32.mrb[0].mxu0
  %v328 = vadd.f32 0.0, %v327
  %v329 = vpop.f32.mrb[0].mxu0
  %v330 = vadd.f32 0.0, %v329
  %v331 = vpop.f32.mrb[0].mxu0
  %v332 = vadd.f32 0.0, %v331
  %333 = vmatprep.mubr.bf16.mxu0 0
  %334 = vmatmul.mubr.bf16.gmra.mrb[0].mxu0 %v256
  %v335 = vpop.f32.mrb[0].mxu0
  %v336 = vadd.f32 0.0, %v335
  %v337 = vpop.f32.mrb[0].mxu0
  %v338 = vadd.f32 0.0, %v337
  %v339 = vpop.f32.mrb[0].mxu0
  %v340 = vadd.f32 0.0, %v339
  %v341 = vpop.f32.mrb[0].mxu0
  %v342 = vadd.f32 0.0, %v341
  %343 = vmatprep.mubr.bf16.mxu0 0
  %344 = vmatmul.mubr.bf16.gmra.mrb[0].mxu0 %v259
  %v345 = vpop.f32.mrb[0].mxu0
  %v346 = vadd.f32 0.0, %v345
  %v347 = vpop.f32.mrb[0].mxu0
  %v348 = vadd.f32 0.0, %v347
  %v349 = vpop.f32.mrb[0].mxu0
  %v350 = vadd.f32 0.0, %v349
  %v351 = vpop.f32.mrb[0].mxu0
  %v352 = vadd.f32 0.0, %v351
  %353 = vmatprep.mubr.bf16.mxu0 0
  %354 = vmatmul.mubr.bf16.gmra.mrb[0].mxu0 %v262
  %v355 = vpop.f32.mrb[0].mxu0
  %v356 = vadd.f32 0.0, %v355
  %v357 = vpop.f32.mrb[0].mxu0
  %v358 = vadd.f32 0.0, %v357
  %v359 = vpop.f32.mrb[0].mxu0
  %v360 = vadd.f32 0.0, %v359
  %v361 = vpop.f32.mrb[0].mxu0
  %v362 = vadd.f32 0.0, %v361
  %363 = vdwg.mxu0
  %v376 = vunpack.c.l.b16 %v39
  %v377 = vunpack.c.l.b16 %v40
  %v378 = vunpack.c.l.b16 %v41
  %v379 = vunpack.c.l.b16 %v42
  %v380 = vunpack.c.l.b16 %v43
  %v381 = vunpack.c.l.b16 %v44
  %v382 = vunpack.c.l.b16 %v45
  %v383 = vunpack.c.l.b16 %v46
  %v384 = vunpack.c.l.b16 %v47
  %v385 = vunpack.c.l.b16 %v48
  %v386 = vunpack.c.l.b16 %v49
  %v387 = vunpack.c.l.b16 %v50
  %v388 = vpack.c.b16 %v377, %v376
  %v389 = vpack.c.b16 %v379, %v378
  %v390 = vpack.c.b16 %v381, %v380
  %v391 = vpack.c.b16 %v383, %v382
  %v392 = vpack.c.b16 %v385, %v384
  %v393 = vpack.c.b16 %v387, %v386
  %v397 = vunpack.c.l.b16 %v95
  %v398 = vunpack.c.h.b16 %v95
  %v399 = vunpack.c.l.b16 %v96
  %v400 = vunpack.c.h.b16 %v96
  %v401 = vunpack.c.l.b16 %v97
  %v402 = vunpack.c.h.b16 %v97
  %v403 = vpack.c.b16 %v399, %v397
  %v404 = vpack.c.b16 %v400, %v398
  %v405 = vpack.c.b16 %v224, %v401
  %v406 = vpack.c.b16 %v225, %v402
  %v410 = vsel %vm245, %v388, 0
  %v413 = vsel %vm245, %v389, 0
  %v416 = vsel %vm245, %v390, 0
  %v419 = vsel %vm245, %v391, 0
  %v422 = vsel %vm245, %v392, 0
  %v425 = vsel %vm245, %v393, 0
  %v428 = vsel %vm264, %v405, 0
  %v431 = vsel %vm264, %v406, 0
  %433 = vmatprep.subr.bf16.mxu0 %v404
  %434 = vmatpush1.bf16.msra.mxu0 %v403
  %435 = vmatprep.subr.bf16.mxu0 %v431
  %436 = vmatpush1.bf16.msra.mxu0 %v428
  %437 = vmatprep.subr.bf16.mxu0 0
  %438 = vmatpush1.bf16.msra.mxu0 0
  %439 = vmatprep.subr.bf16.mxu0 0
  %440 = vmatpush1.bf16.msra.mxu0 0
  %441 = vmatprep.subr.bf16.mxu0 0
  %442 = vmatpush1.bf16.msra.mxu0 0
  %443 = vmatprep.subr.bf16.mxu0 0
  %444 = vmatpush1.bf16.msra.mxu0 0
  %445 = vmatprep.subr.bf16.mxu0 0
  %446 = vmatpush1.bf16.msra.mxu0 0
  %447 = vmatprep.subr.bf16.mxu0 0
  %448 = vmatpush1.bf16.msra.mxu0 0
  %449 = vmatprep.subr.bf16.mxu0 0
  %450 = vmatpush1.bf16.msra.mxu0 0
  %451 = vmatprep.subr.bf16.mxu0 0
  %452 = vmatpush1.bf16.msra.mxu0 0
  %453 = vmatprep.subr.bf16.mxu0 0
  %454 = vmatpush1.bf16.msra.mxu0 0
  %455 = vmatprep.subr.bf16.mxu0 0
  %456 = vmatpush1.bf16.msra.mxu0 0
  %457 = vmatprep.subr.bf16.mxu0 0
  %458 = vmatpush1.bf16.msra.mxu0 0
  %459 = vmatprep.subr.bf16.mxu0 0
  %460 = vmatpush1.bf16.msra.mxu0 0
  %461 = vmatprep.subr.bf16.mxu0 0
  %462 = vmatpush1.bf16.msra.mxu0 0
  %463 = vmatprep.subr.bf16.mxu0 0
  %464 = vmatpush1.bf16.msra.mxu0 0
  %465 = vmatprep.mubr.bf16.mxu0 0
  %466 = vmatmul.mubr.bf16.gmra.mrb[0].mxu0 %v410
  %v467 = vpop.f32.mrb[0].mxu0
  %v468 = vadd.f32 %v306, %v467
  %v469 = vpop.f32.mrb[0].mxu0
  %v470 = vadd.f32 %v308, %v469
  %v471 = vpop.f32.mrb[0].mxu0
  %v472 = vadd.f32 %v310, %v471
  %v473 = vpop.f32.mrb[0].mxu0
  %v474 = vadd.f32 %v312, %v473
  %475 = vmatprep.mubr.bf16.mxu0 0
  %476 = vmatmul.mubr.bf16.gmra.mrb[0].mxu0 %v413
  %v477 = vpop.f32.mrb[0].mxu0
  %v478 = vadd.f32 %v316, %v477
  %v479 = vpop.f32.mrb[0].mxu0
  %v480 = vadd.f32 %v318, %v479
  %v481 = vpop.f32.mrb[0].mxu0
  %v482 = vadd.f32 %v320, %v481
  %v483 = vpop.f32.mrb[0].mxu0
  %v484 = vadd.f32 %v322, %v483
  %485 = vmatprep.mubr.bf16.mxu0 0
  %486 = vmatmul.mubr.bf16.gmra.mrb[0].mxu0 %v416
  %v487 = vpop.f32.mrb[0].mxu0
  %v488 = vadd.f32 %v326, %v487
  %v489 = vpop.f32.mrb[0].mxu0
  %v490 = vadd.f32 %v328, %v489
  %v491 = vpop.f32.mrb[0].mxu0
  %v492 = vadd.f32 %v330, %v491
  %v493 = vpop.f32.mrb[0].mxu0
  %v494 = vadd.f32 %v332, %v493
  %495 = vmatprep.mubr.bf16.mxu0 0
  %496 = vmatmul.mubr.bf16.gmra.mrb[0].mxu0 %v419
  %v497 = vpop.f32.mrb[0].mxu0
  %v498 = vadd.f32 %v336, %v497
  %v499 = vpop.f32.mrb[0].mxu0
  %v500 = vadd.f32 %v338, %v499
  %v501 = vpop.f32.mrb[0].mxu0
  %v502 = vadd.f32 %v340, %v501
  %v503 = vpop.f32.mrb[0].mxu0
  %v504 = vadd.f32 %v342, %v503
  %505 = vmatprep.mubr.bf16.mxu0 0
  %506 = vmatmul.mubr.bf16.gmra.mrb[0].mxu0 %v422
  %v507 = vpop.f32.mrb[0].mxu0
  %v508 = vadd.f32 %v346, %v507
  %v509 = vpop.f32.mrb[0].mxu0
  %v510 = vadd.f32 %v348, %v509
  %v511 = vpop.f32.mrb[0].mxu0
  %v512 = vadd.f32 %v350, %v511
  %v513 = vpop.f32.mrb[0].mxu0
  %v514 = vadd.f32 %v352, %v513
  %515 = vmatprep.mubr.bf16.mxu0 0
  %516 = vmatmul.mubr.bf16.gmra.mrb[0].mxu0 %v425
  %v517 = vpop.f32.mrb[0].mxu0
  %v518 = vadd.f32 %v356, %v517
  %v519 = vpop.f32.mrb[0].mxu0
  %v520 = vadd.f32 %v358, %v519
  %v521 = vpop.f32.mrb[0].mxu0
  %v522 = vadd.f32 %v360, %v521
  %v523 = vpop.f32.mrb[0].mxu0
  %v524 = vadd.f32 %v362, %v523
  %525 = vdwg.mxu0
  %v538 = vunpack.c.l.b16 %v67
  %v539 = vunpack.c.l.b16 %v68
  %v540 = vunpack.c.l.b16 %v69
  %v541 = vunpack.c.l.b16 %v70
  %v542 = vunpack.c.l.b16 %v71
  %v543 = vunpack.c.l.b16 %v72
  %v544 = vunpack.c.l.b16 %v73
  %v545 = vunpack.c.l.b16 %v74
  %v546 = vunpack.c.l.b16 %v75
  %v547 = vunpack.c.l.b16 %v76
  %v548 = vunpack.c.l.b16 %v77
  %v549 = vunpack.c.l.b16 %v78
  %v550 = vpack.c.b16 %v539, %v538
  %v551 = vpack.c.b16 %v541, %v540
  %v552 = vpack.c.b16 %v543, %v542
  %v553 = vpack.c.b16 %v545, %v544
  %v554 = vpack.c.b16 %v547, %v546
  %v555 = vpack.c.b16 %v549, %v548
  %v560 = vunpack.c.l.b16 %v102
  %v561 = vunpack.c.h.b16 %v102
  %v562 = vunpack.c.l.b16 %v103
  %v563 = vunpack.c.h.b16 %v103
  %v564 = vunpack.c.l.b16 %v104
  %v565 = vunpack.c.h.b16 %v104
  %v566 = vunpack.c.l.b16 %v105
  %v567 = vunpack.c.h.b16 %v105
  %v568 = vpack.c.b16 %v562, %v560
  %v569 = vpack.c.b16 %v563, %v561
  %v570 = vpack.c.b16 %v566, %v564
  %v571 = vpack.c.b16 %v567, %v565
  %v575 = vsel %vm245, %v550, 0
  %v578 = vsel %vm245, %v551, 0
  %v581 = vsel %vm245, %v552, 0
  %v584 = vsel %vm245, %v553, 0
  %v587 = vsel %vm245, %v554, 0
  %v590 = vsel %vm245, %v555, 0
  %v593 = vsel %vm264, %v570, 0
  %v596 = vsel %vm264, %v571, 0
  %598 = vmatprep.subr.bf16.mxu0 %v569
  %599 = vmatpush1.bf16.msra.mxu0 %v568
  %600 = vmatprep.subr.bf16.mxu0 %v596
  %601 = vmatpush1.bf16.msra.mxu0 %v593
  %602 = vmatprep.subr.bf16.mxu0 0
  %603 = vmatpush1.bf16.msra.mxu0 0
  %604 = vmatprep.subr.bf16.mxu0 0
  %605 = vmatpush1.bf16.msra.mxu0 0
  %606 = vmatprep.subr.bf16.mxu0 0
  %607 = vmatpush1.bf16.msra.mxu0 0
  %608 = vmatprep.subr.bf16.mxu0 0
  %609 = vmatpush1.bf16.msra.mxu0 0
  %610 = vmatprep.subr.bf16.mxu0 0
  %611 = vmatpush1.bf16.msra.mxu0 0
  %612 = vmatprep.subr.bf16.mxu0 0
  %613 = vmatpush1.bf16.msra.mxu0 0
  %614 = vmatprep.subr.bf16.mxu0 0
  %615 = vmatpush1.bf16.msra.mxu0 0
  %616 = vmatprep.subr.bf16.mxu0 0
  %617 = vmatpush1.bf16.msra.mxu0 0
  %618 = vmatprep.subr.bf16.mxu0 0
  %619 = vmatpush1.bf16.msra.mxu0 0
  %620 = vmatprep.subr.bf16.mxu0 0
  %621 = vmatpush1.bf16.msra.mxu0 0
  %622 = vmatprep.subr.bf16.mxu0 0
  %623 = vmatpush1.bf16.msra.mxu0 0
  %624 = vmatprep.subr.bf16.mxu0 0
  %625 = vmatpush1.bf16.msra.mxu0 0
  %626 = vmatprep.subr.bf16.mxu0 0
  %627 = vmatpush1.bf16.msra.mxu0 0
  %628 = vmatprep.subr.bf16.mxu0 0
  %629 = vmatpush1.bf16.msra.mxu0 0
  %630 = vmatprep.mubr.bf16.mxu0 0
  %631 = vmatmul.mubr.bf16.gmra.mrb[0].mxu0 %v575
  %v632 = vpop.f32.mrb[0].mxu0
  %v633 = vadd.f32 0.0, %v632
  %v634 = vpop.f32.mrb[0].mxu0
  %v635 = vadd.f32 0.0, %v634
  %v636 = vpop.f32.mrb[0].mxu0
  %v637 = vadd.f32 0.0, %v636
  %v638 = vpop.f32.mrb[0].mxu0
  %v639 = vadd.f32 0.0, %v638
  %640 = vmatprep.mubr.bf16.mxu0 0
  %641 = vmatmul.mubr.bf16.gmra.mrb[0].mxu0 %v578
  %v642 = vpop.f32.mrb[0].mxu0
  %v643 = vadd.f32 0.0, %v642
  %v644 = vpop.f32.mrb[0].mxu0
  %v645 = vadd.f32 0.0, %v644
  %v646 = vpop.f32.mrb[0].mxu0
  %v647 = vadd.f32 0.0, %v646
  %v648 = vpop.f32.mrb[0].mxu0
  %v649 = vadd.f32 0.0, %v648
  %650 = vmatprep.mubr.bf16.mxu0 0
  %651 = vmatmul.mubr.bf16.gmra.mrb[0].mxu0 %v581
  %v652 = vpop.f32.mrb[0].mxu0
  %v653 = vadd.f32 0.0, %v652
  %v654 = vpop.f32.mrb[0].mxu0
  %v655 = vadd.f32 0.0, %v654
  %v656 = vpop.f32.mrb[0].mxu0
  %v657 = vadd.f32 0.0, %v656
  %v658 = vpop.f32.mrb[0].mxu0
  %v659 = vadd.f32 0.0, %v658
  %660 = vmatprep.mubr.bf16.mxu0 0
  %661 = vmatmul.mubr.bf16.gmra.mrb[0].mxu0 %v584
  %v662 = vpop.f32.mrb[0].mxu0
  %v663 = vadd.f32 0.0, %v662
  %v664 = vpop.f32.mrb[0].mxu0
  %v665 = vadd.f32 0.0, %v664
  %v666 = vpop.f32.mrb[0].mxu0
  %v667 = vadd.f32 0.0, %v666
  %v668 = vpop.f32.mrb[0].mxu0
  %v669 = vadd.f32 0.0, %v668
  %670 = vmatprep.mubr.bf16.mxu0 0
  %671 = vmatmul.mubr.bf16.gmra.mrb[0].mxu0 %v587
  %v672 = vpop.f32.mrb[0].mxu0
  %v673 = vadd.f32 0.0, %v672
  %v674 = vpop.f32.mrb[0].mxu0
  %v675 = vadd.f32 0.0, %v674
  %v676 = vpop.f32.mrb[0].mxu0
  %v677 = vadd.f32 0.0, %v676
  %v678 = vpop.f32.mrb[0].mxu0
  %v679 = vadd.f32 0.0, %v678
  %680 = vmatprep.mubr.bf16.mxu0 0
  %681 = vmatmul.mubr.bf16.gmra.mrb[0].mxu0 %v590
  %v682 = vpop.f32.mrb[0].mxu0
  %v683 = vadd.f32 0.0, %v682
  %v684 = vpop.f32.mrb[0].mxu0
  %v685 = vadd.f32 0.0, %v684
  %v686 = vpop.f32.mrb[0].mxu0
  %v687 = vadd.f32 0.0, %v686
  %v688 = vpop.f32.mrb[0].mxu0
  %v689 = vadd.f32 0.0, %v688
  %690 = vdwg.mxu0
  %v691 = vadd.f32 %v468, %v633
  %v692 = vadd.f32 %v470, %v635
  %v693 = vadd.f32 %v472, %v637
  %v694 = vadd.f32 %v474, %v639
  %v695 = vadd.f32 %v478, %v643
  %v696 = vadd.f32 %v480, %v645
  %v697 = vadd.f32 %v482, %v647
  %v698 = vadd.f32 %v484, %v649
  %v699 = vadd.f32 %v488, %v653
  %v700 = vadd.f32 %v490, %v655
  %v701 = vadd.f32 %v492, %v657
  %v702 = vadd.f32 %v494, %v659
  %v703 = vadd.f32 %v498, %v663
  %v704 = vadd.f32 %v500, %v665
  %v705 = vadd.f32 %v502, %v667
  %v706 = vadd.f32 %v504, %v669
  %v707 = vadd.f32 %v508, %v673
  %v708 = vadd.f32 %v510, %v675
  %v709 = vadd.f32 %v512, %v677
  %v710 = vadd.f32 %v514, %v679
  %v711 = vadd.f32 %v518, %v683
  %v712 = vadd.f32 %v520, %v685
  %v713 = vadd.f32 %v522, %v687
  %v714 = vadd.f32 %v524, %v689
  %v727 = vunpack.c.l.b16 %v81
  %v728 = vunpack.c.l.b16 %v82
  %v729 = vunpack.c.l.b16 %v83
  %v730 = vunpack.c.l.b16 %v84
  %v731 = vunpack.c.l.b16 %v85
  %v732 = vunpack.c.l.b16 %v86
  %v733 = vunpack.c.l.b16 %v87
  %v734 = vunpack.c.l.b16 %v88
  %v735 = vunpack.c.l.b16 %v89
  %v736 = vunpack.c.l.b16 %v90
  %v737 = vunpack.c.l.b16 %v91
  %v738 = vunpack.c.l.b16 %v92
  %v739 = vpack.c.b16 %v728, %v727
  %v740 = vpack.c.b16 %v730, %v729
  %v741 = vpack.c.b16 %v732, %v731
  %v742 = vpack.c.b16 %v734, %v733
  %v743 = vpack.c.b16 %v736, %v735
  %v744 = vpack.c.b16 %v738, %v737
  %v748 = vunpack.c.l.b16 %v106
  %v749 = vunpack.c.h.b16 %v106
  %v750 = vunpack.c.l.b16 %v107
  %v751 = vunpack.c.h.b16 %v107
  %v752 = vunpack.c.l.b16 %v108
  %v753 = vunpack.c.h.b16 %v108
  %v754 = vpack.c.b16 %v748, %v566
  %v755 = vpack.c.b16 %v749, %v567
  %v756 = vpack.c.b16 %v752, %v750
  %v757 = vpack.c.b16 %v753, %v751
  %v758 = vrot.slane %v754, 2
  %v759 = vrot.slane %v756, 2
  %v760 = vsel %vm236, %v758, %v759
  %v761 = vrot.slane %v755, 2
  %v762 = vrot.slane %v757, 2
  %v763 = vsel %vm236, %v761, %v762
  %v767 = vsel %vm245, %v739, 0
  %v770 = vsel %vm245, %v740, 0
  %v773 = vsel %vm245, %v741, 0
  %v776 = vsel %vm245, %v742, 0
  %v779 = vsel %vm245, %v743, 0
  %v782 = vsel %vm245, %v744, 0
  %v785 = vsel %vm264, %v759, 0
  %v788 = vsel %vm264, %v762, 0
  %790 = vmatprep.subr.bf16.mxu0 %v763
  %791 = vmatpush1.bf16.msra.mxu0 %v760
  %792 = vmatprep.subr.bf16.mxu0 %v788
  %793 = vmatpush1.bf16.msra.mxu0 %v785
  %794 = vmatprep.subr.bf16.mxu0 0
  %795 = vmatpush1.bf16.msra.mxu0 0
  %796 = vmatprep.subr.bf16.mxu0 0
  %797 = vmatpush1.bf16.msra.mxu0 0
  %798 = vmatprep.subr.bf16.mxu0 0
  %799 = vmatpush1.bf16.msra.mxu0 0
  %800 = vmatprep.subr.bf16.mxu0 0
  %801 = vmatpush1.bf16.msra.mxu0 0
  %802 = vmatprep.subr.bf16.mxu0 0
  %803 = vmatpush1.bf16.msra.mxu0 0
  %804 = vmatprep.subr.bf16.mxu0 0
  %805 = vmatpush1.bf16.msra.mxu0 0
  %806 = vmatprep.subr.bf16.mxu0 0
  %807 = vmatpush1.bf16.msra.mxu0 0
  %808 = vmatprep.subr.bf16.mxu0 0
  %809 = vmatpush1.bf16.msra.mxu0 0
  %810 = vmatprep.subr.bf16.mxu0 0
  %811 = vmatpush1.bf16.msra.mxu0 0
  %812 = vmatprep.subr.bf16.mxu0 0
  %813 = vmatpush1.bf16.msra.mxu0 0
  %814 = vmatprep.subr.bf16.mxu0 0
  %815 = vmatpush1.bf16.msra.mxu0 0
  %816 = vmatprep.subr.bf16.mxu0 0
  %817 = vmatpush1.bf16.msra.mxu0 0
  %818 = vmatprep.subr.bf16.mxu0 0
  %819 = vmatpush1.bf16.msra.mxu0 0
  %820 = vmatprep.subr.bf16.mxu0 0
  %821 = vmatpush1.bf16.msra.mxu0 0
  %822 = vmatprep.mubr.bf16.mxu0 0
  %823 = vmatmul.mubr.bf16.gmra.mrb[0].mxu0 %v767
  %v824 = vpop.f32.mrb[0].mxu0
  %v825 = vadd.f32 0.0, %v824
  %v826 = vpop.f32.mrb[0].mxu0
  %v827 = vadd.f32 0.0, %v826
  %v828 = vpop.f32.mrb[0].mxu0
  %v829 = vadd.f32 0.0, %v828
  %v830 = vpop.f32.mrb[0].mxu0
  %v831 = vadd.f32 0.0, %v830
  %832 = vmatprep.mubr.bf16.mxu0 0
  %833 = vmatmul.mubr.bf16.gmra.mrb[0].mxu0 %v770
  %v834 = vpop.f32.mrb[0].mxu0
  %v835 = vadd.f32 0.0, %v834
  %v836 = vpop.f32.mrb[0].mxu0
  %v837 = vadd.f32 0.0, %v836
  %v838 = vpop.f32.mrb[0].mxu0
  %v839 = vadd.f32 0.0, %v838
  %v840 = vpop.f32.mrb[0].mxu0
  %v841 = vadd.f32 0.0, %v840
  %842 = vmatprep.mubr.bf16.mxu0 0
  %843 = vmatmul.mubr.bf16.gmra.mrb[0].mxu0 %v773
  %v844 = vpop.f32.mrb[0].mxu0
  %v845 = vadd.f32 0.0, %v844
  %v846 = vpop.f32.mrb[0].mxu0
  %v847 = vadd.f32 0.0, %v846
  %v848 = vpop.f32.mrb[0].mxu0
  %v849 = vadd.f32 0.0, %v848
  %v850 = vpop.f32.mrb[0].mxu0
  %v851 = vadd.f32 0.0, %v850
  %852 = vmatprep.mubr.bf16.mxu0 0
  %853 = vmatmul.mubr.bf16.gmra.mrb[0].mxu0 %v776
  %v854 = vpop.f32.mrb[0].mxu0
  %v855 = vadd.f32 0.0, %v854
  %v856 = vpop.f32.mrb[0].mxu0
  %v857 = vadd.f32 0.0, %v856
  %v858 = vpop.f32.mrb[0].mxu0
  %v859 = vadd.f32 0.0, %v858
  %v860 = vpop.f32.mrb[0].mxu0
  %v861 = vadd.f32 0.0, %v860
  %862 = vmatprep.mubr.bf16.mxu0 0
  %863 = vmatmul.mubr.bf16.gmra.mrb[0].mxu0 %v779
  %v864 = vpop.f32.mrb[0].mxu0
  %v865 = vadd.f32 0.0, %v864
  %v866 = vpop.f32.mrb[0].mxu0
  %v867 = vadd.f32 0.0, %v866
  %v868 = vpop.f32.mrb[0].mxu0
  %v869 = vadd.f32 0.0, %v868
  %v870 = vpop.f32.mrb[0].mxu0
  %v871 = vadd.f32 0.0, %v870
  %872 = vmatprep.mubr.bf16.mxu0 0
  %873 = vmatmul.mubr.bf16.gmra.mrb[0].mxu0 %v782
  %v874 = vpop.f32.mrb[0].mxu0
  %v875 = vadd.f32 0.0, %v874
  %v876 = vpop.f32.mrb[0].mxu0
  %v877 = vadd.f32 0.0, %v876
  %v878 = vpop.f32.mrb[0].mxu0
  %v879 = vadd.f32 0.0, %v878
  %v880 = vpop.f32.mrb[0].mxu0
  %v881 = vadd.f32 0.0, %v880
  %882 = vdwg.mxu0
  %v883 = vadd.f32 %v691, %v825
  %v884 = vadd.f32 %v692, %v827
  %v885 = vadd.f32 %v693, %v829
  %v886 = vadd.f32 %v694, %v831
  %v887 = vadd.f32 %v695, %v835
  %v888 = vadd.f32 %v696, %v837
  %v889 = vadd.f32 %v697, %v839
  %v890 = vadd.f32 %v698, %v841
  %v891 = vadd.f32 %v699, %v845
  %v892 = vadd.f32 %v700, %v847
  %v893 = vadd.f32 %v701, %v849
  %v894 = vadd.f32 %v702, %v851
  %v895 = vadd.f32 %v703, %v855
  %v896 = vadd.f32 %v704, %v857
  %v897 = vadd.f32 %v705, %v859
  %v898 = vadd.f32 %v706, %v861
  %v899 = vadd.f32 %v707, %v865
  %v900 = vadd.f32 %v708, %v867
  %v901 = vadd.f32 %v709, %v869
  %v902 = vadd.f32 %v710, %v871
  %v903 = vadd.f32 %v711, %v875
  %v904 = vadd.f32 %v712, %v877
  %v905 = vadd.f32 %v713, %v879
  %v906 = vadd.f32 %v714, %v881
  %v909 = vunpack.c.l.b16 %v51
  %v910 = vunpack.c.l.b16 %v52
  %v911 = vpack.c.b16 %v910, %v909
  %v916 = vunpack.c.l.b16 %v109
  %v917 = vunpack.c.h.b16 %v109
  %v918 = vunpack.c.l.b16 %v110
  %v919 = vunpack.c.h.b16 %v110
  %v920 = vunpack.c.l.b16 %v111
  %v921 = vunpack.c.h.b16 %v111
  %v922 = vunpack.c.l.b16 %v112
  %v923 = vunpack.c.h.b16 %v112
  %v924 = vpack.c.b16 %v918, %v916
  %v925 = vpack.c.b16 %v919, %v917
  %v926 = vpack.c.b16 %v922, %v920
  %v927 = vpack.c.b16 %v923, %v921
  %v931 = vsel %vm245, %v911, 0
  %v934 = vsel %vm264, %v926, 0
  %v937 = vsel %vm264, %v927, 0
  %939 = vmatprep.subr.bf16.mxu0 %v925
  %940 = vmatpush1.bf16.msra.mxu0 %v924
  %941 = vmatprep.subr.bf16.mxu0 %v937
  %942 = vmatpush1.bf16.msra.mxu0 %v934
  %943 = vmatprep.subr.bf16.mxu0 0
  %944 = vmatpush1.bf16.msra.mxu0 0
  %945 = vmatprep.subr.bf16.mxu0 0
  %946 = vmatpush1.bf16.msra.mxu0 0
  %947 = vmatprep.subr.bf16.mxu0 0
  %948 = vmatpush1.bf16.msra.mxu0 0
  %949 = vmatprep.subr.bf16.mxu0 0
  %950 = vmatpush1.bf16.msra.mxu0 0
  %951 = vmatprep.subr.bf16.mxu0 0
  %952 = vmatpush1.bf16.msra.mxu0 0
  %953 = vmatprep.subr.bf16.mxu0 0
  %954 = vmatpush1.bf16.msra.mxu0 0
  %955 = vmatprep.subr.bf16.mxu0 0
  %956 = vmatpush1.bf16.msra.mxu0 0
  %957 = vmatprep.subr.bf16.mxu0 0
  %958 = vmatpush1.bf16.msra.mxu0 0
  %959 = vmatprep.subr.bf16.mxu0 0
  %960 = vmatpush1.bf16.msra.mxu0 0
  %961 = vmatprep.subr.bf16.mxu0 0
  %962 = vmatpush1.bf16.msra.mxu0 0
  %963 = vmatprep.subr.bf16.mxu0 0
  %964 = vmatpush1.bf16.msra.mxu0 0
  %965 = vmatprep.subr.bf16.mxu0 0
  %966 = vmatpush1.bf16.msra.mxu0 0
  %967 = vmatprep.subr.bf16.mxu0 0
  %968 = vmatpush1.bf16.msra.mxu0 0
  %969 = vmatprep.subr.bf16.mxu0 0
  %970 = vmatpush1.bf16.msra.mxu0 0
  %971 = vmatprep.mubr.bf16.mxu0 0
  %972 = vmatmul.mubr.bf16.gmra.mrb[0].mxu0 %v413
  %v973 = vpop.f32.mrb[0].mxu0
  %v974 = vadd.f32 0.0, %v973
  %v975 = vpop.f32.mrb[0].mxu0
  %v976 = vadd.f32 0.0, %v975
  %v977 = vpop.f32.mrb[0].mxu0
  %v978 = vadd.f32 0.0, %v977
  %v979 = vpop.f32.mrb[0].mxu0
  %v980 = vadd.f32 0.0, %v979
  %981 = vmatprep.mubr.bf16.mxu0 0
  %982 = vmatmul.mubr.bf16.gmra.mrb[0].mxu0 %v416
  %v983 = vpop.f32.mrb[0].mxu0
  %v984 = vadd.f32 0.0, %v983
  %v985 = vpop.f32.mrb[0].mxu0
  %v986 = vadd.f32 0.0, %v985
  %v987 = vpop.f32.mrb[0].mxu0
  %v988 = vadd.f32 0.0, %v987
  %v989 = vpop.f32.mrb[0].mxu0
  %v990 = vadd.f32 0.0, %v989
  %991 = vmatprep.mubr.bf16.mxu0 0
  %992 = vmatmul.mubr.bf16.gmra.mrb[0].mxu0 %v419
  %v993 = vpop.f32.mrb[0].mxu0
  %v994 = vadd.f32 0.0, %v993
  %v995 = vpop.f32.mrb[0].mxu0
  %v996 = vadd.f32 0.0, %v995
  %v997 = vpop.f32.mrb[0].mxu0
  %v998 = vadd.f32 0.0, %v997
  %v999 = vpop.f32.mrb[0].mxu0
  %v1000 = vadd.f32 0.0, %v999
  %1001 = vmatprep.mubr.bf16.mxu0 0
  %1002 = vmatmul.mubr.bf16.gmra.mrb[0].mxu0 %v422
  %v1003 = vpop.f32.mrb[0].mxu0
  %v1004 = vadd.f32 0.0, %v1003
  %v1005 = vpop.f32.mrb[0].mxu0
  %v1006 = vadd.f32 0.0, %v1005
  %v1007 = vpop.f32.mrb[0].mxu0
  %v1008 = vadd.f32 0.0, %v1007
  %v1009 = vpop.f32.mrb[0].mxu0
  %v1010 = vadd.f32 0.0, %v1009
  %1011 = vmatprep.mubr.bf16.mxu0 0
  %1012 = vmatmul.mubr.bf16.gmra.mrb[0].mxu0 %v425
  %v1013 = vpop.f32.mrb[0].mxu0
  %v1014 = vadd.f32 0.0, %v1013
  %v1015 = vpop.f32.mrb[0].mxu0
  %v1016 = vadd.f32 0.0, %v1015
  %v1017 = vpop.f32.mrb[0].mxu0
  %v1018 = vadd.f32 0.0, %v1017
  %v1019 = vpop.f32.mrb[0].mxu0
  %v1020 = vadd.f32 0.0, %v1019
  %1021 = vmatprep.mubr.bf16.mxu0 0
  %1022 = vmatmul.mubr.bf16.gmra.mrb[0].mxu0 %v931
  %v1023 = vpop.f32.mrb[0].mxu0
  %v1024 = vadd.f32 0.0, %v1023
  %v1025 = vpop.f32.mrb[0].mxu0
  %v1026 = vadd.f32 0.0, %v1025
  %v1027 = vpop.f32.mrb[0].mxu0
  %v1028 = vadd.f32 0.0, %v1027
  %v1029 = vpop.f32.mrb[0].mxu0
  %v1030 = vadd.f32 0.0, %v1029
  %1031 = vdwg.mxu0
  %v1032 = vadd.f32 %v883, %v974
  %v1033 = vadd.f32 %v884, %v976
  %v1034 = vadd.f32 %v885, %v978
  %v1035 = vadd.f32 %v886, %v980
  %v1036 = vadd.f32 %v887, %v984
  %v1037 = vadd.f32 %v888, %v986
  %v1038 = vadd.f32 %v889, %v988
  %v1039 = vadd.f32 %v890, %v990
  %v1040 = vadd.f32 %v891, %v994
  %v1041 = vadd.f32 %v892, %v996
  %v1042 = vadd.f32 %v893, %v998
  %v1043 = vadd.f32 %v894, %v1000
  %v1044 = vadd.f32 %v895, %v1004
  %v1045 = vadd.f32 %v896, %v1006
  %v1046 = vadd.f32 %v897, %v1008
  %v1047 = vadd.f32 %v898, %v1010
  %v1048 = vadd.f32 %v899, %v1014
  %v1049 = vadd.f32 %v900, %v1016
  %v1050 = vadd.f32 %v901, %v1018
  %v1051 = vadd.f32 %v902, %v1020
  %v1052 = vadd.f32 %v903, %v1024
  %v1053 = vadd.f32 %v904, %v1026
  %v1054 = vadd.f32 %v905, %v1028
  %v1055 = vadd.f32 %v906, %v1030
  %1080 = vrot.lane.b32.xlu0 %v1032, 56
  %v1081 = vpop.permute.xlu0 %1080
  %1082 = vrot.lane.b32.xlu0 %v1033, 56
  %v1083 = vpop.permute.xlu0 %1082
  %1084 = vrot.lane.b32.xlu0 %v1034, 56
  %v1085 = vpop.permute.xlu0 %1084
  %1086 = vrot.lane.b32.xlu0 %v1035, 56
  %v1087 = vpop.permute.xlu0 %1086
  %1088 = vrot.lane.b32.xlu0 %v1036, 56
  %v1089 = vpop.permute.xlu0 %1088
  %1090 = vrot.lane.b32.xlu0 %v1037, 56
  %v1091 = vpop.permute.xlu0 %1090
  %1092 = vrot.lane.b32.xlu0 %v1038, 56
  %v1093 = vpop.permute.xlu0 %1092
  %1094 = vrot.lane.b32.xlu0 %v1039, 56
  %v1095 = vpop.permute.xlu0 %1094
  %1096 = vrot.lane.b32.xlu0 %v1040, 56
  %v1097 = vpop.permute.xlu0 %1096
  %1098 = vrot.lane.b32.xlu0 %v1041, 56
  %v1099 = vpop.permute.xlu0 %1098
  %1100 = vrot.lane.b32.xlu0 %v1042, 56
  %v1101 = vpop.permute.xlu0 %1100
  %1102 = vrot.lane.b32.xlu0 %v1043, 56
  %v1103 = vpop.permute.xlu0 %1102
  %1104 = vrot.lane.b32.xlu0 %v1044, 56
  %v1105 = vpop.permute.xlu0 %1104
  %1106 = vrot.lane.b32.xlu0 %v1045, 56
  %v1107 = vpop.permute.xlu0 %1106
  %1108 = vrot.lane.b32.xlu0 %v1046, 56
  %v1109 = vpop.permute.xlu0 %1108
  %1110 = vrot.lane.b32.xlu0 %v1047, 56
  %v1111 = vpop.permute.xlu0 %1110
  %1112 = vrot.lane.b32.xlu0 %v1048, 56
  %v1113 = vpop.permute.xlu0 %1112
  %1114 = vrot.lane.b32.xlu0 %v1049, 56
  %v1115 = vpop.permute.xlu0 %1114
  %1116 = vrot.lane.b32.xlu0 %v1050, 56
  %v1117 = vpop.permute.xlu0 %1116
  %1118 = vrot.lane.b32.xlu0 %v1051, 56
  %v1119 = vpop.permute.xlu0 %1118
  %1120 = vrot.lane.b32.xlu0 %v1052, 56
  %v1121 = vpop.permute.xlu0 %1120
  %1122 = vrot.lane.b32.xlu0 %v1053, 56
  %v1123 = vpop.permute.xlu0 %1122
  %1124 = vrot.lane.b32.xlu0 %v1054, 56
  %v1125 = vpop.permute.xlu0 %1124
  %1126 = vrot.lane.b32.xlu0 %v1055, 56
  %v1127 = vpop.permute.xlu0 %1126
  %vm1128 = vcmask 457728
  %v1129 = vsel %vm1128, %v1081, %v1083
  %v1130 = vsel %vm1128, %v1085, %v1087
  %v1131 = vsel %vm1128, %v1089, %v1091
  %v1132 = vsel %vm1128, %v1093, %v1095
  %v1133 = vsel %vm1128, %v1097, %v1099
  %v1134 = vsel %vm1128, %v1101, %v1103
  %v1135 = vsel %vm1128, %v1105, %v1107
  %v1136 = vsel %vm1128, %v1109, %v1111
  %v1137 = vsel %vm1128, %v1113, %v1115
  %v1138 = vsel %vm1128, %v1117, %v1119
  %v1139 = vsel %vm1128, %v1121, %v1123
  %v1140 = vsel %vm1128, %v1125, %v1127
  %v1153 = vmax.f32 %v1032, %v1129
  %v1154 = vmax.f32 %v1034, %v1130
  %v1155 = vmax.f32 %v1036, %v1131
  %v1156 = vmax.f32 %v1038, %v1132
  %v1157 = vmax.f32 %v1040, %v1133
  %v1158 = vmax.f32 %v1042, %v1134
  %v1159 = vmax.f32 %v1044, %v1135
  %v1160 = vmax.f32 %v1046, %v1136
  %v1161 = vmax.f32 %v1048, %v1137
  %v1162 = vmax.f32 %v1050, %v1138
  %v1163 = vmax.f32 %v1052, %v1139
  %v1164 = vmax.f32 %v1054, %v1140
  %1165 = vmatprep.subr.bf16.mxu0 %v242
  %1166 = vmatpush1.bf16.msra.mxu0 %v239
  %1167 = vmatprep.subr.bf16.mxu0 %v269
  %1168 = vmatpush1.bf16.msra.mxu0 %v266
  %1169 = vmatprep.subr.bf16.mxu0 0
  %1170 = vmatpush1.bf16.msra.mxu0 0
  %1171 = vmatprep.subr.bf16.mxu0 0
  %1172 = vmatpush1.bf16.msra.mxu0 0
  %1173 = vmatprep.subr.bf16.mxu0 0
  %1174 = vmatpush1.bf16.msra.mxu0 0
  %1175 = vmatprep.subr.bf16.mxu0 0
  %1176 = vmatpush1.bf16.msra.mxu0 0
  %1177 = vmatprep.subr.bf16.mxu0 0
  %1178 = vmatpush1.bf16.msra.mxu0 0
  %1179 = vmatprep.subr.bf16.mxu0 0
  %1180 = vmatpush1.bf16.msra.mxu0 0
  %1181 = vmatprep.subr.bf16.mxu0 0
  %1182 = vmatpush1.bf16.msra.mxu0 0
  %1183 = vmatprep.subr.bf16.mxu0 0
  %1184 = vmatpush1.bf16.msra.mxu0 0
  %1185 = vmatprep.subr.bf16.mxu0 0
  %1186 = vmatpush1.bf16.msra.mxu0 0
  %1187 = vmatprep.subr.bf16.mxu0 0
  %1188 = vmatpush1.bf16.msra.mxu0 0
  %1189 = vmatprep.subr.bf16.mxu0 0
  %1190 = vmatpush1.bf16.msra.mxu0 0
  %1191 = vmatprep.subr.bf16.mxu0 0
  %1192 = vmatpush1.bf16.msra.mxu0 0
  %1193 = vmatprep.subr.bf16.mxu0 0
  %1194 = vmatpush1.bf16.msra.mxu0 0
  %1195 = vmatprep.subr.bf16.mxu0 0
  %1196 = vmatpush1.bf16.msra.mxu0 0
  %1197 = vmatprep.mubr.bf16.mxu0 0
  %1198 = vmatmul.mubr.bf16.gmra.mrb[0].mxu0 %v575
  %v1199 = vpop.f32.mrb[0].mxu0
  %v1200 = vadd.f32 0.0, %v1199
  %v1201 = vpop.f32.mrb[0].mxu0
  %v1202 = vadd.f32 0.0, %v1201
  %v1203 = vpop.f32.mrb[0].mxu0
  %v1204 = vadd.f32 0.0, %v1203
  %v1205 = vpop.f32.mrb[0].mxu0
  %v1206 = vadd.f32 0.0, %v1205
  %1207 = vmatprep.mubr.bf16.mxu0 0
  %1208 = vmatmul.mubr.bf16.gmra.mrb[0].mxu0 %v578
  %v1209 = vpop.f32.mrb[0].mxu0
  %v1210 = vadd.f32 0.0, %v1209
  %v1211 = vpop.f32.mrb[0].mxu0
  %v1212 = vadd.f32 0.0, %v1211
  %v1213 = vpop.f32.mrb[0].mxu0
  %v1214 = vadd.f32 0.0, %v1213
  %v1215 = vpop.f32.mrb[0].mxu0
  %v1216 = vadd.f32 0.0, %v1215
  %1217 = vmatprep.mubr.bf16.mxu0 0
  %1218 = vmatmul.mubr.bf16.gmra.mrb[0].mxu0 %v581
  %v1219 = vpop.f32.mrb[0].mxu0
  %v1220 = vadd.f32 0.0, %v1219
  %v1221 = vpop.f32.mrb[0].mxu0
  %v1222 = vadd.f32 0.0, %v1221
  %v1223 = vpop.f32.mrb[0].mxu0
  %v1224 = vadd.f32 0.0, %v1223
  %v1225 = vpop.f32.mrb[0].mxu0
  %v1226 = vadd.f32 0.0, %v1225
  %1227 = vmatprep.mubr.bf16.mxu0 0
  %1228 = vmatmul.mubr.bf16.gmra.mrb[0].mxu0 %v584
  %v1229 = vpop.f32.mrb[0].mxu0
  %v1230 = vadd.f32 0.0, %v1229
  %v1231 = vpop.f32.mrb[0].mxu0
  %v1232 = vadd.f32 0.0, %v1231
  %v1233 = vpop.f32.mrb[0].mxu0
  %v1234 = vadd.f32 0.0, %v1233
  %v1235 = vpop.f32.mrb[0].mxu0
  %v1236 = vadd.f32 0.0, %v1235
  %1237 = vmatprep.mubr.bf16.mxu0 0
  %1238 = vmatmul.mubr.bf16.gmra.mrb[0].mxu0 %v587
  %v1239 = vpop.f32.mrb[0].mxu0
  %v1240 = vadd.f32 0.0, %v1239
  %v1241 = vpop.f32.mrb[0].mxu0
  %v1242 = vadd.f32 0.0, %v1241
  %v1243 = vpop.f32.mrb[0].mxu0
  %v1244 = vadd.f32 0.0, %v1243
  %v1245 = vpop.f32.mrb[0].mxu0
  %v1246 = vadd.f32 0.0, %v1245
  %1247 = vmatprep.mubr.bf16.mxu0 0
  %1248 = vmatmul.mubr.bf16.gmra.mrb[0].mxu0 %v590
  %v1249 = vpop.f32.mrb[0].mxu0
  %v1250 = vadd.f32 0.0, %v1249
  %v1251 = vpop.f32.mrb[0].mxu0
  %v1252 = vadd.f32 0.0, %v1251
  %v1253 = vpop.f32.mrb[0].mxu0
  %v1254 = vadd.f32 0.0, %v1253
  %v1255 = vpop.f32.mrb[0].mxu0
  %v1256 = vadd.f32 0.0, %v1255
  %1257 = vdwg.mxu0
  %1258 = vmatprep.subr.bf16.mxu0 %v404
  %1259 = vmatpush1.bf16.msra.mxu0 %v403
  %1260 = vmatprep.subr.bf16.mxu0 %v431
  %1261 = vmatpush1.bf16.msra.mxu0 %v428
  %1262 = vmatprep.subr.bf16.mxu0 0
  %1263 = vmatpush1.bf16.msra.mxu0 0
  %1264 = vmatprep.subr.bf16.mxu0 0
  %1265 = vmatpush1.bf16.msra.mxu0 0
  %1266 = vmatprep.subr.bf16.mxu0 0
  %1267 = vmatpush1.bf16.msra.mxu0 0
  %1268 = vmatprep.subr.bf16.mxu0 0
  %1269 = vmatpush1.bf16.msra.mxu0 0
  %1270 = vmatprep.subr.bf16.mxu0 0
  %1271 = vmatpush1.bf16.msra.mxu0 0
  %1272 = vmatprep.subr.bf16.mxu0 0
  %1273 = vmatpush1.bf16.msra.mxu0 0
  %1274 = vmatprep.subr.bf16.mxu0 0
  %1275 = vmatpush1.bf16.msra.mxu0 0
  %1276 = vmatprep.subr.bf16.mxu0 0
  %1277 = vmatpush1.bf16.msra.mxu0 0
  %1278 = vmatprep.subr.bf16.mxu0 0
  %1279 = vmatpush1.bf16.msra.mxu0 0
  %1280 = vmatprep.subr.bf16.mxu0 0
  %1281 = vmatpush1.bf16.msra.mxu0 0
  %1282 = vmatprep.subr.bf16.mxu0 0
  %1283 = vmatpush1.bf16.msra.mxu0 0
  %1284 = vmatprep.subr.bf16.mxu0 0
  %1285 = vmatpush1.bf16.msra.mxu0 0
  %1286 = vmatprep.subr.bf16.mxu0 0
  %1287 = vmatpush1.bf16.msra.mxu0 0
  %1288 = vmatprep.subr.bf16.mxu0 0
  %1289 = vmatpush1.bf16.msra.mxu0 0
  %1290 = vmatprep.mubr.bf16.mxu0 0
  %1291 = vmatmul.mubr.bf16.gmra.mrb[0].mxu0 %v247
  %v1292 = vpop.f32.mrb[0].mxu0
  %v1293 = vadd.f32 %v1200, %v1292
  %v1294 = vpop.f32.mrb[0].mxu0
  %v1295 = vadd.f32 %v1202, %v1294
  %v1296 = vpop.f32.mrb[0].mxu0
  %v1297 = vadd.f32 %v1204, %v1296
  %v1298 = vpop.f32.mrb[0].mxu0
  %v1299 = vadd.f32 %v1206, %v1298
  %1300 = vmatprep.mubr.bf16.mxu0 0
  %1301 = vmatmul.mubr.bf16.gmra.mrb[0].mxu0 %v250
  %v1302 = vpop.f32.mrb[0].mxu0
  %v1303 = vadd.f32 %v1210, %v1302
  %v1304 = vpop.f32.mrb[0].mxu0
  %v1305 = vadd.f32 %v1212, %v1304
  %v1306 = vpop.f32.mrb[0].mxu0
  %v1307 = vadd.f32 %v1214, %v1306
  %v1308 = vpop.f32.mrb[0].mxu0
  %v1309 = vadd.f32 %v1216, %v1308
  %1310 = vmatprep.mubr.bf16.mxu0 0
  %1311 = vmatmul.mubr.bf16.gmra.mrb[0].mxu0 %v253
  %v1312 = vpop.f32.mrb[0].mxu0
  %v1313 = vadd.f32 %v1220, %v1312
  %v1314 = vpop.f32.mrb[0].mxu0
  %v1315 = vadd.f32 %v1222, %v1314
  %v1316 = vpop.f32.mrb[0].mxu0
  %v1317 = vadd.f32 %v1224, %v1316
  %v1318 = vpop.f32.mrb[0].mxu0
  %v1319 = vadd.f32 %v1226, %v1318
  %1320 = vmatprep.mubr.bf16.mxu0 0
  %1321 = vmatmul.mubr.bf16.gmra.mrb[0].mxu0 %v256
  %v1322 = vpop.f32.mrb[0].mxu0
  %v1323 = vadd.f32 %v1230, %v1322
  %v1324 = vpop.f32.mrb[0].mxu0
  %v1325 = vadd.f32 %v1232, %v1324
  %v1326 = vpop.f32.mrb[0].mxu0
  %v1327 = vadd.f32 %v1234, %v1326
  %v1328 = vpop.f32.mrb[0].mxu0
  %v1329 = vadd.f32 %v1236, %v1328
  %1330 = vmatprep.mubr.bf16.mxu0 0
  %1331 = vmatmul.mubr.bf16.gmra.mrb[0].mxu0 %v259
  %v1332 = vpop.f32.mrb[0].mxu0
  %v1333 = vadd.f32 %v1240, %v1332
  %v1334 = vpop.f32.mrb[0].mxu0
  %v1335 = vadd.f32 %v1242, %v1334
  %v1336 = vpop.f32.mrb[0].mxu0
  %v1337 = vadd.f32 %v1244, %v1336
  %v1338 = vpop.f32.mrb[0].mxu0
  %v1339 = vadd.f32 %v1246, %v1338
  %1340 = vmatprep.mubr.bf16.mxu0 0
  %1341 = vmatmul.mubr.bf16.gmra.mrb[0].mxu0 %v262
  %v1342 = vpop.f32.mrb[0].mxu0
  %v1343 = vadd.f32 %v1250, %v1342
  %v1344 = vpop.f32.mrb[0].mxu0
  %v1345 = vadd.f32 %v1252, %v1344
  %v1346 = vpop.f32.mrb[0].mxu0
  %v1347 = vadd.f32 %v1254, %v1346
  %v1348 = vpop.f32.mrb[0].mxu0
  %v1349 = vadd.f32 %v1256, %v1348
  %1350 = vdwg.mxu0
  %1351 = vmatprep.subr.bf16.mxu0 %v569
  %1352 = vmatpush1.bf16.msra.mxu0 %v568
  %1353 = vmatprep.subr.bf16.mxu0 %v596
  %1354 = vmatpush1.bf16.msra.mxu0 %v593
  %1355 = vmatprep.subr.bf16.mxu0 0
  %1356 = vmatpush1.bf16.msra.mxu0 0
  %1357 = vmatprep.subr.bf16.mxu0 0
  %1358 = vmatpush1.bf16.msra.mxu0 0
  %1359 = vmatprep.subr.bf16.mxu0 0
  %1360 = vmatpush1.bf16.msra.mxu0 0
  %1361 = vmatprep.subr.bf16.mxu0 0
  %1362 = vmatpush1.bf16.msra.mxu0 0
  %1363 = vmatprep.subr.bf16.mxu0 0
  %1364 = vmatpush1.bf16.msra.mxu0 0
  %1365 = vmatprep.subr.bf16.mxu0 0
  %1366 = vmatpush1.bf16.msra.mxu0 0
  %1367 = vmatprep.subr.bf16.mxu0 0
  %1368 = vmatpush1.bf16.msra.mxu0 0
  %1369 = vmatprep.subr.bf16.mxu0 0
  %1370 = vmatpush1.bf16.msra.mxu0 0
  %1371 = vmatprep.subr.bf16.mxu0 0
  %1372 = vmatpush1.bf16.msra.mxu0 0
  %1373 = vmatprep.subr.bf16.mxu0 0
  %1374 = vmatpush1.bf16.msra.mxu0 0
  %1375 = vmatprep.subr.bf16.mxu0 0
  %1376 = vmatpush1.bf16.msra.mxu0 0
  %1377 = vmatprep.subr.bf16.mxu0 0
  %1378 = vmatpush1.bf16.msra.mxu0 0
  %1379 = vmatprep.subr.bf16.mxu0 0
  %1380 = vmatpush1.bf16.msra.mxu0 0
  %1381 = vmatprep.subr.bf16.mxu0 0
  %1382 = vmatpush1.bf16.msra.mxu0 0
  %1383 = vmatprep.mubr.bf16.mxu0 0
  %1384 = vmatmul.mubr.bf16.gmra.mrb[0].mxu0 %v767
  %v1385 = vpop.f32.mrb[0].mxu0
  %v1386 = vadd.f32 0.0, %v1385
  %v1387 = vpop.f32.mrb[0].mxu0
  %v1388 = vadd.f32 0.0, %v1387
  %v1389 = vpop.f32.mrb[0].mxu0
  %v1390 = vadd.f32 0.0, %v1389
  %v1391 = vpop.f32.mrb[0].mxu0
  %v1392 = vadd.f32 0.0, %v1391
  %1393 = vmatprep.mubr.bf16.mxu0 0
  %1394 = vmatmul.mubr.bf16.gmra.mrb[0].mxu0 %v770
  %v1395 = vpop.f32.mrb[0].mxu0
  %v1396 = vadd.f32 0.0, %v1395
  %v1397 = vpop.f32.mrb[0].mxu0
  %v1398 = vadd.f32 0.0, %v1397
  %v1399 = vpop.f32.mrb[0].mxu0
  %v1400 = vadd.f32 0.0, %v1399
  %v1401 = vpop.f32.mrb[0].mxu0
  %v1402 = vadd.f32 0.0, %v1401
  %1403 = vmatprep.mubr.bf16.mxu0 0
  %1404 = vmatmul.mubr.bf16.gmra.mrb[0].mxu0 %v773
  %v1405 = vpop.f32.mrb[0].mxu0
  %v1406 = vadd.f32 0.0, %v1405
  %v1407 = vpop.f32.mrb[0].mxu0
  %v1408 = vadd.f32 0.0, %v1407
  %v1409 = vpop.f32.mrb[0].mxu0
  %v1410 = vadd.f32 0.0, %v1409
  %v1411 = vpop.f32.mrb[0].mxu0
  %v1412 = vadd.f32 0.0, %v1411
  %1413 = vmatprep.mubr.bf16.mxu0 0
  %1414 = vmatmul.mubr.bf16.gmra.mrb[0].mxu0 %v776
  %v1415 = vpop.f32.mrb[0].mxu0
  %v1416 = vadd.f32 0.0, %v1415
  %v1417 = vpop.f32.mrb[0].mxu0
  %v1418 = vadd.f32 0.0, %v1417
  %v1419 = vpop.f32.mrb[0].mxu0
  %v1420 = vadd.f32 0.0, %v1419
  %v1421 = vpop.f32.mrb[0].mxu0
  %v1422 = vadd.f32 0.0, %v1421
  %1423 = vmatprep.mubr.bf16.mxu0 0
  %1424 = vmatmul.mubr.bf16.gmra.mrb[0].mxu0 %v779
  %v1425 = vpop.f32.mrb[0].mxu0
  %v1426 = vadd.f32 0.0, %v1425
  %v1427 = vpop.f32.mrb[0].mxu0
  %v1428 = vadd.f32 0.0, %v1427
  %v1429 = vpop.f32.mrb[0].mxu0
  %v1430 = vadd.f32 0.0, %v1429
  %v1431 = vpop.f32.mrb[0].mxu0
  %v1432 = vadd.f32 0.0, %v1431
  %1433 = vmatprep.mubr.bf16.mxu0 0
  %1434 = vmatmul.mubr.bf16.gmra.mrb[0].mxu0 %v782
  %v1435 = vpop.f32.mrb[0].mxu0
  %v1436 = vadd.f32 0.0, %v1435
  %v1437 = vpop.f32.mrb[0].mxu0
  %v1438 = vadd.f32 0.0, %v1437
  %v1439 = vpop.f32.mrb[0].mxu0
  %v1440 = vadd.f32 0.0, %v1439
  %v1441 = vpop.f32.mrb[0].mxu0
  %v1442 = vadd.f32 0.0, %v1441
  %1443 = vdwg.mxu0
  %v1444 = vadd.f32 %v1293, %v1386
  %v1445 = vadd.f32 %v1295, %v1388
  %v1446 = vadd.f32 %v1297, %v1390
  %v1447 = vadd.f32 %v1299, %v1392
  %v1448 = vadd.f32 %v1303, %v1396
  %v1449 = vadd.f32 %v1305, %v1398
  %v1450 = vadd.f32 %v1307, %v1400
  %v1451 = vadd.f32 %v1309, %v1402
  %v1452 = vadd.f32 %v1313, %v1406
  %v1453 = vadd.f32 %v1315, %v1408
  %v1454 = vadd.f32 %v1317, %v1410
  %v1455 = vadd.f32 %v1319, %v1412
  %v1456 = vadd.f32 %v1323, %v1416
  %v1457 = vadd.f32 %v1325, %v1418
  %v1458 = vadd.f32 %v1327, %v1420
  %v1459 = vadd.f32 %v1329, %v1422
  %v1460 = vadd.f32 %v1333, %v1426
  %v1461 = vadd.f32 %v1335, %v1428
  %v1462 = vadd.f32 %v1337, %v1430
  %v1463 = vadd.f32 %v1339, %v1432
  %v1464 = vadd.f32 %v1343, %v1436
  %v1465 = vadd.f32 %v1345, %v1438
  %v1466 = vadd.f32 %v1347, %v1440
  %v1467 = vadd.f32 %v1349, %v1442
  %1468 = vmatprep.subr.bf16.mxu0 %v763
  %1469 = vmatpush1.bf16.msra.mxu0 %v760
  %1470 = vmatprep.subr.bf16.mxu0 %v788
  %1471 = vmatpush1.bf16.msra.mxu0 %v785
  %1472 = vmatprep.subr.bf16.mxu0 0
  %1473 = vmatpush1.bf16.msra.mxu0 0
  %1474 = vmatprep.subr.bf16.mxu0 0
  %1475 = vmatpush1.bf16.msra.mxu0 0
  %1476 = vmatprep.subr.bf16.mxu0 0
  %1477 = vmatpush1.bf16.msra.mxu0 0
  %1478 = vmatprep.subr.bf16.mxu0 0
  %1479 = vmatpush1.bf16.msra.mxu0 0
  %1480 = vmatprep.subr.bf16.mxu0 0
  %1481 = vmatpush1.bf16.msra.mxu0 0
  %1482 = vmatprep.subr.bf16.mxu0 0
  %1483 = vmatpush1.bf16.msra.mxu0 0
  %1484 = vmatprep.subr.bf16.mxu0 0
  %1485 = vmatpush1.bf16.msra.mxu0 0
  %1486 = vmatprep.subr.bf16.mxu0 0
  %1487 = vmatpush1.bf16.msra.mxu0 0
  %1488 = vmatprep.subr.bf16.mxu0 0
  %1489 = vmatpush1.bf16.msra.mxu0 0
  %1490 = vmatprep.subr.bf16.mxu0 0
  %1491 = vmatpush1.bf16.msra.mxu0 0
  %1492 = vmatprep.subr.bf16.mxu0 0
  %1493 = vmatpush1.bf16.msra.mxu0 0
  %1494 = vmatprep.subr.bf16.mxu0 0
  %1495 = vmatpush1.bf16.msra.mxu0 0
  %1496 = vmatprep.subr.bf16.mxu0 0
  %1497 = vmatpush1.bf16.msra.mxu0 0
  %1498 = vmatprep.subr.bf16.mxu0 0
  %1499 = vmatpush1.bf16.msra.mxu0 0
  %1500 = vmatprep.mubr.bf16.mxu0 0
  %1501 = vmatmul.mubr.bf16.gmra.mrb[0].mxu0 %v413
  %v1502 = vpop.f32.mrb[0].mxu0
  %v1503 = vadd.f32 0.0, %v1502
  %v1504 = vpop.f32.mrb[0].mxu0
  %v1505 = vadd.f32 0.0, %v1504
  %v1506 = vpop.f32.mrb[0].mxu0
  %v1507 = vadd.f32 0.0, %v1506
  %v1508 = vpop.f32.mrb[0].mxu0
  %v1509 = vadd.f32 0.0, %v1508
  %1510 = vmatprep.mubr.bf16.mxu0 0
  %1511 = vmatmul.mubr.bf16.gmra.mrb[0].mxu0 %v416
  %v1512 = vpop.f32.mrb[0].mxu0
  %v1513 = vadd.f32 0.0, %v1512
  %v1514 = vpop.f32.mrb[0].mxu0
  %v1515 = vadd.f32 0.0, %v1514
  %v1516 = vpop.f32.mrb[0].mxu0
  %v1517 = vadd.f32 0.0, %v1516
  %v1518 = vpop.f32.mrb[0].mxu0
  %v1519 = vadd.f32 0.0, %v1518
  %1520 = vmatprep.mubr.bf16.mxu0 0
  %1521 = vmatmul.mubr.bf16.gmra.mrb[0].mxu0 %v419
  %v1522 = vpop.f32.mrb[0].mxu0
  %v1523 = vadd.f32 0.0, %v1522
  %v1524 = vpop.f32.mrb[0].mxu0
  %v1525 = vadd.f32 0.0, %v1524
  %v1526 = vpop.f32.mrb[0].mxu0
  %v1527 = vadd.f32 0.0, %v1526
  %v1528 = vpop.f32.mrb[0].mxu0
  %v1529 = vadd.f32 0.0, %v1528
  %1530 = vmatprep.mubr.bf16.mxu0 0
  %1531 = vmatmul.mubr.bf16.gmra.mrb[0].mxu0 %v422
  %v1532 = vpop.f32.mrb[0].mxu0
  %v1533 = vadd.f32 0.0, %v1532
  %v1534 = vpop.f32.mrb[0].mxu0
  %v1535 = vadd.f32 0.0, %v1534
  %v1536 = vpop.f32.mrb[0].mxu0
  %v1537 = vadd.f32 0.0, %v1536
  %v1538 = vpop.f32.mrb[0].mxu0
  %v1539 = vadd.f32 0.0, %v1538
  %1540 = vmatprep.mubr.bf16.mxu0 0
  %1541 = vmatmul.mubr.bf16.gmra.mrb[0].mxu0 %v425
  %v1542 = vpop.f32.mrb[0].mxu0
  %v1543 = vadd.f32 0.0, %v1542
  %v1544 = vpop.f32.mrb[0].mxu0
  %v1545 = vadd.f32 0.0, %v1544
  %v1546 = vpop.f32.mrb[0].mxu0
  %v1547 = vadd.f32 0.0, %v1546
  %v1548 = vpop.f32.mrb[0].mxu0
  %v1549 = vadd.f32 0.0, %v1548
  %1550 = vmatprep.mubr.bf16.mxu0 0
  %1551 = vmatmul.mubr.bf16.gmra.mrb[0].mxu0 %v931
  %v1552 = vpop.f32.mrb[0].mxu0
  %v1553 = vadd.f32 0.0, %v1552
  %v1554 = vpop.f32.mrb[0].mxu0
  %v1555 = vadd.f32 0.0, %v1554
  %v1556 = vpop.f32.mrb[0].mxu0
  %v1557 = vadd.f32 0.0, %v1556
  %v1558 = vpop.f32.mrb[0].mxu0
  %v1559 = vadd.f32 0.0, %v1558
  %1560 = vdwg.mxu0
  %v1561 = vadd.f32 %v1444, %v1503
  %v1562 = vadd.f32 %v1445, %v1505
  %v1563 = vadd.f32 %v1446, %v1507
  %v1564 = vadd.f32 %v1447, %v1509
  %v1565 = vadd.f32 %v1448, %v1513
  %v1566 = vadd.f32 %v1449, %v1515
  %v1567 = vadd.f32 %v1450, %v1517
  %v1568 = vadd.f32 %v1451, %v1519
  %v1569 = vadd.f32 %v1452, %v1523
  %v1570 = vadd.f32 %v1453, %v1525
  %v1571 = vadd.f32 %v1454, %v1527
  %v1572 = vadd.f32 %v1455, %v1529
  %v1573 = vadd.f32 %v1456, %v1533
  %v1574 = vadd.f32 %v1457, %v1535
  %v1575 = vadd.f32 %v1458, %v1537
  %v1576 = vadd.f32 %v1459, %v1539
  %v1577 = vadd.f32 %v1460, %v1543
  %v1578 = vadd.f32 %v1461, %v1545
  %v1579 = vadd.f32 %v1462, %v1547
  %v1580 = vadd.f32 %v1463, %v1549
  %v1581 = vadd.f32 %v1464, %v1553
  %v1582 = vadd.f32 %v1465, %v1555
  %v1583 = vadd.f32 %v1466, %v1557
  %v1584 = vadd.f32 %v1467, %v1559
  %v1587 = vunpack.c.l.b16 %v65
  %v1588 = vunpack.c.l.b16 %v66
  %v1589 = vpack.c.b16 %v1588, %v1587
  %v1591 = vsel %vm245, %v1589, 0
  %1593 = vmatprep.subr.bf16.mxu0 %v925
  %1594 = vmatpush1.bf16.msra.mxu0 %v924
  %1595 = vmatprep.subr.bf16.mxu0 %v937
  %1596 = vmatpush1.bf16.msra.mxu0 %v934
  %1597 = vmatprep.subr.bf16.mxu0 0
  %1598 = vmatpush1.bf16.msra.mxu0 0
  %1599 = vmatprep.subr.bf16.mxu0 0
  %1600 = vmatpush1.bf16.msra.mxu0 0
  %1601 = vmatprep.subr.bf16.mxu0 0
  %1602 = vmatpush1.bf16.msra.mxu0 0
  %1603 = vmatprep.subr.bf16.mxu0 0
  %1604 = vmatpush1.bf16.msra.mxu0 0
  %1605 = vmatprep.subr.bf16.mxu0 0
  %1606 = vmatpush1.bf16.msra.mxu0 0
  %1607 = vmatprep.subr.bf16.mxu0 0
  %1608 = vmatpush1.bf16.msra.mxu0 0
  %1609 = vmatprep.subr.bf16.mxu0 0
  %1610 = vmatpush1.bf16.msra.mxu0 0
  %1611 = vmatprep.subr.bf16.mxu0 0
  %1612 = vmatpush1.bf16.msra.mxu0 0
  %1613 = vmatprep.subr.bf16.mxu0 0
  %1614 = vmatpush1.bf16.msra.mxu0 0
  %1615 = vmatprep.subr.bf16.mxu0 0
  %1616 = vmatpush1.bf16.msra.mxu0 0
  %1617 = vmatprep.subr.bf16.mxu0 0
  %1618 = vmatpush1.bf16.msra.mxu0 0
  %1619 = vmatprep.subr.bf16.mxu0 0
  %1620 = vmatpush1.bf16.msra.mxu0 0
  %1621 = vmatprep.subr.bf16.mxu0 0
  %1622 = vmatpush1.bf16.msra.mxu0 0
  %1623 = vmatprep.subr.bf16.mxu0 0
  %1624 = vmatpush1.bf16.msra.mxu0 0
  %1625 = vmatprep.mubr.bf16.mxu0 0
  %1626 = vmatmul.mubr.bf16.gmra.mrb[0].mxu0 %v250
  %v1627 = vpop.f32.mrb[0].mxu0
  %v1628 = vadd.f32 0.0, %v1627
  %v1629 = vpop.f32.mrb[0].mxu0
  %v1630 = vadd.f32 0.0, %v1629
  %v1631 = vpop.f32.mrb[0].mxu0
  %v1632 = vadd.f32 0.0, %v1631
  %v1633 = vpop.f32.mrb[0].mxu0
  %v1634 = vadd.f32 0.0, %v1633
  %1635 = vmatprep.mubr.bf16.mxu0 0
  %1636 = vmatmul.mubr.bf16.gmra.mrb[0].mxu0 %v253
  %v1637 = vpop.f32.mrb[0].mxu0
  %v1638 = vadd.f32 0.0, %v1637
  %v1639 = vpop.f32.mrb[0].mxu0
  %v1640 = vadd.f32 0.0, %v1639
  %v1641 = vpop.f32.mrb[0].mxu0
  %v1642 = vadd.f32 0.0, %v1641
  %v1643 = vpop.f32.mrb[0].mxu0
  %v1644 = vadd.f32 0.0, %v1643
  %1645 = vmatprep.mubr.bf16.mxu0 0
  %1646 = vmatmul.mubr.bf16.gmra.mrb[0].mxu0 %v256
  %v1647 = vpop.f32.mrb[0].mxu0
  %v1648 = vadd.f32 0.0, %v1647
  %v1649 = vpop.f32.mrb[0].mxu0
  %v1650 = vadd.f32 0.0, %v1649
  %v1651 = vpop.f32.mrb[0].mxu0
  %v1652 = vadd.f32 0.0, %v1651
  %v1653 = vpop.f32.mrb[0].mxu0
  %v1654 = vadd.f32 0.0, %v1653
  %1655 = vmatprep.mubr.bf16.mxu0 0
  %1656 = vmatmul.mubr.bf16.gmra.mrb[0].mxu0 %v259
  %v1657 = vpop.f32.mrb[0].mxu0
  %v1658 = vadd.f32 0.0, %v1657
  %v1659 = vpop.f32.mrb[0].mxu0
  %v1660 = vadd.f32 0.0, %v1659
  %v1661 = vpop.f32.mrb[0].mxu0
  %v1662 = vadd.f32 0.0, %v1661
  %v1663 = vpop.f32.mrb[0].mxu0
  %v1664 = vadd.f32 0.0, %v1663
  %1665 = vmatprep.mubr.bf16.mxu0 0
  %1666 = vmatmul.mubr.bf16.gmra.mrb[0].mxu0 %v262
  %v1667 = vpop.f32.mrb[0].mxu0
  %v1668 = vadd.f32 0.0, %v1667
  %v1669 = vpop.f32.mrb[0].mxu0
  %v1670 = vadd.f32 0.0, %v1669
  %v1671 = vpop.f32.mrb[0].mxu0
  %v1672 = vadd.f32 0.0, %v1671
  %v1673 = vpop.f32.mrb[0].mxu0
  %v1674 = vadd.f32 0.0, %v1673
  %1675 = vmatprep.mubr.bf16.mxu0 0
  %1676 = vmatmul.mubr.bf16.gmra.mrb[0].mxu0 %v1591
  %v1677 = vpop.f32.mrb[0].mxu0
  %v1678 = vadd.f32 0.0, %v1677
  %v1679 = vpop.f32.mrb[0].mxu0
  %v1680 = vadd.f32 0.0, %v1679
  %v1681 = vpop.f32.mrb[0].mxu0
  %v1682 = vadd.f32 0.0, %v1681
  %v1683 = vpop.f32.mrb[0].mxu0
  %v1684 = vadd.f32 0.0, %v1683
  %1685 = vdwg.mxu0
  %v1686 = vadd.f32 %v1561, %v1628
  %v1687 = vadd.f32 %v1562, %v1630
  %v1688 = vadd.f32 %v1563, %v1632
  %v1689 = vadd.f32 %v1564, %v1634
  %v1690 = vadd.f32 %v1565, %v1638
  %v1691 = vadd.f32 %v1566, %v1640
  %v1692 = vadd.f32 %v1567, %v1642
  %v1693 = vadd.f32 %v1568, %v1644
  %v1694 = vadd.f32 %v1569, %v1648
  %v1695 = vadd.f32 %v1570, %v1650
  %v1696 = vadd.f32 %v1571, %v1652
  %v1697 = vadd.f32 %v1572, %v1654
  %v1698 = vadd.f32 %v1573, %v1658
  %v1699 = vadd.f32 %v1574, %v1660
  %v1700 = vadd.f32 %v1575, %v1662
  %v1701 = vadd.f32 %v1576, %v1664
  %v1702 = vadd.f32 %v1577, %v1668
  %v1703 = vadd.f32 %v1578, %v1670
  %v1704 = vadd.f32 %v1579, %v1672
  %v1705 = vadd.f32 %v1580, %v1674
  %v1706 = vadd.f32 %v1581, %v1678
  %v1707 = vadd.f32 %v1582, %v1680
  %v1708 = vadd.f32 %v1583, %v1682
  %v1709 = vadd.f32 %v1584, %v1684
  %1734 = vrot.lane.b32.xlu0 %v1686, 56
  %v1735 = vpop.permute.xlu0 %1734
  %1736 = vrot.lane.b32.xlu0 %v1687, 56
  %v1737 = vpop.permute.xlu0 %1736
  %1738 = vrot.lane.b32.xlu0 %v1688, 56
  %v1739 = vpop.permute.xlu0 %1738
  %1740 = vrot.lane.b32.xlu0 %v1689, 56
  %v1741 = vpop.permute.xlu0 %1740
  %1742 = vrot.lane.b32.xlu0 %v1690, 56
  %v1743 = vpop.permute.xlu0 %1742
  %1744 = vrot.lane.b32.xlu0 %v1691, 56
  %v1745 = vpop.permute.xlu0 %1744
  %1746 = vrot.lane.b32.xlu0 %v1692, 56
  %v1747 = vpop.permute.xlu0 %1746
  %1748 = vrot.lane.b32.xlu0 %v1693, 56
  %v1749 = vpop.permute.xlu0 %1748
  %1750 = vrot.lane.b32.xlu0 %v1694, 56
  %v1751 = vpop.permute.xlu0 %1750
  %1752 = vrot.lane.b32.xlu0 %v1695, 56
  %v1753 = vpop.permute.xlu0 %1752
  %1754 = vrot.lane.b32.xlu0 %v1696, 56
  %v1755 = vpop.permute.xlu0 %1754
  %1756 = vrot.lane.b32.xlu0 %v1697, 56
  %v1757 = vpop.permute.xlu0 %1756
  %1758 = vrot.lane.b32.xlu0 %v1698, 56
  %v1759 = vpop.permute.xlu0 %1758
  %1760 = vrot.lane.b32.xlu0 %v1699, 56
  %v1761 = vpop.permute.xlu0 %1760
  %1762 = vrot.lane.b32.xlu0 %v1700, 56
  %v1763 = vpop.permute.xlu0 %1762
  %1764 = vrot.lane.b32.xlu0 %v1701, 56
  %v1765 = vpop.permute.xlu0 %1764
  %1766 = vrot.lane.b32.xlu0 %v1702, 56
  %v1767 = vpop.permute.xlu0 %1766
  %1768 = vrot.lane.b32.xlu0 %v1703, 56
  %v1769 = vpop.permute.xlu0 %1768
  %1770 = vrot.lane.b32.xlu0 %v1704, 56
  %v1771 = vpop.permute.xlu0 %1770
  %1772 = vrot.lane.b32.xlu0 %v1705, 56
  %v1773 = vpop.permute.xlu0 %1772
  %1774 = vrot.lane.b32.xlu0 %v1706, 56
  %v1775 = vpop.permute.xlu0 %1774
  %1776 = vrot.lane.b32.xlu0 %v1707, 56
  %v1777 = vpop.permute.xlu0 %1776
  %1778 = vrot.lane.b32.xlu0 %v1708, 56
  %v1779 = vpop.permute.xlu0 %1778
  %1780 = vrot.lane.b32.xlu0 %v1709, 56
  %v1781 = vpop.permute.xlu0 %1780
  %v1782 = vsel %vm1128, %v1735, %v1737
  %v1783 = vsel %vm1128, %v1739, %v1741
  %v1784 = vsel %vm1128, %v1743, %v1745
  %v1785 = vsel %vm1128, %v1747, %v1749
  %v1786 = vsel %vm1128, %v1751, %v1753
  %v1787 = vsel %vm1128, %v1755, %v1757
  %v1788 = vsel %vm1128, %v1759, %v1761
  %v1789 = vsel %vm1128, %v1763, %v1765
  %v1790 = vsel %vm1128, %v1767, %v1769
  %v1791 = vsel %vm1128, %v1771, %v1773
  %v1792 = vsel %vm1128, %v1775, %v1777
  %v1793 = vsel %vm1128, %v1779, %v1781
  %v1806 = vmax.f32 %v1686, %v1782
  %v1807 = vmax.f32 %v1688, %v1783
  %v1808 = vmax.f32 %v1690, %v1784
  %v1809 = vmax.f32 %v1692, %v1785
  %v1810 = vmax.f32 %v1694, %v1786
  %v1811 = vmax.f32 %v1696, %v1787
  %v1812 = vmax.f32 %v1698, %v1788
  %v1813 = vmax.f32 %v1700, %v1789
  %v1814 = vmax.f32 %v1702, %v1790
  %v1815 = vmax.f32 %v1704, %v1791
  %v1816 = vmax.f32 %v1706, %v1792
  %v1817 = vmax.f32 %v1708, %v1793
  %v1818 = vmax.f32 %v1153, %v1806
  %v1819 = vmax.f32 %v1154, %v1807
  %v1820 = vmax.f32 %v1155, %v1808
  %v1821 = vmax.f32 %v1156, %v1809
  %v1822 = vmax.f32 %v1157, %v1810
  %v1823 = vmax.f32 %v1158, %v1811
  %v1824 = vmax.f32 %v1159, %v1812
  %v1825 = vmax.f32 %v1160, %v1813
  %v1826 = vmax.f32 %v1161, %v1814
  %v1827 = vmax.f32 %v1162, %v1815
  %v1828 = vmax.f32 %v1163, %v1816
  %v1829 = vmax.f32 %v1164, %v1817
  %v1830 = vld [vmem:[%s2] sm:$0x1]
  %v1832 = vlaneseq
  %v1833 = vshrl.u32 %v1832, 7
  %v1834 = vsub.s32 0, %v1833
  %v1835 = vrot.slane %v1830, %v1834
  %v1837 = vadd.f32 %v1818, %v1835
  %v1838 = vadd.f32 %v1819, %v1835
  %v1839 = vadd.f32 %v1820, %v1835
  %v1840 = vadd.f32 %v1821, %v1835
  %v1841 = vadd.f32 %v1822, %v1835
  %v1842 = vadd.f32 %v1823, %v1835
  %v1843 = vadd.f32 %v1824, %v1835
  %v1844 = vadd.f32 %v1825, %v1835
  %v1845 = vadd.f32 %v1826, %v1835
  %v1846 = vadd.f32 %v1827, %v1835
  %v1847 = vadd.f32 %v1828, %v1835
  %v1848 = vadd.f32 %v1829, %v1835
  %v1849 = vmax.f32 %v1837, 0.0
  %v1850 = vmax.f32 %v1838, 0.0
  %v1851 = vmax.f32 %v1839, 0.0
  %v1852 = vmax.f32 %v1840, 0.0
  %v1853 = vmax.f32 %v1841, 0.0
  %v1854 = vmax.f32 %v1842, 0.0
  %v1855 = vmax.f32 %v1843, 0.0
  %v1856 = vmax.f32 %v1844, 0.0
  %v1857 = vmax.f32 %v1845, 0.0
  %v1858 = vmax.f32 %v1846, 0.0
  %v1859 = vmax.f32 %v1847, 0.0
  %v1860 = vmax.f32 %v1848, 0.0
  %v1861 = vpack.c.bf16 %v1850, %v1849
  %v1862 = vpack.c.bf16 %v1852, %v1851
  %v1863 = vpack.c.bf16 %v1854, %v1853
  %v1864 = vpack.c.bf16 %v1856, %v1855
  %v1865 = vpack.c.bf16 %v1858, %v1857
  %v1866 = vpack.c.bf16 %v1860, %v1859
  %1867 = vmatprep.subr.bf16.mxu0 %v242
  %1868 = vmatpush1.bf16.msra.mxu0 %v239
  %1869 = vmatprep.subr.bf16.mxu0 %v269
  %1870 = vmatpush1.bf16.msra.mxu0 %v266
  %1871 = vmatprep.subr.bf16.mxu0 0
  %1872 = vmatpush1.bf16.msra.mxu0 0
  %1873 = vmatprep.subr.bf16.mxu0 0
  %1874 = vmatpush1.bf16.msra.mxu0 0
  %1875 = vmatprep.subr.bf16.mxu0 0
  %1876 = vmatpush1.bf16.msra.mxu0 0
  %1877 = vmatprep.subr.bf16.mxu0 0
  %1878 = vmatpush1.bf16.msra.mxu0 0
  %1879 = vmatprep.subr.bf16.mxu0 0
  %1880 = vmatpush1.bf16.msra.mxu0 0
  %1881 = vmatprep.subr.bf16.mxu0 0
  %1882 = vmatpush1.bf16.msra.mxu0 0
  %1883 = vmatprep.subr.bf16.mxu0 0
  %1884 = vmatpush1.bf16.msra.mxu0 0
  %1885 = vmatprep.subr.bf16.mxu0 0
  %1886 = vmatpush1.bf16.msra.mxu0 0
  %1887 = vmatprep.subr.bf16.mxu0 0
  %1888 = vmatpush1.bf16.msra.mxu0 0
  %1889 = vmatprep.subr.bf16.mxu0 0
  %1890 = vmatpush1.bf16.msra.mxu0 0
  %1891 = vmatprep.subr.bf16.mxu0 0
  %1892 = vmatpush1.bf16.msra.mxu0 0
  %1893 = vmatprep.subr.bf16.mxu0 0
  %1894 = vmatpush1.bf16.msra.mxu0 0
  %1895 = vmatprep.subr.bf16.mxu0 0
  %1896 = vmatpush1.bf16.msra.mxu0 0
  %1897 = vmatprep.subr.bf16.mxu0 0
  %1898 = vmatpush1.bf16.msra.mxu0 0
  %1899 = vmatprep.mubr.bf16.mxu0 0
  %1900 = vmatmul.mubr.bf16.gmra.mrb[0].mxu0 %v767
  %v1901 = vpop.f32.mrb[0].mxu0
  %v1902 = vadd.f32 0.0, %v1901
  %v1903 = vpop.f32.mrb[0].mxu0
  %v1904 = vadd.f32 0.0, %v1903
  %v1905 = vpop.f32.mrb[0].mxu0
  %v1906 = vadd.f32 0.0, %v1905
  %v1907 = vpop.f32.mrb[0].mxu0
  %v1908 = vadd.f32 0.0, %v1907
  %1909 = vmatprep.mubr.bf16.mxu0 0
  %1910 = vmatmul.mubr.bf16.gmra.mrb[0].mxu0 %v770
  %v1911 = vpop.f32.mrb[0].mxu0
  %v1912 = vadd.f32 0.0, %v1911
  %v1913 = vpop.f32.mrb[0].mxu0
  %v1914 = vadd.f32 0.0, %v1913
  %v1915 = vpop.f32.mrb[0].mxu0
  %v1916 = vadd.f32 0.0, %v1915
  %v1917 = vpop.f32.mrb[0].mxu0
  %v1918 = vadd.f32 0.0, %v1917
  %1919 = vmatprep.mubr.bf16.mxu0 0
  %1920 = vmatmul.mubr.bf16.gmra.mrb[0].mxu0 %v773
  %v1921 = vpop.f32.mrb[0].mxu0
  %v1922 = vadd.f32 0.0, %v1921
  %v1923 = vpop.f32.mrb[0].mxu0
  %v1924 = vadd.f32 0.0, %v1923
  %v1925 = vpop.f32.mrb[0].mxu0
  %v1926 = vadd.f32 0.0, %v1925
  %v1927 = vpop.f32.mrb[0].mxu0
  %v1928 = vadd.f32 0.0, %v1927
  %1929 = vmatprep.mubr.bf16.mxu0 0
  %1930 = vmatmul.mubr.bf16.gmra.mrb[0].mxu0 %v776
  %v1931 = vpop.f32.mrb[0].mxu0
  %v1932 = vadd.f32 0.0, %v1931
  %v1933 = vpop.f32.mrb[0].mxu0
  %v1934 = vadd.f32 0.0, %v1933
  %v1935 = vpop.f32.mrb[0].mxu0
  %v1936 = vadd.f32 0.0, %v1935
  %v1937 = vpop.f32.mrb[0].mxu0
  %v1938 = vadd.f32 0.0, %v1937
  %1939 = vmatprep.mubr.bf16.mxu0 0
  %1940 = vmatmul.mubr.bf16.gmra.mrb[0].mxu0 %v779
  %v1941 = vpop.f32.mrb[0].mxu0
  %v1942 = vadd.f32 0.0, %v1941
  %v1943 = vpop.f32.mrb[0].mxu0
  %v1944 = vadd.f32 0.0, %v1943
  %v1945 = vpop.f32.mrb[0].mxu0
  %v1946 = vadd.f32 0.0, %v1945
  %v1947 = vpop.f32.mrb[0].mxu0
  %v1948 = vadd.f32 0.0, %v1947
  %1949 = vmatprep.mubr.bf16.mxu0 0
  %1950 = vmatmul.mubr.bf16.gmra.mrb[0].mxu0 %v782
  %v1951 = vpop.f32.mrb[0].mxu0
  %v1952 = vadd.f32 0.0, %v1951
  %v1953 = vpop.f32.mrb[0].mxu0
  %v1954 = vadd.f32 0.0, %v1953
  %v1955 = vpop.f32.mrb[0].mxu0
  %v1956 = vadd.f32 0.0, %v1955
  %v1957 = vpop.f32.mrb[0].mxu0
  %v1958 = vadd.f32 0.0, %v1957
  %1959 = vdwg.mxu0
  %1960 = vmatprep.subr.bf16.mxu0 %v404
  %1961 = vmatpush1.bf16.msra.mxu0 %v403
  %1962 = vmatprep.subr.bf16.mxu0 %v431
  %1963 = vmatpush1.bf16.msra.mxu0 %v428
  %1964 = vmatprep.subr.bf16.mxu0 0
  %1965 = vmatpush1.bf16.msra.mxu0 0
  %1966 = vmatprep.subr.bf16.mxu0 0
  %1967 = vmatpush1.bf16.msra.mxu0 0
  %1968 = vmatprep.subr.bf16.mxu0 0
  %1969 = vmatpush1.bf16.msra.mxu0 0
  %1970 = vmatprep.subr.bf16.mxu0 0
  %1971 = vmatpush1.bf16.msra.mxu0 0
  %1972 = vmatprep.subr.bf16.mxu0 0
  %1973 = vmatpush1.bf16.msra.mxu0 0
  %1974 = vmatprep.subr.bf16.mxu0 0
  %1975 = vmatpush1.bf16.msra.mxu0 0
  %1976 = vmatprep.subr.bf16.mxu0 0
  %1977 = vmatpush1.bf16.msra.mxu0 0
  %1978 = vmatprep.subr.bf16.mxu0 0
  %1979 = vmatpush1.bf16.msra.mxu0 0
  %1980 = vmatprep.subr.bf16.mxu0 0
  %1981 = vmatpush1.bf16.msra.mxu0 0
  %1982 = vmatprep.subr.bf16.mxu0 0
  %1983 = vmatpush1.bf16.msra.mxu0 0
  %1984 = vmatprep.subr.bf16.mxu0 0
  %1985 = vmatpush1.bf16.msra.mxu0 0
  %1986 = vmatprep.subr.bf16.mxu0 0
  %1987 = vmatpush1.bf16.msra.mxu0 0
  %1988 = vmatprep.subr.bf16.mxu0 0
  %1989 = vmatpush1.bf16.msra.mxu0 0
  %1990 = vmatprep.subr.bf16.mxu0 0
  %1991 = vmatpush1.bf16.msra.mxu0 0
  %1992 = vmatprep.mubr.bf16.mxu0 0
  %1993 = vmatmul.mubr.bf16.gmra.mrb[0].mxu0 %v575
  %v1994 = vpop.f32.mrb[0].mxu0
  %v1995 = vadd.f32 %v1902, %v1994
  %v1996 = vpop.f32.mrb[0].mxu0
  %v1997 = vadd.f32 %v1904, %v1996
  %v1998 = vpop.f32.mrb[0].mxu0
  %v1999 = vadd.f32 %v1906, %v1998
  %v2000 = vpop.f32.mrb[0].mxu0
  %v2001 = vadd.f32 %v1908, %v2000
  %2002 = vmatprep.mubr.bf16.mxu0 0
  %2003 = vmatmul.mubr.bf16.gmra.mrb[0].mxu0 %v578
  %v2004 = vpop.f32.mrb[0].mxu0
  %v2005 = vadd.f32 %v1912, %v2004
  %v2006 = vpop.f32.mrb[0].mxu0
  %v2007 = vadd.f32 %v1914, %v2006
  %v2008 = vpop.f32.mrb[0].mxu0
  %v2009 = vadd.f32 %v1916, %v2008
  %v2010 = vpop.f32.mrb[0].mxu0
  %v2011 = vadd.f32 %v1918, %v2010
  %2012 = vmatprep.mubr.bf16.mxu0 0
  %2013 = vmatmul.mubr.bf16.gmra.mrb[0].mxu0 %v581
  %v2014 = vpop.f32.mrb[0].mxu0
  %v2015 = vadd.f32 %v1922, %v2014
  %v2016 = vpop.f32.mrb[0].mxu0
  %v2017 = vadd.f32 %v1924, %v2016
  %v2018 = vpop.f32.mrb[0].mxu0
  %v2019 = vadd.f32 %v1926, %v2018
  %v2020 = vpop.f32.mrb[0].mxu0
  %v2021 = vadd.f32 %v1928, %v2020
  %2022 = vmatprep.mubr.bf16.mxu0 0
  %2023 = vmatmul.mubr.bf16.gmra.mrb[0].mxu0 %v584
  %v2024 = vpop.f32.mrb[0].mxu0
  %v2025 = vadd.f32 %v1932, %v2024
  %v2026 = vpop.f32.mrb[0].mxu0
  %v2027 = vadd.f32 %v1934, %v2026
  %v2028 = vpop.f32.mrb[0].mxu0
  %v2029 = vadd.f32 %v1936, %v2028
  %v2030 = vpop.f32.mrb[0].mxu0
  %v2031 = vadd.f32 %v1938, %v2030
  %2032 = vmatprep.mubr.bf16.mxu0 0
  %2033 = vmatmul.mubr.bf16.gmra.mrb[0].mxu0 %v587
  %v2034 = vpop.f32.mrb[0].mxu0
  %v2035 = vadd.f32 %v1942, %v2034
  %v2036 = vpop.f32.mrb[0].mxu0
  %v2037 = vadd.f32 %v1944, %v2036
  %v2038 = vpop.f32.mrb[0].mxu0
  %v2039 = vadd.f32 %v1946, %v2038
  %v2040 = vpop.f32.mrb[0].mxu0
  %v2041 = vadd.f32 %v1948, %v2040
  %2042 = vmatprep.mubr.bf16.mxu0 0
  %2043 = vmatmul.mubr.bf16.gmra.mrb[0].mxu0 %v590
  %v2044 = vpop.f32.mrb[0].mxu0
  %v2045 = vadd.f32 %v1952, %v2044
  %v2046 = vpop.f32.mrb[0].mxu0
  %v2047 = vadd.f32 %v1954, %v2046
  %v2048 = vpop.f32.mrb[0].mxu0
  %v2049 = vadd.f32 %v1956, %v2048
  %v2050 = vpop.f32.mrb[0].mxu0
  %v2051 = vadd.f32 %v1958, %v2050
  %2052 = vdwg.mxu0
  %2053 = vmatprep.subr.bf16.mxu0 %v569
  %2054 = vmatpush1.bf16.msra.mxu0 %v568
  %2055 = vmatprep.subr.bf16.mxu0 %v596
  %2056 = vmatpush1.bf16.msra.mxu0 %v593
  %2057 = vmatprep.subr.bf16.mxu0 0
  %2058 = vmatpush1.bf16.msra.mxu0 0
  %2059 = vmatprep.subr.bf16.mxu0 0
  %2060 = vmatpush1.bf16.msra.mxu0 0
  %2061 = vmatprep.subr.bf16.mxu0 0
  %2062 = vmatpush1.bf16.msra.mxu0 0
  %2063 = vmatprep.subr.bf16.mxu0 0
  %2064 = vmatpush1.bf16.msra.mxu0 0
  %2065 = vmatprep.subr.bf16.mxu0 0
  %2066 = vmatpush1.bf16.msra.mxu0 0
  %2067 = vmatprep.subr.bf16.mxu0 0
  %2068 = vmatpush1.bf16.msra.mxu0 0
  %2069 = vmatprep.subr.bf16.mxu0 0
  %2070 = vmatpush1.bf16.msra.mxu0 0
  %2071 = vmatprep.subr.bf16.mxu0 0
  %2072 = vmatpush1.bf16.msra.mxu0 0
  %2073 = vmatprep.subr.bf16.mxu0 0
  %2074 = vmatpush1.bf16.msra.mxu0 0
  %2075 = vmatprep.subr.bf16.mxu0 0
  %2076 = vmatpush1.bf16.msra.mxu0 0
  %2077 = vmatprep.subr.bf16.mxu0 0
  %2078 = vmatpush1.bf16.msra.mxu0 0
  %2079 = vmatprep.subr.bf16.mxu0 0
  %2080 = vmatpush1.bf16.msra.mxu0 0
  %2081 = vmatprep.subr.bf16.mxu0 0
  %2082 = vmatpush1.bf16.msra.mxu0 0
  %2083 = vmatprep.subr.bf16.mxu0 0
  %2084 = vmatpush1.bf16.msra.mxu0 0
  %2085 = vmatprep.mubr.bf16.mxu0 0
  %2086 = vmatmul.mubr.bf16.gmra.mrb[0].mxu0 %v413
  %v2087 = vpop.f32.mrb[0].mxu0
  %v2088 = vadd.f32 0.0, %v2087
  %v2089 = vpop.f32.mrb[0].mxu0
  %v2090 = vadd.f32 0.0, %v2089
  %v2091 = vpop.f32.mrb[0].mxu0
  %v2092 = vadd.f32 0.0, %v2091
  %v2093 = vpop.f32.mrb[0].mxu0
  %v2094 = vadd.f32 0.0, %v2093
  %2095 = vmatprep.mubr.bf16.mxu0 0
  %2096 = vmatmul.mubr.bf16.gmra.mrb[0].mxu0 %v416
  %v2097 = vpop.f32.mrb[0].mxu0
  %v2098 = vadd.f32 0.0, %v2097
  %v2099 = vpop.f32.mrb[0].mxu0
  %v2100 = vadd.f32 0.0, %v2099
  %v2101 = vpop.f32.mrb[0].mxu0
  %v2102 = vadd.f32 0.0, %v2101
  %v2103 = vpop.f32.mrb[0].mxu0
  %v2104 = vadd.f32 0.0, %v2103
  %2105 = vmatprep.mubr.bf16.mxu0 0
  %2106 = vmatmul.mubr.bf16.gmra.mrb[0].mxu0 %v419
  %v2107 = vpop.f32.mrb[0].mxu0
  %v2108 = vadd.f32 0.0, %v2107
  %v2109 = vpop.f32.mrb[0].mxu0
  %v2110 = vadd.f32 0.0, %v2109
  %v2111 = vpop.f32.mrb[0].mxu0
  %v2112 = vadd.f32 0.0, %v2111
  %v2113 = vpop.f32.mrb[0].mxu0
  %v2114 = vadd.f32 0.0, %v2113
  %2115 = vmatprep.mubr.bf16.mxu0 0
  %2116 = vmatmul.mubr.bf16.gmra.mrb[0].mxu0 %v422
  %v2117 = vpop.f32.mrb[0].mxu0
  %v2118 = vadd.f32 0.0, %v2117
  %v2119 = vpop.f32.mrb[0].mxu0
  %v2120 = vadd.f32 0.0, %v2119
  %v2121 = vpop.f32.mrb[0].mxu0
  %v2122 = vadd.f32 0.0, %v2121
  %v2123 = vpop.f32.mrb[0].mxu0
  %v2124 = vadd.f32 0.0, %v2123
  %2125 = vmatprep.mubr.bf16.mxu0 0
  %2126 = vmatmul.mubr.bf16.gmra.mrb[0].mxu0 %v425
  %v2127 = vpop.f32.mrb[0].mxu0
  %v2128 = vadd.f32 0.0, %v2127
  %v2129 = vpop.f32.mrb[0].mxu0
  %v2130 = vadd.f32 0.0, %v2129
  %v2131 = vpop.f32.mrb[0].mxu0
  %v2132 = vadd.f32 0.0, %v2131
  %v2133 = vpop.f32.mrb[0].mxu0
  %v2134 = vadd.f32 0.0, %v2133
  %2135 = vmatprep.mubr.bf16.mxu0 0
  %2136 = vmatmul.mubr.bf16.gmra.mrb[0].mxu0 %v931
  %v2137 = vpop.f32.mrb[0].mxu0
  %v2138 = vadd.f32 0.0, %v2137
  %v2139 = vpop.f32.mrb[0].mxu0
  %v2140 = vadd.f32 0.0, %v2139
  %v2141 = vpop.f32.mrb[0].mxu0
  %v2142 = vadd.f32 0.0, %v2141
  %v2143 = vpop.f32.mrb[0].mxu0
  %v2144 = vadd.f32 0.0, %v2143
  %2145 = vdwg.mxu0
  %v2146 = vadd.f32 %v1995, %v2088
  %v2147 = vadd.f32 %v1997, %v2090
  %v2148 = vadd.f32 %v1999, %v2092
  %v2149 = vadd.f32 %v2001, %v2094
  %v2150 = vadd.f32 %v2005, %v2098
  %v2151 = vadd.f32 %v2007, %v2100
  %v2152 = vadd.f32 %v2009, %v2102
  %v2153 = vadd.f32 %v2011, %v2104
  %v2154 = vadd.f32 %v2015, %v2108
  %v2155 = vadd.f32 %v2017, %v2110
  %v2156 = vadd.f32 %v2019, %v2112
  %v2157 = vadd.f32 %v2021, %v2114
  %v2158 = vadd.f32 %v2025, %v2118
  %v2159 = vadd.f32 %v2027, %v2120
  %v2160 = vadd.f32 %v2029, %v2122
  %v2161 = vadd.f32 %v2031, %v2124
  %v2162 = vadd.f32 %v2035, %v2128
  %v2163 = vadd.f32 %v2037, %v2130
  %v2164 = vadd.f32 %v2039, %v2132
  %v2165 = vadd.f32 %v2041, %v2134
  %v2166 = vadd.f32 %v2045, %v2138
  %v2167 = vadd.f32 %v2047, %v2140
  %v2168 = vadd.f32 %v2049, %v2142
  %v2169 = vadd.f32 %v2051, %v2144
  %2170 = vmatprep.subr.bf16.mxu0 %v763
  %2171 = vmatpush1.bf16.msra.mxu0 %v760
  %2172 = vmatprep.subr.bf16.mxu0 %v788
  %2173 = vmatpush1.bf16.msra.mxu0 %v785
  %2174 = vmatprep.subr.bf16.mxu0 0
  %2175 = vmatpush1.bf16.msra.mxu0 0
  %2176 = vmatprep.subr.bf16.mxu0 0
  %2177 = vmatpush1.bf16.msra.mxu0 0
  %2178 = vmatprep.subr.bf16.mxu0 0
  %2179 = vmatpush1.bf16.msra.mxu0 0
  %2180 = vmatprep.subr.bf16.mxu0 0
  %2181 = vmatpush1.bf16.msra.mxu0 0
  %2182 = vmatprep.subr.bf16.mxu0 0
  %2183 = vmatpush1.bf16.msra.mxu0 0
  %2184 = vmatprep.subr.bf16.mxu0 0
  %2185 = vmatpush1.bf16.msra.mxu0 0
  %2186 = vmatprep.subr.bf16.mxu0 0
  %2187 = vmatpush1.bf16.msra.mxu0 0
  %2188 = vmatprep.subr.bf16.mxu0 0
  %2189 = vmatpush1.bf16.msra.mxu0 0
  %2190 = vmatprep.subr.bf16.mxu0 0
  %2191 = vmatpush1.bf16.msra.mxu0 0
  %2192 = vmatprep.subr.bf16.mxu0 0
  %2193 = vmatpush1.bf16.msra.mxu0 0
  %2194 = vmatprep.subr.bf16.mxu0 0
  %2195 = vmatpush1.bf16.msra.mxu0 0
  %2196 = vmatprep.subr.bf16.mxu0 0
  %2197 = vmatpush1.bf16.msra.mxu0 0
  %2198 = vmatprep.subr.bf16.mxu0 0
  %2199 = vmatpush1.bf16.msra.mxu0 0
  %2200 = vmatprep.subr.bf16.mxu0 0
  %2201 = vmatpush1.bf16.msra.mxu0 0
  %2202 = vmatprep.mubr.bf16.mxu0 0
  %2203 = vmatmul.mubr.bf16.gmra.mrb[0].mxu0 %v250
  %v2204 = vpop.f32.mrb[0].mxu0
  %v2205 = vadd.f32 0.0, %v2204
  %v2206 = vpop.f32.mrb[0].mxu0
  %v2207 = vadd.f32 0.0, %v2206
  %v2208 = vpop.f32.mrb[0].mxu0
  %v2209 = vadd.f32 0.0, %v2208
  %v2210 = vpop.f32.mrb[0].mxu0
  %v2211 = vadd.f32 0.0, %v2210
  %2212 = vmatprep.mubr.bf16.mxu0 0
  %2213 = vmatmul.mubr.bf16.gmra.mrb[0].mxu0 %v253
  %v2214 = vpop.f32.mrb[0].mxu0
  %v2215 = vadd.f32 0.0, %v2214
  %v2216 = vpop.f32.mrb[0].mxu0
  %v2217 = vadd.f32 0.0, %v2216
  %v2218 = vpop.f32.mrb[0].mxu0
  %v2219 = vadd.f32 0.0, %v2218
  %v2220 = vpop.f32.mrb[0].mxu0
  %v2221 = vadd.f32 0.0, %v2220
  %2222 = vmatprep.mubr.bf16.mxu0 0
  %2223 = vmatmul.mubr.bf16.gmra.mrb[0].mxu0 %v256
  %v2224 = vpop.f32.mrb[0].mxu0
  %v2225 = vadd.f32 0.0, %v2224
  %v2226 = vpop.f32.mrb[0].mxu0
  %v2227 = vadd.f32 0.0, %v2226
  %v2228 = vpop.f32.mrb[0].mxu0
  %v2229 = vadd.f32 0.0, %v2228
  %v2230 = vpop.f32.mrb[0].mxu0
  %v2231 = vadd.f32 0.0, %v2230
  %2232 = vmatprep.mubr.bf16.mxu0 0
  %2233 = vmatmul.mubr.bf16.gmra.mrb[0].mxu0 %v259
  %v2234 = vpop.f32.mrb[0].mxu0
  %v2235 = vadd.f32 0.0, %v2234
  %v2236 = vpop.f32.mrb[0].mxu0
  %v2237 = vadd.f32 0.0, %v2236
  %v2238 = vpop.f32.mrb[0].mxu0
  %v2239 = vadd.f32 0.0, %v2238
  %v2240 = vpop.f32.mrb[0].mxu0
  %v2241 = vadd.f32 0.0, %v2240
  %2242 = vmatprep.mubr.bf16.mxu0 0
  %2243 = vmatmul.mubr.bf16.gmra.mrb[0].mxu0 %v262
  %v2244 = vpop.f32.mrb[0].mxu0
  %v2245 = vadd.f32 0.0, %v2244
  %v2246 = vpop.f32.mrb[0].mxu0
  %v2247 = vadd.f32 0.0, %v2246
  %v2248 = vpop.f32.mrb[0].mxu0
  %v2249 = vadd.f32 0.0, %v2248
  %v2250 = vpop.f32.mrb[0].mxu0
  %v2251 = vadd.f32 0.0, %v2250
  %2252 = vmatprep.mubr.bf16.mxu0 0
  %2253 = vmatmul.mubr.bf16.gmra.mrb[0].mxu0 %v1591
  %v2254 = vpop.f32.mrb[0].mxu0
  %v2255 = vadd.f32 0.0, %v2254
  %v2256 = vpop.f32.mrb[0].mxu0
  %v2257 = vadd.f32 0.0, %v2256
  %v2258 = vpop.f32.mrb[0].mxu0
  %v2259 = vadd.f32 0.0, %v2258
  %v2260 = vpop.f32.mrb[0].mxu0
  %v2261 = vadd.f32 0.0, %v2260
  %2262 = vdwg.mxu0
  %v2263 = vadd.f32 %v2146, %v2205
  %v2264 = vadd.f32 %v2147, %v2207
  %v2265 = vadd.f32 %v2148, %v2209
  %v2266 = vadd.f32 %v2149, %v2211
  %v2267 = vadd.f32 %v2150, %v2215
  %v2268 = vadd.f32 %v2151, %v2217
  %v2269 = vadd.f32 %v2152, %v2219
  %v2270 = vadd.f32 %v2153, %v2221
  %v2271 = vadd.f32 %v2154, %v2225
  %v2272 = vadd.f32 %v2155, %v2227
  %v2273 = vadd.f32 %v2156, %v2229
  %v2274 = vadd.f32 %v2157, %v2231
  %v2275 = vadd.f32 %v2158, %v2235
  %v2276 = vadd.f32 %v2159, %v2237
  %v2277 = vadd.f32 %v2160, %v2239
  %v2278 = vadd.f32 %v2161, %v2241
  %v2279 = vadd.f32 %v2162, %v2245
  %v2280 = vadd.f32 %v2163, %v2247
  %v2281 = vadd.f32 %v2164, %v2249
  %v2282 = vadd.f32 %v2165, %v2251
  %v2283 = vadd.f32 %v2166, %v2255
  %v2284 = vadd.f32 %v2167, %v2257
  %v2285 = vadd.f32 %v2168, %v2259
  %v2286 = vadd.f32 %v2169, %v2261
  %v2289 = vunpack.c.l.b16 %v79
  %v2290 = vunpack.c.l.b16 %v80
  %v2291 = vpack.c.b16 %v2290, %v2289
  %v2293 = vsel %vm245, %v2291, 0
  %2295 = vmatprep.subr.bf16.mxu0 %v925
  %2296 = vmatpush1.bf16.msra.mxu0 %v924
  %2297 = vmatprep.subr.bf16.mxu0 %v937
  %2298 = vmatpush1.bf16.msra.mxu0 %v934
  %2299 = vmatprep.subr.bf16.mxu0 0
  %2300 = vmatpush1.bf16.msra.mxu0 0
  %2301 = vmatprep.subr.bf16.mxu0 0
  %2302 = vmatpush1.bf16.msra.mxu0 0
  %2303 = vmatprep.subr.bf16.mxu0 0
  %2304 = vmatpush1.bf16.msra.mxu0 0
  %2305 = vmatprep.subr.bf16.mxu0 0
  %2306 = vmatpush1.bf16.msra.mxu0 0
  %2307 = vmatprep.subr.bf16.mxu0 0
  %2308 = vmatpush1.bf16.msra.mxu0 0
  %2309 = vmatprep.subr.bf16.mxu0 0
  %2310 = vmatpush1.bf16.msra.mxu0 0
  %2311 = vmatprep.subr.bf16.mxu0 0
  %2312 = vmatpush1.bf16.msra.mxu0 0
  %2313 = vmatprep.subr.bf16.mxu0 0
  %2314 = vmatpush1.bf16.msra.mxu0 0
  %2315 = vmatprep.subr.bf16.mxu0 0
  %2316 = vmatpush1.bf16.msra.mxu0 0
  %2317 = vmatprep.subr.bf16.mxu0 0
  %2318 = vmatpush1.bf16.msra.mxu0 0
  %2319 = vmatprep.subr.bf16.mxu0 0
  %2320 = vmatpush1.bf16.msra.mxu0 0
  %2321 = vmatprep.subr.bf16.mxu0 0
  %2322 = vmatpush1.bf16.msra.mxu0 0
  %2323 = vmatprep.subr.bf16.mxu0 0
  %2324 = vmatpush1.bf16.msra.mxu0 0
  %2325 = vmatprep.subr.bf16.mxu0 0
  %2326 = vmatpush1.bf16.msra.mxu0 0
  %2327 = vmatprep.mubr.bf16.mxu0 0
  %2328 = vmatmul.mubr.bf16.gmra.mrb[0].mxu0 %v578
  %v2329 = vpop.f32.mrb[0].mxu0
  %v2330 = vadd.f32 0.0, %v2329
  %v2331 = vpop.f32.mrb[0].mxu0
  %v2332 = vadd.f32 0.0, %v2331
  %v2333 = vpop.f32.mrb[0].mxu0
  %v2334 = vadd.f32 0.0, %v2333
  %v2335 = vpop.f32.mrb[0].mxu0
  %v2336 = vadd.f32 0.0, %v2335
  %2337 = vmatprep.mubr.bf16.mxu0 0
  %2338 = vmatmul.mubr.bf16.gmra.mrb[0].mxu0 %v581
  %v2339 = vpop.f32.mrb[0].mxu0
  %v2340 = vadd.f32 0.0, %v2339
  %v2341 = vpop.f32.mrb[0].mxu0
  %v2342 = vadd.f32 0.0, %v2341
  %v2343 = vpop.f32.mrb[0].mxu0
  %v2344 = vadd.f32 0.0, %v2343
  %v2345 = vpop.f32.mrb[0].mxu0
  %v2346 = vadd.f32 0.0, %v2345
  %2347 = vmatprep.mubr.bf16.mxu0 0
  %2348 = vmatmul.mubr.bf16.gmra.mrb[0].mxu0 %v584
  %v2349 = vpop.f32.mrb[0].mxu0
  %v2350 = vadd.f32 0.0, %v2349
  %v2351 = vpop.f32.mrb[0].mxu0
  %v2352 = vadd.f32 0.0, %v2351
  %v2353 = vpop.f32.mrb[0].mxu0
  %v2354 = vadd.f32 0.0, %v2353
  %v2355 = vpop.f32.mrb[0].mxu0
  %v2356 = vadd.f32 0.0, %v2355
  %2357 = vmatprep.mubr.bf16.mxu0 0
  %2358 = vmatmul.mubr.bf16.gmra.mrb[0].mxu0 %v587
  %v2359 = vpop.f32.mrb[0].mxu0
  %v2360 = vadd.f32 0.0, %v2359
  %v2361 = vpop.f32.mrb[0].mxu0
  %v2362 = vadd.f32 0.0, %v2361
  %v2363 = vpop.f32.mrb[0].mxu0
  %v2364 = vadd.f32 0.0, %v2363
  %v2365 = vpop.f32.mrb[0].mxu0
  %v2366 = vadd.f32 0.0, %v2365
  %2367 = vmatprep.mubr.bf16.mxu0 0
  %2368 = vmatmul.mubr.bf16.gmra.mrb[0].mxu0 %v590
  %v2369 = vpop.f32.mrb[0].mxu0
  %v2370 = vadd.f32 0.0, %v2369
  %v2371 = vpop.f32.mrb[0].mxu0
  %v2372 = vadd.f32 0.0, %v2371
  %v2373 = vpop.f32.mrb[0].mxu0
  %v2374 = vadd.f32 0.0, %v2373
  %v2375 = vpop.f32.mrb[0].mxu0
  %v2376 = vadd.f32 0.0, %v2375
  %2377 = vmatprep.mubr.bf16.mxu0 0
  %2378 = vmatmul.mubr.bf16.gmra.mrb[0].mxu0 %v2293
  %v2379 = vpop.f32.mrb[0].mxu0
  %v2380 = vadd.f32 0.0, %v2379
  %v2381 = vpop.f32.mrb[0].mxu0
  %v2382 = vadd.f32 0.0, %v2381
  %v2383 = vpop.f32.mrb[0].mxu0
  %v2384 = vadd.f32 0.0, %v2383
  %v2385 = vpop.f32.mrb[0].mxu0
  %v2386 = vadd.f32 0.0, %v2385
  %2387 = vdwg.mxu0
  %v2388 = vadd.f32 %v2263, %v2330
  %v2389 = vadd.f32 %v2264, %v2332
  %v2390 = vadd.f32 %v2265, %v2334
  %v2391 = vadd.f32 %v2266, %v2336
  %v2392 = vadd.f32 %v2267, %v2340
  %v2393 = vadd.f32 %v2268, %v2342
  %v2394 = vadd.f32 %v2269, %v2344
  %v2395 = vadd.f32 %v2270, %v2346
  %v2396 = vadd.f32 %v2271, %v2350
  %v2397 = vadd.f32 %v2272, %v2352
  %v2398 = vadd.f32 %v2273, %v2354
  %v2399 = vadd.f32 %v2274, %v2356
  %v2400 = vadd.f32 %v2275, %v2360
  %v2401 = vadd.f32 %v2276, %v2362
  %v2402 = vadd.f32 %v2277, %v2364
  %v2403 = vadd.f32 %v2278, %v2366
  %v2404 = vadd.f32 %v2279, %v2370
  %v2405 = vadd.f32 %v2280, %v2372
  %v2406 = vadd.f32 %v2281, %v2374
  %v2407 = vadd.f32 %v2282, %v2376
  %v2408 = vadd.f32 %v2283, %v2380
  %v2409 = vadd.f32 %v2284, %v2382
  %v2410 = vadd.f32 %v2285, %v2384
  %v2411 = vadd.f32 %v2286, %v2386
  %2436 = vrot.lane.b32.xlu0 %v2388, 56
  %v2437 = vpop.permute.xlu0 %2436
  %2438 = vrot.lane.b32.xlu0 %v2389, 56
  %v2439 = vpop.permute.xlu0 %2438
  %2440 = vrot.lane.b32.xlu0 %v2390, 56
  %v2441 = vpop.permute.xlu0 %2440
  %2442 = vrot.lane.b32.xlu0 %v2391, 56
  %v2443 = vpop.permute.xlu0 %2442
  %2444 = vrot.lane.b32.xlu0 %v2392, 56
  %v2445 = vpop.permute.xlu0 %2444
  %2446 = vrot.lane.b32.xlu0 %v2393, 56
  %v2447 = vpop.permute.xlu0 %2446
  %2448 = vrot.lane.b32.xlu0 %v2394, 56
  %v2449 = vpop.permute.xlu0 %2448
  %2450 = vrot.lane.b32.xlu0 %v2395, 56
  %v2451 = vpop.permute.xlu0 %2450
  %2452 = vrot.lane.b32.xlu0 %v2396, 56
  %v2453 = vpop.permute.xlu0 %2452
  %2454 = vrot.lane.b32.xlu0 %v2397, 56
  %v2455 = vpop.permute.xlu0 %2454
  %2456 = vrot.lane.b32.xlu0 %v2398, 56
  %v2457 = vpop.permute.xlu0 %2456
  %2458 = vrot.lane.b32.xlu0 %v2399, 56
  %v2459 = vpop.permute.xlu0 %2458
  %2460 = vrot.lane.b32.xlu0 %v2400, 56
  %v2461 = vpop.permute.xlu0 %2460
  %2462 = vrot.lane.b32.xlu0 %v2401, 56
  %v2463 = vpop.permute.xlu0 %2462
  %2464 = vrot.lane.b32.xlu0 %v2402, 56
  %v2465 = vpop.permute.xlu0 %2464
  %2466 = vrot.lane.b32.xlu0 %v2403, 56
  %v2467 = vpop.permute.xlu0 %2466
  %2468 = vrot.lane.b32.xlu0 %v2404, 56
  %v2469 = vpop.permute.xlu0 %2468
  %2470 = vrot.lane.b32.xlu0 %v2405, 56
  %v2471 = vpop.permute.xlu0 %2470
  %2472 = vrot.lane.b32.xlu0 %v2406, 56
  %v2473 = vpop.permute.xlu0 %2472
  %2474 = vrot.lane.b32.xlu0 %v2407, 56
  %v2475 = vpop.permute.xlu0 %2474
  %2476 = vrot.lane.b32.xlu0 %v2408, 56
  %v2477 = vpop.permute.xlu0 %2476
  %2478 = vrot.lane.b32.xlu0 %v2409, 56
  %v2479 = vpop.permute.xlu0 %2478
  %2480 = vrot.lane.b32.xlu0 %v2410, 56
  %v2481 = vpop.permute.xlu0 %2480
  %2482 = vrot.lane.b32.xlu0 %v2411, 56
  %v2483 = vpop.permute.xlu0 %2482
  %v2484 = vsel %vm1128, %v2437, %v2439
  %v2485 = vsel %vm1128, %v2441, %v2443
  %v2486 = vsel %vm1128, %v2445, %v2447
  %v2487 = vsel %vm1128, %v2449, %v2451
  %v2488 = vsel %vm1128, %v2453, %v2455
  %v2489 = vsel %vm1128, %v2457, %v2459
  %v2490 = vsel %vm1128, %v2461, %v2463
  %v2491 = vsel %vm1128, %v2465, %v2467
  %v2492 = vsel %vm1128, %v2469, %v2471
  %v2493 = vsel %vm1128, %v2473, %v2475
  %v2494 = vsel %vm1128, %v2477, %v2479
  %v2495 = vsel %vm1128, %v2481, %v2483
  %v2508 = vmax.f32 %v2388, %v2484
  %v2509 = vmax.f32 %v2390, %v2485
  %v2510 = vmax.f32 %v2392, %v2486
  %v2511 = vmax.f32 %v2394, %v2487
  %v2512 = vmax.f32 %v2396, %v2488
  %v2513 = vmax.f32 %v2398, %v2489
  %v2514 = vmax.f32 %v2400, %v2490
  %v2515 = vmax.f32 %v2402, %v2491
  %v2516 = vmax.f32 %v2404, %v2492
  %v2517 = vmax.f32 %v2406, %v2493
  %v2518 = vmax.f32 %v2408, %v2494
  %v2519 = vmax.f32 %v2410, %v2495
  %2520 = vmatprep.subr.bf16.mxu0 %v242
  %2521 = vmatpush1.bf16.msra.mxu0 %v239
  %2522 = vmatprep.subr.bf16.mxu0 %v269
  %2523 = vmatpush1.bf16.msra.mxu0 %v266
  %2524 = vmatprep.subr.bf16.mxu0 0
  %2525 = vmatpush1.bf16.msra.mxu0 0
  %2526 = vmatprep.subr.bf16.mxu0 0
  %2527 = vmatpush1.bf16.msra.mxu0 0
  %2528 = vmatprep.subr.bf16.mxu0 0
  %2529 = vmatpush1.bf16.msra.mxu0 0
  %2530 = vmatprep.subr.bf16.mxu0 0
  %2531 = vmatpush1.bf16.msra.mxu0 0
  %2532 = vmatprep.subr.bf16.mxu0 0
  %2533 = vmatpush1.bf16.msra.mxu0 0
  %2534 = vmatprep.subr.bf16.mxu0 0
  %2535 = vmatpush1.bf16.msra.mxu0 0
  %2536 = vmatprep.subr.bf16.mxu0 0
  %2537 = vmatpush1.bf16.msra.mxu0 0
  %2538 = vmatprep.subr.bf16.mxu0 0
  %2539 = vmatpush1.bf16.msra.mxu0 0
  %2540 = vmatprep.subr.bf16.mxu0 0
  %2541 = vmatpush1.bf16.msra.mxu0 0
  %2542 = vmatprep.subr.bf16.mxu0 0
  %2543 = vmatpush1.bf16.msra.mxu0 0
  %2544 = vmatprep.subr.bf16.mxu0 0
  %2545 = vmatpush1.bf16.msra.mxu0 0
  %2546 = vmatprep.subr.bf16.mxu0 0
  %2547 = vmatpush1.bf16.msra.mxu0 0
  %2548 = vmatprep.subr.bf16.mxu0 0
  %2549 = vmatpush1.bf16.msra.mxu0 0
  %2550 = vmatprep.subr.bf16.mxu0 0
  %2551 = vmatpush1.bf16.msra.mxu0 0
  %2552 = vmatprep.mubr.bf16.mxu0 0
  %2553 = vmatmul.mubr.bf16.gmra.mrb[0].mxu0 %v413
  %v2554 = vpop.f32.mrb[0].mxu0
  %v2555 = vadd.f32 0.0, %v2554
  %v2556 = vpop.f32.mrb[0].mxu0
  %v2557 = vadd.f32 0.0, %v2556
  %v2558 = vpop.f32.mrb[0].mxu0
  %v2559 = vadd.f32 0.0, %v2558
  %v2560 = vpop.f32.mrb[0].mxu0
  %v2561 = vadd.f32 0.0, %v2560
  %2562 = vmatprep.mubr.bf16.mxu0 0
  %2563 = vmatmul.mubr.bf16.gmra.mrb[0].mxu0 %v416
  %v2564 = vpop.f32.mrb[0].mxu0
  %v2565 = vadd.f32 0.0, %v2564
  %v2566 = vpop.f32.mrb[0].mxu0
  %v2567 = vadd.f32 0.0, %v2566
  %v2568 = vpop.f32.mrb[0].mxu0
  %v2569 = vadd.f32 0.0, %v2568
  %v2570 = vpop.f32.mrb[0].mxu0
  %v2571 = vadd.f32 0.0, %v2570
  %2572 = vmatprep.mubr.bf16.mxu0 0
  %2573 = vmatmul.mubr.bf16.gmra.mrb[0].mxu0 %v419
  %v2574 = vpop.f32.mrb[0].mxu0
  %v2575 = vadd.f32 0.0, %v2574
  %v2576 = vpop.f32.mrb[0].mxu0
  %v2577 = vadd.f32 0.0, %v2576
  %v2578 = vpop.f32.mrb[0].mxu0
  %v2579 = vadd.f32 0.0, %v2578
  %v2580 = vpop.f32.mrb[0].mxu0
  %v2581 = vadd.f32 0.0, %v2580
  %2582 = vmatprep.mubr.bf16.mxu0 0
  %2583 = vmatmul.mubr.bf16.gmra.mrb[0].mxu0 %v422
  %v2584 = vpop.f32.mrb[0].mxu0
  %v2585 = vadd.f32 0.0, %v2584
  %v2586 = vpop.f32.mrb[0].mxu0
  %v2587 = vadd.f32 0.0, %v2586
  %v2588 = vpop.f32.mrb[0].mxu0
  %v2589 = vadd.f32 0.0, %v2588
  %v2590 = vpop.f32.mrb[0].mxu0
  %v2591 = vadd.f32 0.0, %v2590
  %2592 = vmatprep.mubr.bf16.mxu0 0
  %2593 = vmatmul.mubr.bf16.gmra.mrb[0].mxu0 %v425
  %v2594 = vpop.f32.mrb[0].mxu0
  %v2595 = vadd.f32 0.0, %v2594
  %v2596 = vpop.f32.mrb[0].mxu0
  %v2597 = vadd.f32 0.0, %v2596
  %v2598 = vpop.f32.mrb[0].mxu0
  %v2599 = vadd.f32 0.0, %v2598
  %v2600 = vpop.f32.mrb[0].mxu0
  %v2601 = vadd.f32 0.0, %v2600
  %2602 = vmatprep.mubr.bf16.mxu0 0
  %2603 = vmatmul.mubr.bf16.gmra.mrb[0].mxu0 %v931
  %v2604 = vpop.f32.mrb[0].mxu0
  %v2605 = vadd.f32 0.0, %v2604
  %v2606 = vpop.f32.mrb[0].mxu0
  %v2607 = vadd.f32 0.0, %v2606
  %v2608 = vpop.f32.mrb[0].mxu0
  %v2609 = vadd.f32 0.0, %v2608
  %v2610 = vpop.f32.mrb[0].mxu0
  %v2611 = vadd.f32 0.0, %v2610
  %2612 = vdwg.mxu0
  %2613 = vmatprep.subr.bf16.mxu0 %v404
  %2614 = vmatpush1.bf16.msra.mxu0 %v403
  %2615 = vmatprep.subr.bf16.mxu0 %v431
  %2616 = vmatpush1.bf16.msra.mxu0 %v428
  %2617 = vmatprep.subr.bf16.mxu0 0
  %2618 = vmatpush1.bf16.msra.mxu0 0
  %2619 = vmatprep.subr.bf16.mxu0 0
  %2620 = vmatpush1.bf16.msra.mxu0 0
  %2621 = vmatprep.subr.bf16.mxu0 0
  %2622 = vmatpush1.bf16.msra.mxu0 0
  %2623 = vmatprep.subr.bf16.mxu0 0
  %2624 = vmatpush1.bf16.msra.mxu0 0
  %2625 = vmatprep.subr.bf16.mxu0 0
  %2626 = vmatpush1.bf16.msra.mxu0 0
  %2627 = vmatprep.subr.bf16.mxu0 0
  %2628 = vmatpush1.bf16.msra.mxu0 0
  %2629 = vmatprep.subr.bf16.mxu0 0
  %2630 = vmatpush1.bf16.msra.mxu0 0
  %2631 = vmatprep.subr.bf16.mxu0 0
  %2632 = vmatpush1.bf16.msra.mxu0 0
  %2633 = vmatprep.subr.bf16.mxu0 0
  %2634 = vmatpush1.bf16.msra.mxu0 0
  %2635 = vmatprep.subr.bf16.mxu0 0
  %2636 = vmatpush1.bf16.msra.mxu0 0
  %2637 = vmatprep.subr.bf16.mxu0 0
  %2638 = vmatpush1.bf16.msra.mxu0 0
  %2639 = vmatprep.subr.bf16.mxu0 0
  %2640 = vmatpush1.bf16.msra.mxu0 0
  %2641 = vmatprep.subr.bf16.mxu0 0
  %2642 = vmatpush1.bf16.msra.mxu0 0
  %2643 = vmatprep.subr.bf16.mxu0 0
  %2644 = vmatpush1.bf16.msra.mxu0 0
  %2645 = vmatprep.mubr.bf16.mxu0 0
  %2646 = vmatmul.mubr.bf16.gmra.mrb[0].mxu0 %v767
  %v2647 = vpop.f32.mrb[0].mxu0
  %v2648 = vadd.f32 %v2555, %v2647
  %v2649 = vpop.f32.mrb[0].mxu0
  %v2650 = vadd.f32 %v2557, %v2649
  %v2651 = vpop.f32.mrb[0].mxu0
  %v2652 = vadd.f32 %v2559, %v2651
  %v2653 = vpop.f32.mrb[0].mxu0
  %v2654 = vadd.f32 %v2561, %v2653
  %2655 = vmatprep.mubr.bf16.mxu0 0
  %2656 = vmatmul.mubr.bf16.gmra.mrb[0].mxu0 %v770
  %v2657 = vpop.f32.mrb[0].mxu0
  %v2658 = vadd.f32 %v2565, %v2657
  %v2659 = vpop.f32.mrb[0].mxu0
  %v2660 = vadd.f32 %v2567, %v2659
  %v2661 = vpop.f32.mrb[0].mxu0
  %v2662 = vadd.f32 %v2569, %v2661
  %v2663 = vpop.f32.mrb[0].mxu0
  %v2664 = vadd.f32 %v2571, %v2663
  %2665 = vmatprep.mubr.bf16.mxu0 0
  %2666 = vmatmul.mubr.bf16.gmra.mrb[0].mxu0 %v773
  %v2667 = vpop.f32.mrb[0].mxu0
  %v2668 = vadd.f32 %v2575, %v2667
  %v2669 = vpop.f32.mrb[0].mxu0
  %v2670 = vadd.f32 %v2577, %v2669
  %v2671 = vpop.f32.mrb[0].mxu0
  %v2672 = vadd.f32 %v2579, %v2671
  %v2673 = vpop.f32.mrb[0].mxu0
  %v2674 = vadd.f32 %v2581, %v2673
  %2675 = vmatprep.mubr.bf16.mxu0 0
  %2676 = vmatmul.mubr.bf16.gmra.mrb[0].mxu0 %v776
  %v2677 = vpop.f32.mrb[0].mxu0
  %v2678 = vadd.f32 %v2585, %v2677
  %v2679 = vpop.f32.mrb[0].mxu0
  %v2680 = vadd.f32 %v2587, %v2679
  %v2681 = vpop.f32.mrb[0].mxu0
  %v2682 = vadd.f32 %v2589, %v2681
  %v2683 = vpop.f32.mrb[0].mxu0
  %v2684 = vadd.f32 %v2591, %v2683
  %2685 = vmatprep.mubr.bf16.mxu0 0
  %2686 = vmatmul.mubr.bf16.gmra.mrb[0].mxu0 %v779
  %v2687 = vpop.f32.mrb[0].mxu0
  %v2688 = vadd.f32 %v2595, %v2687
  %v2689 = vpop.f32.mrb[0].mxu0
  %v2690 = vadd.f32 %v2597, %v2689
  %v2691 = vpop.f32.mrb[0].mxu0
  %v2692 = vadd.f32 %v2599, %v2691
  %v2693 = vpop.f32.mrb[0].mxu0
  %v2694 = vadd.f32 %v2601, %v2693
  %2695 = vmatprep.mubr.bf16.mxu0 0
  %2696 = vmatmul.mubr.bf16.gmra.mrb[0].mxu0 %v782
  %v2697 = vpop.f32.mrb[0].mxu0
  %v2698 = vadd.f32 %v2605, %v2697
  %v2699 = vpop.f32.mrb[0].mxu0
  %v2700 = vadd.f32 %v2607, %v2699
  %v2701 = vpop.f32.mrb[0].mxu0
  %v2702 = vadd.f32 %v2609, %v2701
  %v2703 = vpop.f32.mrb[0].mxu0
  %v2704 = vadd.f32 %v2611, %v2703
  %2705 = vdwg.mxu0
  %2706 = vmatprep.subr.bf16.mxu0 %v569
  %2707 = vmatpush1.bf16.msra.mxu0 %v568
  %2708 = vmatprep.subr.bf16.mxu0 %v596
  %2709 = vmatpush1.bf16.msra.mxu0 %v593
  %2710 = vmatprep.subr.bf16.mxu0 0
  %2711 = vmatpush1.bf16.msra.mxu0 0
  %2712 = vmatprep.subr.bf16.mxu0 0
  %2713 = vmatpush1.bf16.msra.mxu0 0
  %2714 = vmatprep.subr.bf16.mxu0 0
  %2715 = vmatpush1.bf16.msra.mxu0 0
  %2716 = vmatprep.subr.bf16.mxu0 0
  %2717 = vmatpush1.bf16.msra.mxu0 0
  %2718 = vmatprep.subr.bf16.mxu0 0
  %2719 = vmatpush1.bf16.msra.mxu0 0
  %2720 = vmatprep.subr.bf16.mxu0 0
  %2721 = vmatpush1.bf16.msra.mxu0 0
  %2722 = vmatprep.subr.bf16.mxu0 0
  %2723 = vmatpush1.bf16.msra.mxu0 0
  %2724 = vmatprep.subr.bf16.mxu0 0
  %2725 = vmatpush1.bf16.msra.mxu0 0
  %2726 = vmatprep.subr.bf16.mxu0 0
  %2727 = vmatpush1.bf16.msra.mxu0 0
  %2728 = vmatprep.subr.bf16.mxu0 0
  %2729 = vmatpush1.bf16.msra.mxu0 0
  %2730 = vmatprep.subr.bf16.mxu0 0
  %2731 = vmatpush1.bf16.msra.mxu0 0
  %2732 = vmatprep.subr.bf16.mxu0 0
  %2733 = vmatpush1.bf16.msra.mxu0 0
  %2734 = vmatprep.subr.bf16.mxu0 0
  %2735 = vmatpush1.bf16.msra.mxu0 0
  %2736 = vmatprep.subr.bf16.mxu0 0
  %2737 = vmatpush1.bf16.msra.mxu0 0
  %2738 = vmatprep.mubr.bf16.mxu0 0
  %2739 = vmatmul.mubr.bf16.gmra.mrb[0].mxu0 %v250
  %v2740 = vpop.f32.mrb[0].mxu0
  %v2741 = vadd.f32 0.0, %v2740
  %v2742 = vpop.f32.mrb[0].mxu0
  %v2743 = vadd.f32 0.0, %v2742
  %v2744 = vpop.f32.mrb[0].mxu0
  %v2745 = vadd.f32 0.0, %v2744
  %v2746 = vpop.f32.mrb[0].mxu0
  %v2747 = vadd.f32 0.0, %v2746
  %2748 = vmatprep.mubr.bf16.mxu0 0
  %2749 = vmatmul.mubr.bf16.gmra.mrb[0].mxu0 %v253
  %v2750 = vpop.f32.mrb[0].mxu0
  %v2751 = vadd.f32 0.0, %v2750
  %v2752 = vpop.f32.mrb[0].mxu0
  %v2753 = vadd.f32 0.0, %v2752
  %v2754 = vpop.f32.mrb[0].mxu0
  %v2755 = vadd.f32 0.0, %v2754
  %v2756 = vpop.f32.mrb[0].mxu0
  %v2757 = vadd.f32 0.0, %v2756
  %2758 = vmatprep.mubr.bf16.mxu0 0
  %2759 = vmatmul.mubr.bf16.gmra.mrb[0].mxu0 %v256
  %v2760 = vpop.f32.mrb[0].mxu0
  %v2761 = vadd.f32 0.0, %v2760
  %v2762 = vpop.f32.mrb[0].mxu0
  %v2763 = vadd.f32 0.0, %v2762
  %v2764 = vpop.f32.mrb[0].mxu0
  %v2765 = vadd.f32 0.0, %v2764
  %v2766 = vpop.f32.mrb[0].mxu0
  %v2767 = vadd.f32 0.0, %v2766
  %2768 = vmatprep.mubr.bf16.mxu0 0
  %2769 = vmatmul.mubr.bf16.gmra.mrb[0].mxu0 %v259
  %v2770 = vpop.f32.mrb[0].mxu0
  %v2771 = vadd.f32 0.0, %v2770
  %v2772 = vpop.f32.mrb[0].mxu0
  %v2773 = vadd.f32 0.0, %v2772
  %v2774 = vpop.f32.mrb[0].mxu0
  %v2775 = vadd.f32 0.0, %v2774
  %v2776 = vpop.f32.mrb[0].mxu0
  %v2777 = vadd.f32 0.0, %v2776
  %2778 = vmatprep.mubr.bf16.mxu0 0
  %2779 = vmatmul.mubr.bf16.gmra.mrb[0].mxu0 %v262
  %v2780 = vpop.f32.mrb[0].mxu0
  %v2781 = vadd.f32 0.0, %v2780
  %v2782 = vpop.f32.mrb[0].mxu0
  %v2783 = vadd.f32 0.0, %v2782
  %v2784 = vpop.f32.mrb[0].mxu0
  %v2785 = vadd.f32 0.0, %v2784
  %v2786 = vpop.f32.mrb[0].mxu0
  %v2787 = vadd.f32 0.0, %v2786
  %2788 = vmatprep.mubr.bf16.mxu0 0
  %2789 = vmatmul.mubr.bf16.gmra.mrb[0].mxu0 %v1591
  %v2790 = vpop.f32.mrb[0].mxu0
  %v2791 = vadd.f32 0.0, %v2790
  %v2792 = vpop.f32.mrb[0].mxu0
  %v2793 = vadd.f32 0.0, %v2792
  %v2794 = vpop.f32.mrb[0].mxu0
  %v2795 = vadd.f32 0.0, %v2794
  %v2796 = vpop.f32.mrb[0].mxu0
  %v2797 = vadd.f32 0.0, %v2796
  %2798 = vdwg.mxu0
  %v2799 = vadd.f32 %v2648, %v2741
  %v2800 = vadd.f32 %v2650, %v2743
  %v2801 = vadd.f32 %v2652, %v2745
  %v2802 = vadd.f32 %v2654, %v2747
  %v2803 = vadd.f32 %v2658, %v2751
  %v2804 = vadd.f32 %v2660, %v2753
  %v2805 = vadd.f32 %v2662, %v2755
  %v2806 = vadd.f32 %v2664, %v2757
  %v2807 = vadd.f32 %v2668, %v2761
  %v2808 = vadd.f32 %v2670, %v2763
  %v2809 = vadd.f32 %v2672, %v2765
  %v2810 = vadd.f32 %v2674, %v2767
  %v2811 = vadd.f32 %v2678, %v2771
  %v2812 = vadd.f32 %v2680, %v2773
  %v2813 = vadd.f32 %v2682, %v2775
  %v2814 = vadd.f32 %v2684, %v2777
  %v2815 = vadd.f32 %v2688, %v2781
  %v2816 = vadd.f32 %v2690, %v2783
  %v2817 = vadd.f32 %v2692, %v2785
  %v2818 = vadd.f32 %v2694, %v2787
  %v2819 = vadd.f32 %v2698, %v2791
  %v2820 = vadd.f32 %v2700, %v2793
  %v2821 = vadd.f32 %v2702, %v2795
  %v2822 = vadd.f32 %v2704, %v2797
  %2823 = vmatprep.subr.bf16.mxu0 %v763
  %2824 = vmatpush1.bf16.msra.mxu0 %v760
  %2825 = vmatprep.subr.bf16.mxu0 %v788
  %2826 = vmatpush1.bf16.msra.mxu0 %v785
  %2827 = vmatprep.subr.bf16.mxu0 0
  %2828 = vmatpush1.bf16.msra.mxu0 0
  %2829 = vmatprep.subr.bf16.mxu0 0
  %2830 = vmatpush1.bf16.msra.mxu0 0
  %2831 = vmatprep.subr.bf16.mxu0 0
  %2832 = vmatpush1.bf16.msra.mxu0 0
  %2833 = vmatprep.subr.bf16.mxu0 0
  %2834 = vmatpush1.bf16.msra.mxu0 0
  %2835 = vmatprep.subr.bf16.mxu0 0
  %2836 = vmatpush1.bf16.msra.mxu0 0
  %2837 = vmatprep.subr.bf16.mxu0 0
  %2838 = vmatpush1.bf16.msra.mxu0 0
  %2839 = vmatprep.subr.bf16.mxu0 0
  %2840 = vmatpush1.bf16.msra.mxu0 0
  %2841 = vmatprep.subr.bf16.mxu0 0
  %2842 = vmatpush1.bf16.msra.mxu0 0
  %2843 = vmatprep.subr.bf16.mxu0 0
  %2844 = vmatpush1.bf16.msra.mxu0 0
  %2845 = vmatprep.subr.bf16.mxu0 0
  %2846 = vmatpush1.bf16.msra.mxu0 0
  %2847 = vmatprep.subr.bf16.mxu0 0
  %2848 = vmatpush1.bf16.msra.mxu0 0
  %2849 = vmatprep.subr.bf16.mxu0 0
  %2850 = vmatpush1.bf16.msra.mxu0 0
  %2851 = vmatprep.subr.bf16.mxu0 0
  %2852 = vmatpush1.bf16.msra.mxu0 0
  %2853 = vmatprep.subr.bf16.mxu0 0
  %2854 = vmatpush1.bf16.msra.mxu0 0
  %2855 = vmatprep.mubr.bf16.mxu0 0
  %2856 = vmatmul.mubr.bf16.gmra.mrb[0].mxu0 %v578
  %v2857 = vpop.f32.mrb[0].mxu0
  %v2858 = vadd.f32 0.0, %v2857
  %v2859 = vpop.f32.mrb[0].mxu0
  %v2860 = vadd.f32 0.0, %v2859
  %v2861 = vpop.f32.mrb[0].mxu0
  %v2862 = vadd.f32 0.0, %v2861
  %v2863 = vpop.f32.mrb[0].mxu0
  %v2864 = vadd.f32 0.0, %v2863
  %2865 = vmatprep.mubr.bf16.mxu0 0
  %2866 = vmatmul.mubr.bf16.gmra.mrb[0].mxu0 %v581
  %v2867 = vpop.f32.mrb[0].mxu0
  %v2868 = vadd.f32 0.0, %v2867
  %v2869 = vpop.f32.mrb[0].mxu0
  %v2870 = vadd.f32 0.0, %v2869
  %v2871 = vpop.f32.mrb[0].mxu0
  %v2872 = vadd.f32 0.0, %v2871
  %v2873 = vpop.f32.mrb[0].mxu0
  %v2874 = vadd.f32 0.0, %v2873
  %2875 = vmatprep.mubr.bf16.mxu0 0
  %2876 = vmatmul.mubr.bf16.gmra.mrb[0].mxu0 %v584
  %v2877 = vpop.f32.mrb[0].mxu0
  %v2878 = vadd.f32 0.0, %v2877
  %v2879 = vpop.f32.mrb[0].mxu0
  %v2880 = vadd.f32 0.0, %v2879
  %v2881 = vpop.f32.mrb[0].mxu0
  %v2882 = vadd.f32 0.0, %v2881
  %v2883 = vpop.f32.mrb[0].mxu0
  %v2884 = vadd.f32 0.0, %v2883
  %2885 = vmatprep.mubr.bf16.mxu0 0
  %2886 = vmatmul.mubr.bf16.gmra.mrb[0].mxu0 %v587
  %v2887 = vpop.f32.mrb[0].mxu0
  %v2888 = vadd.f32 0.0, %v2887
  %v2889 = vpop.f32.mrb[0].mxu0
  %v2890 = vadd.f32 0.0, %v2889
  %v2891 = vpop.f32.mrb[0].mxu0
  %v2892 = vadd.f32 0.0, %v2891
  %v2893 = vpop.f32.mrb[0].mxu0
  %v2894 = vadd.f32 0.0, %v2893
  %2895 = vmatprep.mubr.bf16.mxu0 0
  %2896 = vmatmul.mubr.bf16.gmra.mrb[0].mxu0 %v590
  %v2897 = vpop.f32.mrb[0].mxu0
  %v2898 = vadd.f32 0.0, %v2897
  %v2899 = vpop.f32.mrb[0].mxu0
  %v2900 = vadd.f32 0.0, %v2899
  %v2901 = vpop.f32.mrb[0].mxu0
  %v2902 = vadd.f32 0.0, %v2901
  %v2903 = vpop.f32.mrb[0].mxu0
  %v2904 = vadd.f32 0.0, %v2903
  %2905 = vmatprep.mubr.bf16.mxu0 0
  %2906 = vmatmul.mubr.bf16.gmra.mrb[0].mxu0 %v2293
  %v2907 = vpop.f32.mrb[0].mxu0
  %v2908 = vadd.f32 0.0, %v2907
  %v2909 = vpop.f32.mrb[0].mxu0
  %v2910 = vadd.f32 0.0, %v2909
  %v2911 = vpop.f32.mrb[0].mxu0
  %v2912 = vadd.f32 0.0, %v2911
  %v2913 = vpop.f32.mrb[0].mxu0
  %v2914 = vadd.f32 0.0, %v2913
  %2915 = vdwg.mxu0
  %v2916 = vadd.f32 %v2799, %v2858
  %v2917 = vadd.f32 %v2800, %v2860
  %v2918 = vadd.f32 %v2801, %v2862
  %v2919 = vadd.f32 %v2802, %v2864
  %v2920 = vadd.f32 %v2803, %v2868
  %v2921 = vadd.f32 %v2804, %v2870
  %v2922 = vadd.f32 %v2805, %v2872
  %v2923 = vadd.f32 %v2806, %v2874
  %v2924 = vadd.f32 %v2807, %v2878
  %v2925 = vadd.f32 %v2808, %v2880
  %v2926 = vadd.f32 %v2809, %v2882
  %v2927 = vadd.f32 %v2810, %v2884
  %v2928 = vadd.f32 %v2811, %v2888
  %v2929 = vadd.f32 %v2812, %v2890
  %v2930 = vadd.f32 %v2813, %v2892
  %v2931 = vadd.f32 %v2814, %v2894
  %v2932 = vadd.f32 %v2815, %v2898
  %v2933 = vadd.f32 %v2816, %v2900
  %v2934 = vadd.f32 %v2817, %v2902
  %v2935 = vadd.f32 %v2818, %v2904
  %v2936 = vadd.f32 %v2819, %v2908
  %v2937 = vadd.f32 %v2820, %v2910
  %v2938 = vadd.f32 %v2821, %v2912
  %v2939 = vadd.f32 %v2822, %v2914
  %v2942 = vunpack.c.l.b16 %v93
  %v2943 = vunpack.c.l.b16 %v94
  %v2944 = vpack.c.b16 %v2943, %v2942
  %v2946 = vsel %vm245, %v2944, 0
  %2948 = vmatprep.subr.bf16.mxu0 %v925
  %2949 = vmatpush1.bf16.msra.mxu0 %v924
  %2950 = vmatprep.subr.bf16.mxu0 %v937
  %2951 = vmatpush1.bf16.msra.mxu0 %v934
  %2952 = vmatprep.subr.bf16.mxu0 0
  %2953 = vmatpush1.bf16.msra.mxu0 0
  %2954 = vmatprep.subr.bf16.mxu0 0
  %2955 = vmatpush1.bf16.msra.mxu0 0
  %2956 = vmatprep.subr.bf16.mxu0 0
  %2957 = vmatpush1.bf16.msra.mxu0 0
  %2958 = vmatprep.subr.bf16.mxu0 0
  %2959 = vmatpush1.bf16.msra.mxu0 0
  %2960 = vmatprep.subr.bf16.mxu0 0
  %2961 = vmatpush1.bf16.msra.mxu0 0
  %2962 = vmatprep.subr.bf16.mxu0 0
  %2963 = vmatpush1.bf16.msra.mxu0 0
  %2964 = vmatprep.subr.bf16.mxu0 0
  %2965 = vmatpush1.bf16.msra.mxu0 0
  %2966 = vmatprep.subr.bf16.mxu0 0
  %2967 = vmatpush1.bf16.msra.mxu0 0
  %2968 = vmatprep.subr.bf16.mxu0 0
  %2969 = vmatpush1.bf16.msra.mxu0 0
  %2970 = vmatprep.subr.bf16.mxu0 0
  %2971 = vmatpush1.bf16.msra.mxu0 0
  %2972 = vmatprep.subr.bf16.mxu0 0
  %2973 = vmatpush1.bf16.msra.mxu0 0
  %2974 = vmatprep.subr.bf16.mxu0 0
  %2975 = vmatpush1.bf16.msra.mxu0 0
  %2976 = vmatprep.subr.bf16.mxu0 0
  %2977 = vmatpush1.bf16.msra.mxu0 0
  %2978 = vmatprep.subr.bf16.mxu0 0
  %2979 = vmatpush1.bf16.msra.mxu0 0
  %2980 = vmatprep.mubr.bf16.mxu0 0
  %2981 = vmatmul.mubr.bf16.gmra.mrb[0].mxu0 %v770
  %v2982 = vpop.f32.mrb[0].mxu0
  %v2983 = vadd.f32 0.0, %v2982
  %v2984 = vpop.f32.mrb[0].mxu0
  %v2985 = vadd.f32 0.0, %v2984
  %v2986 = vpop.f32.mrb[0].mxu0
  %v2987 = vadd.f32 0.0, %v2986
  %v2988 = vpop.f32.mrb[0].mxu0
  %v2989 = vadd.f32 0.0, %v2988
  %2990 = vmatprep.mubr.bf16.mxu0 0
  %2991 = vmatmul.mubr.bf16.gmra.mrb[0].mxu0 %v773
  %v2992 = vpop.f32.mrb[0].mxu0
  %v2993 = vadd.f32 0.0, %v2992
  %v2994 = vpop.f32.mrb[0].mxu0
  %v2995 = vadd.f32 0.0, %v2994
  %v2996 = vpop.f32.mrb[0].mxu0
  %v2997 = vadd.f32 0.0, %v2996
  %v2998 = vpop.f32.mrb[0].mxu0
  %v2999 = vadd.f32 0.0, %v2998
  %3000 = vmatprep.mubr.bf16.mxu0 0
  %3001 = vmatmul.mubr.bf16.gmra.mrb[0].mxu0 %v776
  %v3002 = vpop.f32.mrb[0].mxu0
  %v3003 = vadd.f32 0.0, %v3002
  %v3004 = vpop.f32.mrb[0].mxu0
  %v3005 = vadd.f32 0.0, %v3004
  %v3006 = vpop.f32.mrb[0].mxu0
  %v3007 = vadd.f32 0.0, %v3006
  %v3008 = vpop.f32.mrb[0].mxu0
  %v3009 = vadd.f32 0.0, %v3008
  %3010 = vmatprep.mubr.bf16.mxu0 0
  %3011 = vmatmul.mubr.bf16.gmra.mrb[0].mxu0 %v779
  %v3012 = vpop.f32.mrb[0].mxu0
  %v3013 = vadd.f32 0.0, %v3012
  %v3014 = vpop.f32.mrb[0].mxu0
  %v3015 = vadd.f32 0.0, %v3014
  %v3016 = vpop.f32.mrb[0].mxu0
  %v3017 = vadd.f32 0.0, %v3016
  %v3018 = vpop.f32.mrb[0].mxu0
  %v3019 = vadd.f32 0.0, %v3018
  %3020 = vmatprep.mubr.bf16.mxu0 0
  %3021 = vmatmul.mubr.bf16.gmra.mrb[0].mxu0 %v782
  %v3022 = vpop.f32.mrb[0].mxu0
  %v3023 = vadd.f32 0.0, %v3022
  %v3024 = vpop.f32.mrb[0].mxu0
  %v3025 = vadd.f32 0.0, %v3024
  %v3026 = vpop.f32.mrb[0].mxu0
  %v3027 = vadd.f32 0.0, %v3026
  %v3028 = vpop.f32.mrb[0].mxu0
  %v3029 = vadd.f32 0.0, %v3028
  %3030 = vmatprep.mubr.bf16.mxu0 0
  %3031 = vmatmul.mubr.bf16.gmra.mrb[0].mxu0 %v2946
  %v3032 = vpop.f32.mrb[0].mxu0
  %v3033 = vadd.f32 0.0, %v3032
  %v3034 = vpop.f32.mrb[0].mxu0
  %v3035 = vadd.f32 0.0, %v3034
  %v3036 = vpop.f32.mrb[0].mxu0
  %v3037 = vadd.f32 0.0, %v3036
  %v3038 = vpop.f32.mrb[0].mxu0
  %v3039 = vadd.f32 0.0, %v3038
  %3040 = vdwg.mxu0
  %v3041 = vadd.f32 %v2916, %v2983
  %v3042 = vadd.f32 %v2917, %v2985
  %v3043 = vadd.f32 %v2918, %v2987
  %v3044 = vadd.f32 %v2919, %v2989
  %v3045 = vadd.f32 %v2920, %v2993
  %v3046 = vadd.f32 %v2921, %v2995
  %v3047 = vadd.f32 %v2922, %v2997
  %v3048 = vadd.f32 %v2923, %v2999
  %v3049 = vadd.f32 %v2924, %v3003
  %v3050 = vadd.f32 %v2925, %v3005
  %v3051 = vadd.f32 %v2926, %v3007
  %v3052 = vadd.f32 %v2927, %v3009
  %v3053 = vadd.f32 %v2928, %v3013
  %v3054 = vadd.f32 %v2929, %v3015
  %v3055 = vadd.f32 %v2930, %v3017
  %v3056 = vadd.f32 %v2931, %v3019
  %v3057 = vadd.f32 %v2932, %v3023
  %v3058 = vadd.f32 %v2933, %v3025
  %v3059 = vadd.f32 %v2934, %v3027
  %v3060 = vadd.f32 %v2935, %v3029
  %v3061 = vadd.f32 %v2936, %v3033
  %v3062 = vadd.f32 %v2937, %v3035
  %v3063 = vadd.f32 %v2938, %v3037
  %v3064 = vadd.f32 %v2939, %v3039
  %3089 = vrot.lane.b32.xlu0 %v3041, 56
  %v3090 = vpop.permute.xlu0 %3089
  %3091 = vrot.lane.b32.xlu0 %v3042, 56
  %v3092 = vpop.permute.xlu0 %3091
  %3093 = vrot.lane.b32.xlu0 %v3043, 56
  %v3094 = vpop.permute.xlu0 %3093
  %3095 = vrot.lane.b32.xlu0 %v3044, 56
  %v3096 = vpop.permute.xlu0 %3095
  %3097 = vrot.lane.b32.xlu0 %v3045, 56
  %v3098 = vpop.permute.xlu0 %3097
  %3099 = vrot.lane.b32.xlu0 %v3046, 56
  %v3100 = vpop.permute.xlu0 %3099
  %3101 = vrot.lane.b32.xlu0 %v3047, 56
  %v3102 = vpop.permute.xlu0 %3101
  %3103 = vrot.lane.b32.xlu0 %v3048, 56
  %v3104 = vpop.permute.xlu0 %3103
  %3105 = vrot.lane.b32.xlu0 %v3049, 56
  %v3106 = vpop.permute.xlu0 %3105
  %3107 = vrot.lane.b32.xlu0 %v3050, 56
  %v3108 = vpop.permute.xlu0 %3107
  %3109 = vrot.lane.b32.xlu0 %v3051, 56
  %v3110 = vpop.permute.xlu0 %3109
  %3111 = vrot.lane.b32.xlu0 %v3052, 56
  %v3112 = vpop.permute.xlu0 %3111
  %3113 = vrot.lane.b32.xlu0 %v3053, 56
  %v3114 = vpop.permute.xlu0 %3113
  %3115 = vrot.lane.b32.xlu0 %v3054, 56
  %v3116 = vpop.permute.xlu0 %3115
  %3117 = vrot.lane.b32.xlu0 %v3055, 56
  %v3118 = vpop.permute.xlu0 %3117
  %3119 = vrot.lane.b32.xlu0 %v3056, 56
  %v3120 = vpop.permute.xlu0 %3119
  %3121 = vrot.lane.b32.xlu0 %v3057, 56
  %v3122 = vpop.permute.xlu0 %3121
  %3123 = vrot.lane.b32.xlu0 %v3058, 56
  %v3124 = vpop.permute.xlu0 %3123
  %3125 = vrot.lane.b32.xlu0 %v3059, 56
  %v3126 = vpop.permute.xlu0 %3125
  %3127 = vrot.lane.b32.xlu0 %v3060, 56
  %v3128 = vpop.permute.xlu0 %3127
  %3129 = vrot.lane.b32.xlu0 %v3061, 56
  %v3130 = vpop.permute.xlu0 %3129
  %3131 = vrot.lane.b32.xlu0 %v3062, 56
  %v3132 = vpop.permute.xlu0 %3131
  %3133 = vrot.lane.b32.xlu0 %v3063, 56
  %v3134 = vpop.permute.xlu0 %3133
  %3135 = vrot.lane.b32.xlu0 %v3064, 56
  %v3136 = vpop.permute.xlu0 %3135
  %v3137 = vsel %vm1128, %v3090, %v3092
  %v3138 = vsel %vm1128, %v3094, %v3096
  %v3139 = vsel %vm1128, %v3098, %v3100
  %v3140 = vsel %vm1128, %v3102, %v3104
  %v3141 = vsel %vm1128, %v3106, %v3108
  %v3142 = vsel %vm1128, %v3110, %v3112
  %v3143 = vsel %vm1128, %v3114, %v3116
  %v3144 = vsel %vm1128, %v3118, %v3120
  %v3145 = vsel %vm1128, %v3122, %v3124
  %v3146 = vsel %vm1128, %v3126, %v3128
  %v3147 = vsel %vm1128, %v3130, %v3132
  %v3148 = vsel %vm1128, %v3134, %v3136
  %v3161 = vmax.f32 %v3041, %v3137
  %v3162 = vmax.f32 %v3043, %v3138
  %v3163 = vmax.f32 %v3045, %v3139
  %v3164 = vmax.f32 %v3047, %v3140
  %v3165 = vmax.f32 %v3049, %v3141
  %v3166 = vmax.f32 %v3051, %v3142
  %v3167 = vmax.f32 %v3053, %v3143
  %v3168 = vmax.f32 %v3055, %v3144
  %v3169 = vmax.f32 %v3057, %v3145
  %v3170 = vmax.f32 %v3059, %v3146
  %v3171 = vmax.f32 %v3061, %v3147
  %v3172 = vmax.f32 %v3063, %v3148
  %v3173 = vmax.f32 %v2508, %v3161
  %v3174 = vmax.f32 %v2509, %v3162
  %v3175 = vmax.f32 %v2510, %v3163
  %v3176 = vmax.f32 %v2511, %v3164
  %v3177 = vmax.f32 %v2512, %v3165
  %v3178 = vmax.f32 %v2513, %v3166
  %v3179 = vmax.f32 %v2514, %v3167
  %v3180 = vmax.f32 %v2515, %v3168
  %v3181 = vmax.f32 %v2516, %v3169
  %v3182 = vmax.f32 %v2517, %v3170
  %v3183 = vmax.f32 %v2518, %v3171
  %v3184 = vmax.f32 %v2519, %v3172
  %v3185 = vadd.f32 %v3173, %v1835
  %v3186 = vadd.f32 %v3174, %v1835
  %v3187 = vadd.f32 %v3175, %v1835
  %v3188 = vadd.f32 %v3176, %v1835
  %v3189 = vadd.f32 %v3177, %v1835
  %v3190 = vadd.f32 %v3178, %v1835
  %v3191 = vadd.f32 %v3179, %v1835
  %v3192 = vadd.f32 %v3180, %v1835
  %v3193 = vadd.f32 %v3181, %v1835
  %v3194 = vadd.f32 %v3182, %v1835
  %v3195 = vadd.f32 %v3183, %v1835
  %v3196 = vadd.f32 %v3184, %v1835
  %v3197 = vmax.f32 %v3185, 0.0
  %v3198 = vmax.f32 %v3186, 0.0
  %v3199 = vmax.f32 %v3187, 0.0
  %v3200 = vmax.f32 %v3188, 0.0
  %v3201 = vmax.f32 %v3189, 0.0
  %v3202 = vmax.f32 %v3190, 0.0
  %v3203 = vmax.f32 %v3191, 0.0
  %v3204 = vmax.f32 %v3192, 0.0
  %v3205 = vmax.f32 %v3193, 0.0
  %v3206 = vmax.f32 %v3194, 0.0
  %v3207 = vmax.f32 %v3195, 0.0
  %v3208 = vmax.f32 %v3196, 0.0
  %v3209 = vpack.c.bf16 %v3198, %v3197
  %v3210 = vpack.c.bf16 %v3200, %v3199
  %v3211 = vpack.c.bf16 %v3202, %v3201
  %v3212 = vpack.c.bf16 %v3204, %v3203
  %v3213 = vpack.c.bf16 %v3206, %v3205
  %v3214 = vpack.c.bf16 %v3208, %v3207
  %v3224 = vunpack.c.l.b16 %v122
  %v3225 = vunpack.c.l.b16 %v123
  %v3226 = vunpack.c.l.b16 %v124
  %v3227 = vunpack.c.l.b16 %v125
  %v3228 = vunpack.c.l.b16 %v126
  %v3229 = vunpack.c.l.b16 %v127
  %v3230 = vunpack.c.l.b16 %v128
  %v3231 = vunpack.c.l.b16 %v129
  %v3232 = vunpack.c.l.b16 %v130
  %v3233 = vpack.c.b16 %v3225, %v3224
  %v3234 = vpack.c.b16 %v3227, %v3226
  %v3235 = vpack.c.b16 %v3229, %v3228
  %v3236 = vpack.c.b16 %v3231, %v3230
  %v3237 = vpack.c.b16 %v3232, %v3232
  %vm3242 = vcmask 588800
  %v3244 = vsel %vm3242, %v3209, 0
  %v3247 = vsel %vm3242, %v3210, 0
  %v3250 = vsel %vm3242, %v3211, 0
  %v3253 = vsel %vm3242, %v3212, 0
  %vm3255 = vcmask 1043456
  %v3257 = vsel %vm3255, %v3237, 0
  %3259 = vmatprep.subr.bf16.mxu0 0
  %3260 = vmatpush1.bf16.msra.mxu0 %v3233
  %3261 = vmatprep.subr.bf16.mxu0 0
  %3262 = vmatpush1.bf16.msra.mxu0 %v3234
  %3263 = vmatprep.subr.bf16.mxu0 0
  %3264 = vmatpush1.bf16.msra.mxu0 %v3235
  %3265 = vmatprep.subr.bf16.mxu0 0
  %3266 = vmatpush1.bf16.msra.mxu0 %v3236
  %3267 = vmatprep.subr.bf16.mxu0 0
  %3268 = vmatpush1.bf16.msra.mxu0 %v3257
  %3269 = vmatprep.subr.bf16.mxu0 0
  %3270 = vmatpush1.bf16.msra.mxu0 0
  %3271 = vmatprep.subr.bf16.mxu0 0
  %3272 = vmatpush1.bf16.msra.mxu0 0
  %3273 = vmatprep.subr.bf16.mxu0 0
  %3274 = vmatpush1.bf16.msra.mxu0 0
  %3275 = vmatprep.subr.bf16.mxu0 0
  %3276 = vmatpush1.bf16.msra.mxu0 0
  %3277 = vmatprep.subr.bf16.mxu0 0
  %3278 = vmatpush1.bf16.msra.mxu0 0
  %3279 = vmatprep.subr.bf16.mxu0 0
  %3280 = vmatpush1.bf16.msra.mxu0 0
  %3281 = vmatprep.subr.bf16.mxu0 0
  %3282 = vmatpush1.bf16.msra.mxu0 0
  %3283 = vmatprep.subr.bf16.mxu0 0
  %3284 = vmatpush1.bf16.msra.mxu0 0
  %3285 = vmatprep.subr.bf16.mxu0 0
  %3286 = vmatpush1.bf16.msra.mxu0 0
  %3287 = vmatprep.subr.bf16.mxu0 0
  %3288 = vmatpush1.bf16.msra.mxu0 0
  %3289 = vmatprep.subr.bf16.mxu0 0
  %3290 = vmatpush1.bf16.msra.mxu0 0
  %3291 = vmatprep.mubr.bf16.mxu0 0
  %3292 = vmatmul.mubr.bf16.gmra.mrb[0].mxu0 %v3244
  %v3293 = vpop.f32.mrb[0].mxu0
  %v3294 = vadd.f32 0.0, %v3293
  %v3295 = vpop.f32.mrb[0].mxu0
  %v3296 = vpop.f32.mrb[0].mxu0
  %v3297 = vadd.f32 0.0, %v3296
  %v3298 = vpop.f32.mrb[0].mxu0
  %3299 = vmatprep.mubr.bf16.mxu0 0
  %3300 = vmatmul.mubr.bf16.gmra.mrb[0].mxu0 %v3247
  %v3301 = vpop.f32.mrb[0].mxu0
  %v3302 = vadd.f32 0.0, %v3301
  %v3303 = vpop.f32.mrb[0].mxu0
  %v3304 = vpop.f32.mrb[0].mxu0
  %v3305 = vadd.f32 0.0, %v3304
  %v3306 = vpop.f32.mrb[0].mxu0
  %3307 = vmatprep.mubr.bf16.mxu0 0
  %3308 = vmatmul.mubr.bf16.gmra.mrb[0].mxu0 %v3250
  %v3309 = vpop.f32.mrb[0].mxu0
  %v3310 = vadd.f32 0.0, %v3309
  %v3311 = vpop.f32.mrb[0].mxu0
  %v3312 = vpop.f32.mrb[0].mxu0
  %v3313 = vadd.f32 0.0, %v3312
  %v3314 = vpop.f32.mrb[0].mxu0
  %3315 = vmatprep.mubr.bf16.mxu0 0
  %3316 = vmatmul.mubr.bf16.gmra.mrb[0].mxu0 %v3253
  %v3317 = vpop.f32.mrb[0].mxu0
  %v3318 = vadd.f32 0.0, %v3317
  %v3319 = vpop.f32.mrb[0].mxu0
  %v3320 = vpop.f32.mrb[0].mxu0
  %v3321 = vadd.f32 0.0, %v3320
  %v3322 = vpop.f32.mrb[0].mxu0
  %3323 = vdwg.mxu0
  %v3333 = vunpack.c.l.b16 %v113
  %v3334 = vunpack.c.l.b16 %v114
  %v3335 = vunpack.c.l.b16 %v115
  %v3336 = vunpack.c.l.b16 %v116
  %v3337 = vunpack.c.l.b16 %v117
  %v3338 = vunpack.c.l.b16 %v118
  %v3339 = vunpack.c.l.b16 %v119
  %v3340 = vunpack.c.l.b16 %v120
  %v3341 = vunpack.c.l.b16 %v121
  %v3342 = vpack.c.b16 %v3334, %v3333
  %v3343 = vpack.c.b16 %v3336, %v3335
  %v3344 = vpack.c.b16 %v3338, %v3337
  %v3345 = vpack.c.b16 %v3340, %v3339
  %v3346 = vpack.c.b16 %v3341, %v3341
  %v3352 = vsel %vm3242, %v1861, 0
  %v3355 = vsel %vm3242, %v1862, 0
  %v3358 = vsel %vm3242, %v1863, 0
  %v3361 = vsel %vm3242, %v1864, 0
  %v3364 = vsel %vm3255, %v3346, 0
  %3366 = vmatprep.subr.bf16.mxu0 0
  %3367 = vmatpush1.bf16.msra.mxu0 %v3342
  %3368 = vmatprep.subr.bf16.mxu0 0
  %3369 = vmatpush1.bf16.msra.mxu0 %v3343
  %3370 = vmatprep.subr.bf16.mxu0 0
  %3371 = vmatpush1.bf16.msra.mxu0 %v3344
  %3372 = vmatprep.subr.bf16.mxu0 0
  %3373 = vmatpush1.bf16.msra.mxu0 %v3345
  %3374 = vmatprep.subr.bf16.mxu0 0
  %3375 = vmatpush1.bf16.msra.mxu0 %v3364
  %3376 = vmatprep.subr.bf16.mxu0 0
  %3377 = vmatpush1.bf16.msra.mxu0 0
  %3378 = vmatprep.subr.bf16.mxu0 0
  %3379 = vmatpush1.bf16.msra.mxu0 0
  %3380 = vmatprep.subr.bf16.mxu0 0
  %3381 = vmatpush1.bf16.msra.mxu0 0
  %3382 = vmatprep.subr.bf16.mxu0 0
  %3383 = vmatpush1.bf16.msra.mxu0 0
  %3384 = vmatprep.subr.bf16.mxu0 0
  %3385 = vmatpush1.bf16.msra.mxu0 0
  %3386 = vmatprep.subr.bf16.mxu0 0
  %3387 = vmatpush1.bf16.msra.mxu0 0
  %3388 = vmatprep.subr.bf16.mxu0 0
  %3389 = vmatpush1.bf16.msra.mxu0 0
  %3390 = vmatprep.subr.bf16.mxu0 0
  %3391 = vmatpush1.bf16.msra.mxu0 0
  %3392 = vmatprep.subr.bf16.mxu0 0
  %3393 = vmatpush1.bf16.msra.mxu0 0
  %3394 = vmatprep.subr.bf16.mxu0 0
  %3395 = vmatpush1.bf16.msra.mxu0 0
  %3396 = vmatprep.subr.bf16.mxu0 0
  %3397 = vmatpush1.bf16.msra.mxu0 0
  %3398 = vmatprep.mubr.bf16.mxu0 0
  %3399 = vmatmul.mubr.bf16.gmra.mrb[0].mxu0 %v3352
  %v3400 = vpop.f32.mrb[0].mxu0
  %v3401 = vadd.f32 %v3294, %v3400
  %v3402 = vpop.f32.mrb[0].mxu0
  %v3403 = vpop.f32.mrb[0].mxu0
  %v3404 = vadd.f32 %v3297, %v3403
  %v3405 = vpop.f32.mrb[0].mxu0
  %3406 = vmatprep.mubr.bf16.mxu0 0
  %3407 = vmatmul.mubr.bf16.gmra.mrb[0].mxu0 %v3355
  %v3408 = vpop.f32.mrb[0].mxu0
  %v3409 = vadd.f32 %v3302, %v3408
  %v3410 = vpop.f32.mrb[0].mxu0
  %v3411 = vpop.f32.mrb[0].mxu0
  %v3412 = vadd.f32 %v3305, %v3411
  %v3413 = vpop.f32.mrb[0].mxu0
  %3414 = vmatprep.mubr.bf16.mxu0 0
  %3415 = vmatmul.mubr.bf16.gmra.mrb[0].mxu0 %v3358
  %v3416 = vpop.f32.mrb[0].mxu0
  %v3417 = vadd.f32 %v3310, %v3416
  %v3418 = vpop.f32.mrb[0].mxu0
  %v3419 = vpop.f32.mrb[0].mxu0
  %v3420 = vadd.f32 %v3313, %v3419
  %v3421 = vpop.f32.mrb[0].mxu0
  %3422 = vmatprep.mubr.bf16.mxu0 0
  %3423 = vmatmul.mubr.bf16.gmra.mrb[0].mxu0 %v3361
  %v3424 = vpop.f32.mrb[0].mxu0
  %v3425 = vadd.f32 %v3318, %v3424
  %v3426 = vpop.f32.mrb[0].mxu0
  %v3427 = vpop.f32.mrb[0].mxu0
  %v3428 = vadd.f32 %v3321, %v3427
  %v3429 = vpop.f32.mrb[0].mxu0
  %3430 = vdwg.mxu0
  %v3440 = vunpack.c.l.b16 %v131
  %v3441 = vunpack.c.l.b16 %v132
  %v3442 = vunpack.c.l.b16 %v133
  %v3443 = vunpack.c.l.b16 %v134
  %v3444 = vunpack.c.l.b16 %v135
  %v3445 = vunpack.c.l.b16 %v136
  %v3446 = vunpack.c.l.b16 %v137
  %v3447 = vunpack.c.l.b16 %v138
  %v3448 = vunpack.c.l.b16 %v139
  %v3449 = vpack.c.b16 %v3441, %v3440
  %v3450 = vpack.c.b16 %v3443, %v3442
  %v3451 = vpack.c.b16 %v3445, %v3444
  %v3452 = vpack.c.b16 %v3447, %v3446
  %v3453 = vpack.c.b16 %v3448, %v3448
  %v3459 = vsel %vm3242, %v1865, 0
  %v3462 = vsel %vm3255, %v3453, 0
  %3464 = vmatprep.subr.bf16.mxu0 0
  %3465 = vmatpush1.bf16.msra.mxu0 %v3449
  %3466 = vmatprep.subr.bf16.mxu0 0
  %3467 = vmatpush1.bf16.msra.mxu0 %v3450
  %3468 = vmatprep.subr.bf16.mxu0 0
  %3469 = vmatpush1.bf16.msra.mxu0 %v3451
  %3470 = vmatprep.subr.bf16.mxu0 0
  %3471 = vmatpush1.bf16.msra.mxu0 %v3452
  %3472 = vmatprep.subr.bf16.mxu0 0
  %3473 = vmatpush1.bf16.msra.mxu0 %v3462
  %3474 = vmatprep.subr.bf16.mxu0 0
  %3475 = vmatpush1.bf16.msra.mxu0 0
  %3476 = vmatprep.subr.bf16.mxu0 0
  %3477 = vmatpush1.bf16.msra.mxu0 0
  %3478 = vmatprep.subr.bf16.mxu0 0
  %3479 = vmatpush1.bf16.msra.mxu0 0
  %3480 = vmatprep.subr.bf16.mxu0 0
  %3481 = vmatpush1.bf16.msra.mxu0 0
  %3482 = vmatprep.subr.bf16.mxu0 0
  %3483 = vmatpush1.bf16.msra.mxu0 0
  %3484 = vmatprep.subr.bf16.mxu0 0
  %3485 = vmatpush1.bf16.msra.mxu0 0
  %3486 = vmatprep.subr.bf16.mxu0 0
  %3487 = vmatpush1.bf16.msra.mxu0 0
  %3488 = vmatprep.subr.bf16.mxu0 0
  %3489 = vmatpush1.bf16.msra.mxu0 0
  %3490 = vmatprep.subr.bf16.mxu0 0
  %3491 = vmatpush1.bf16.msra.mxu0 0
  %3492 = vmatprep.subr.bf16.mxu0 0
  %3493 = vmatpush1.bf16.msra.mxu0 0
  %3494 = vmatprep.subr.bf16.mxu0 0
  %3495 = vmatpush1.bf16.msra.mxu0 0
  %3496 = vmatprep.mubr.bf16.mxu0 0
  %3497 = vmatmul.mubr.bf16.gmra.mrb[0].mxu0 %v3355
  %v3498 = vpop.f32.mrb[0].mxu0
  %v3499 = vadd.f32 0.0, %v3498
  %v3500 = vpop.f32.mrb[0].mxu0
  %v3501 = vpop.f32.mrb[0].mxu0
  %v3502 = vadd.f32 0.0, %v3501
  %v3503 = vpop.f32.mrb[0].mxu0
  %3504 = vmatprep.mubr.bf16.mxu0 0
  %3505 = vmatmul.mubr.bf16.gmra.mrb[0].mxu0 %v3358
  %v3506 = vpop.f32.mrb[0].mxu0
  %v3507 = vadd.f32 0.0, %v3506
  %v3508 = vpop.f32.mrb[0].mxu0
  %v3509 = vpop.f32.mrb[0].mxu0
  %v3510 = vadd.f32 0.0, %v3509
  %v3511 = vpop.f32.mrb[0].mxu0
  %3512 = vmatprep.mubr.bf16.mxu0 0
  %3513 = vmatmul.mubr.bf16.gmra.mrb[0].mxu0 %v3361
  %v3514 = vpop.f32.mrb[0].mxu0
  %v3515 = vadd.f32 0.0, %v3514
  %v3516 = vpop.f32.mrb[0].mxu0
  %v3517 = vpop.f32.mrb[0].mxu0
  %v3518 = vadd.f32 0.0, %v3517
  %v3519 = vpop.f32.mrb[0].mxu0
  %3520 = vmatprep.mubr.bf16.mxu0 0
  %3521 = vmatmul.mubr.bf16.gmra.mrb[0].mxu0 %v3459
  %v3522 = vpop.f32.mrb[0].mxu0
  %v3523 = vadd.f32 0.0, %v3522
  %v3524 = vpop.f32.mrb[0].mxu0
  %v3525 = vpop.f32.mrb[0].mxu0
  %v3526 = vadd.f32 0.0, %v3525
  %v3527 = vpop.f32.mrb[0].mxu0
  %3528 = vdwg.mxu0
  %v3529 = vadd.f32 %v3401, %v3499
  %v3530 = vadd.f32 %v3404, %v3502
  %v3531 = vadd.f32 %v3409, %v3507
  %v3532 = vadd.f32 %v3412, %v3510
  %v3533 = vadd.f32 %v3417, %v3515
  %v3534 = vadd.f32 %v3420, %v3518
  %v3535 = vadd.f32 %v3425, %v3523
  %v3536 = vadd.f32 %v3428, %v3526
  %v3546 = vunpack.c.l.b16 %v140
  %v3547 = vunpack.c.l.b16 %v141
  %v3548 = vunpack.c.l.b16 %v142
  %v3549 = vunpack.c.l.b16 %v143
  %v3550 = vunpack.c.l.b16 %v144
  %v3551 = vunpack.c.l.b16 %v145
  %v3552 = vunpack.c.l.b16 %v146
  %v3553 = vunpack.c.l.b16 %v147
  %v3554 = vunpack.c.l.b16 %v148
  %v3555 = vpack.c.b16 %v3547, %v3546
  %v3556 = vpack.c.b16 %v3549, %v3548
  %v3557 = vpack.c.b16 %v3551, %v3550
  %v3558 = vpack.c.b16 %v3553, %v3552
  %v3559 = vpack.c.b16 %v3554, %v3554
  %v3565 = vsel %vm3242, %v3213, 0
  %v3568 = vsel %vm3255, %v3559, 0
  %3570 = vmatprep.subr.bf16.mxu0 0
  %3571 = vmatpush1.bf16.msra.mxu0 %v3555
  %3572 = vmatprep.subr.bf16.mxu0 0
  %3573 = vmatpush1.bf16.msra.mxu0 %v3556
  %3574 = vmatprep.subr.bf16.mxu0 0
  %3575 = vmatpush1.bf16.msra.mxu0 %v3557
  %3576 = vmatprep.subr.bf16.mxu0 0
  %3577 = vmatpush1.bf16.msra.mxu0 %v3558
  %3578 = vmatprep.subr.bf16.mxu0 0
  %3579 = vmatpush1.bf16.msra.mxu0 %v3568
  %3580 = vmatprep.subr.bf16.mxu0 0
  %3581 = vmatpush1.bf16.msra.mxu0 0
  %3582 = vmatprep.subr.bf16.mxu0 0
  %3583 = vmatpush1.bf16.msra.mxu0 0
  %3584 = vmatprep.subr.bf16.mxu0 0
  %3585 = vmatpush1.bf16.msra.mxu0 0
  %3586 = vmatprep.subr.bf16.mxu0 0
  %3587 = vmatpush1.bf16.msra.mxu0 0
  %3588 = vmatprep.subr.bf16.mxu0 0
  %3589 = vmatpush1.bf16.msra.mxu0 0
  %3590 = vmatprep.subr.bf16.mxu0 0
  %3591 = vmatpush1.bf16.msra.mxu0 0
  %3592 = vmatprep.subr.bf16.mxu0 0
  %3593 = vmatpush1.bf16.msra.mxu0 0
  %3594 = vmatprep.subr.bf16.mxu0 0
  %3595 = vmatpush1.bf16.msra.mxu0 0
  %3596 = vmatprep.subr.bf16.mxu0 0
  %3597 = vmatpush1.bf16.msra.mxu0 0
  %3598 = vmatprep.subr.bf16.mxu0 0
  %3599 = vmatpush1.bf16.msra.mxu0 0
  %3600 = vmatprep.subr.bf16.mxu0 0
  %3601 = vmatpush1.bf16.msra.mxu0 0
  %3602 = vmatprep.mubr.bf16.mxu0 0
  %3603 = vmatmul.mubr.bf16.gmra.mrb[0].mxu0 %v3247
  %v3604 = vpop.f32.mrb[0].mxu0
  %v3605 = vadd.f32 0.0, %v3604
  %v3606 = vpop.f32.mrb[0].mxu0
  %v3607 = vpop.f32.mrb[0].mxu0
  %v3608 = vadd.f32 0.0, %v3607
  %v3609 = vpop.f32.mrb[0].mxu0
  %3610 = vmatprep.mubr.bf16.mxu0 0
  %3611 = vmatmul.mubr.bf16.gmra.mrb[0].mxu0 %v3250
  %v3612 = vpop.f32.mrb[0].mxu0
  %v3613 = vadd.f32 0.0, %v3612
  %v3614 = vpop.f32.mrb[0].mxu0
  %v3615 = vpop.f32.mrb[0].mxu0
  %v3616 = vadd.f32 0.0, %v3615
  %v3617 = vpop.f32.mrb[0].mxu0
  %3618 = vmatprep.mubr.bf16.mxu0 0
  %3619 = vmatmul.mubr.bf16.gmra.mrb[0].mxu0 %v3253
  %v3620 = vpop.f32.mrb[0].mxu0
  %v3621 = vadd.f32 0.0, %v3620
  %v3622 = vpop.f32.mrb[0].mxu0
  %v3623 = vpop.f32.mrb[0].mxu0
  %v3624 = vadd.f32 0.0, %v3623
  %v3625 = vpop.f32.mrb[0].mxu0
  %3626 = vmatprep.mubr.bf16.mxu0 0
  %3627 = vmatmul.mubr.bf16.gmra.mrb[0].mxu0 %v3565
  %v3628 = vpop.f32.mrb[0].mxu0
  %v3629 = vadd.f32 0.0, %v3628
  %v3630 = vpop.f32.mrb[0].mxu0
  %v3631 = vpop.f32.mrb[0].mxu0
  %v3632 = vadd.f32 0.0, %v3631
  %v3633 = vpop.f32.mrb[0].mxu0
  %3634 = vdwg.mxu0
  %v3635 = vadd.f32 %v3529, %v3605
  %v3636 = vadd.f32 %v3530, %v3608
  %v3637 = vadd.f32 %v3531, %v3613
  %v3638 = vadd.f32 %v3532, %v3616
  %v3639 = vadd.f32 %v3533, %v3621
  %v3640 = vadd.f32 %v3534, %v3624
  %v3641 = vadd.f32 %v3535, %v3629
  %v3642 = vadd.f32 %v3536, %v3632
  %v3652 = vunpack.c.l.b16 %v149
  %v3653 = vunpack.c.l.b16 %v150
  %v3654 = vunpack.c.l.b16 %v151
  %v3655 = vunpack.c.l.b16 %v152
  %v3656 = vunpack.c.l.b16 %v153
  %v3657 = vunpack.c.l.b16 %v154
  %v3658 = vunpack.c.l.b16 %v155
  %v3659 = vunpack.c.l.b16 %v156
  %v3660 = vunpack.c.l.b16 %v157
  %v3661 = vpack.c.b16 %v3653, %v3652
  %v3662 = vpack.c.b16 %v3655, %v3654
  %v3663 = vpack.c.b16 %v3657, %v3656
  %v3664 = vpack.c.b16 %v3659, %v3658
  %v3665 = vpack.c.b16 %v3660, %v3660
  %v3671 = vsel %vm3242, %v1866, 0
  %v3674 = vsel %vm3255, %v3665, 0
  %3676 = vmatprep.subr.bf16.mxu0 0
  %3677 = vmatpush1.bf16.msra.mxu0 %v3661
  %3678 = vmatprep.subr.bf16.mxu0 0
  %3679 = vmatpush1.bf16.msra.mxu0 %v3662
  %3680 = vmatprep.subr.bf16.mxu0 0
  %3681 = vmatpush1.bf16.msra.mxu0 %v3663
  %3682 = vmatprep.subr.bf16.mxu0 0
  %3683 = vmatpush1.bf16.msra.mxu0 %v3664
  %3684 = vmatprep.subr.bf16.mxu0 0
  %3685 = vmatpush1.bf16.msra.mxu0 %v3674
  %3686 = vmatprep.subr.bf16.mxu0 0
  %3687 = vmatpush1.bf16.msra.mxu0 0
  %3688 = vmatprep.subr.bf16.mxu0 0
  %3689 = vmatpush1.bf16.msra.mxu0 0
  %3690 = vmatprep.subr.bf16.mxu0 0
  %3691 = vmatpush1.bf16.msra.mxu0 0
  %3692 = vmatprep.subr.bf16.mxu0 0
  %3693 = vmatpush1.bf16.msra.mxu0 0
  %3694 = vmatprep.subr.bf16.mxu0 0
  %3695 = vmatpush1.bf16.msra.mxu0 0
  %3696 = vmatprep.subr.bf16.mxu0 0
  %3697 = vmatpush1.bf16.msra.mxu0 0
  %3698 = vmatprep.subr.bf16.mxu0 0
  %3699 = vmatpush1.bf16.msra.mxu0 0
  %3700 = vmatprep.subr.bf16.mxu0 0
  %3701 = vmatpush1.bf16.msra.mxu0 0
  %3702 = vmatprep.subr.bf16.mxu0 0
  %3703 = vmatpush1.bf16.msra.mxu0 0
  %3704 = vmatprep.subr.bf16.mxu0 0
  %3705 = vmatpush1.bf16.msra.mxu0 0
  %3706 = vmatprep.subr.bf16.mxu0 0
  %3707 = vmatpush1.bf16.msra.mxu0 0
  %3708 = vmatprep.mubr.bf16.mxu0 0
  %3709 = vmatmul.mubr.bf16.gmra.mrb[0].mxu0 %v3358
  %v3710 = vpop.f32.mrb[0].mxu0
  %v3711 = vadd.f32 0.0, %v3710
  %v3712 = vpop.f32.mrb[0].mxu0
  %v3713 = vpop.f32.mrb[0].mxu0
  %v3714 = vadd.f32 0.0, %v3713
  %v3715 = vpop.f32.mrb[0].mxu0
  %3716 = vmatprep.mubr.bf16.mxu0 0
  %3717 = vmatmul.mubr.bf16.gmra.mrb[0].mxu0 %v3361
  %v3718 = vpop.f32.mrb[0].mxu0
  %v3719 = vadd.f32 0.0, %v3718
  %v3720 = vpop.f32.mrb[0].mxu0
  %v3721 = vpop.f32.mrb[0].mxu0
  %v3722 = vadd.f32 0.0, %v3721
  %v3723 = vpop.f32.mrb[0].mxu0
  %3724 = vmatprep.mubr.bf16.mxu0 0
  %3725 = vmatmul.mubr.bf16.gmra.mrb[0].mxu0 %v3459
  %v3726 = vpop.f32.mrb[0].mxu0
  %v3727 = vadd.f32 0.0, %v3726
  %v3728 = vpop.f32.mrb[0].mxu0
  %v3729 = vpop.f32.mrb[0].mxu0
  %v3730 = vadd.f32 0.0, %v3729
  %v3731 = vpop.f32.mrb[0].mxu0
  %3732 = vmatprep.mubr.bf16.mxu0 0
  %3733 = vmatmul.mubr.bf16.gmra.mrb[0].mxu0 %v3671
  %v3734 = vpop.f32.mrb[0].mxu0
  %v3735 = vadd.f32 0.0, %v3734
  %v3736 = vpop.f32.mrb[0].mxu0
  %v3737 = vpop.f32.mrb[0].mxu0
  %v3738 = vadd.f32 0.0, %v3737
  %v3739 = vpop.f32.mrb[0].mxu0
  %3740 = vdwg.mxu0
  %v3741 = vadd.f32 %v3635, %v3711
  %v3742 = vadd.f32 %v3636, %v3714
  %v3743 = vadd.f32 %v3637, %v3719
  %v3744 = vadd.f32 %v3638, %v3722
  %v3745 = vadd.f32 %v3639, %v3727
  %v3746 = vadd.f32 %v3640, %v3730
  %v3747 = vadd.f32 %v3641, %v3735
  %v3748 = vadd.f32 %v3642, %v3738
  %3757 = vrot.lane.b32.xlu0 %v3741, 64
  %v3758 = vpop.permute.xlu0 %3757
  %3759 = vrot.lane.b32.xlu0 %v3742, 64
  %v3760 = vpop.permute.xlu0 %3759
  %3761 = vrot.lane.b32.xlu0 %v3743, 64
  %v3762 = vpop.permute.xlu0 %3761
  %3763 = vrot.lane.b32.xlu0 %v3744, 64
  %v3764 = vpop.permute.xlu0 %3763
  %3765 = vrot.lane.b32.xlu0 %v3745, 64
  %v3766 = vpop.permute.xlu0 %3765
  %3767 = vrot.lane.b32.xlu0 %v3746, 64
  %v3768 = vpop.permute.xlu0 %3767
  %3769 = vrot.lane.b32.xlu0 %v3747, 64
  %v3770 = vpop.permute.xlu0 %3769
  %3771 = vrot.lane.b32.xlu0 %v3748, 64
  %v3772 = vpop.permute.xlu0 %3771
  %v3781 = vmax.f32 %v3741, %v3758
  %v3782 = vmax.f32 %v3742, %v3760
  %v3783 = vmax.f32 %v3743, %v3762
  %v3784 = vmax.f32 %v3744, %v3764
  %v3785 = vmax.f32 %v3745, %v3766
  %v3786 = vmax.f32 %v3746, %v3768
  %v3787 = vmax.f32 %v3747, %v3770
  %v3788 = vmax.f32 %v3748, %v3772
  %3789 = vmatprep.subr.bf16.mxu0 0
  %3790 = vmatpush1.bf16.msra.mxu0 %v3233
  %3791 = vmatprep.subr.bf16.mxu0 0
  %3792 = vmatpush1.bf16.msra.mxu0 %v3234
  %3793 = vmatprep.subr.bf16.mxu0 0
  %3794 = vmatpush1.bf16.msra.mxu0 %v3235
  %3795 = vmatprep.subr.bf16.mxu0 0
  %3796 = vmatpush1.bf16.msra.mxu0 %v3236
  %3797 = vmatprep.subr.bf16.mxu0 0
  %3798 = vmatpush1.bf16.msra.mxu0 %v3257
  %3799 = vmatprep.subr.bf16.mxu0 0
  %3800 = vmatpush1.bf16.msra.mxu0 0
  %3801 = vmatprep.subr.bf16.mxu0 0
  %3802 = vmatpush1.bf16.msra.mxu0 0
  %3803 = vmatprep.subr.bf16.mxu0 0
  %3804 = vmatpush1.bf16.msra.mxu0 0
  %3805 = vmatprep.subr.bf16.mxu0 0
  %3806 = vmatpush1.bf16.msra.mxu0 0
  %3807 = vmatprep.subr.bf16.mxu0 0
  %3808 = vmatpush1.bf16.msra.mxu0 0
  %3809 = vmatprep.subr.bf16.mxu0 0
  %3810 = vmatpush1.bf16.msra.mxu0 0
  %3811 = vmatprep.subr.bf16.mxu0 0
  %3812 = vmatpush1.bf16.msra.mxu0 0
  %3813 = vmatprep.subr.bf16.mxu0 0
  %3814 = vmatpush1.bf16.msra.mxu0 0
  %3815 = vmatprep.subr.bf16.mxu0 0
  %3816 = vmatpush1.bf16.msra.mxu0 0
  %3817 = vmatprep.subr.bf16.mxu0 0
  %3818 = vmatpush1.bf16.msra.mxu0 0
  %3819 = vmatprep.subr.bf16.mxu0 0
  %3820 = vmatpush1.bf16.msra.mxu0 0
  %3821 = vmatprep.mubr.bf16.mxu0 0
  %3822 = vmatmul.mubr.bf16.gmra.mrb[0].mxu0 %v3355
  %v3823 = vpop.f32.mrb[0].mxu0
  %v3824 = vadd.f32 0.0, %v3823
  %v3825 = vpop.f32.mrb[0].mxu0
  %v3826 = vpop.f32.mrb[0].mxu0
  %v3827 = vadd.f32 0.0, %v3826
  %v3828 = vpop.f32.mrb[0].mxu0
  %3829 = vmatprep.mubr.bf16.mxu0 0
  %3830 = vmatmul.mubr.bf16.gmra.mrb[0].mxu0 %v3358
  %v3831 = vpop.f32.mrb[0].mxu0
  %v3832 = vadd.f32 0.0, %v3831
  %v3833 = vpop.f32.mrb[0].mxu0
  %v3834 = vpop.f32.mrb[0].mxu0
  %v3835 = vadd.f32 0.0, %v3834
  %v3836 = vpop.f32.mrb[0].mxu0
  %3837 = vmatprep.mubr.bf16.mxu0 0
  %3838 = vmatmul.mubr.bf16.gmra.mrb[0].mxu0 %v3361
  %v3839 = vpop.f32.mrb[0].mxu0
  %v3840 = vadd.f32 0.0, %v3839
  %v3841 = vpop.f32.mrb[0].mxu0
  %v3842 = vpop.f32.mrb[0].mxu0
  %v3843 = vadd.f32 0.0, %v3842
  %v3844 = vpop.f32.mrb[0].mxu0
  %3845 = vmatprep.mubr.bf16.mxu0 0
  %3846 = vmatmul.mubr.bf16.gmra.mrb[0].mxu0 %v3459
  %v3847 = vpop.f32.mrb[0].mxu0
  %v3848 = vadd.f32 0.0, %v3847
  %v3849 = vpop.f32.mrb[0].mxu0
  %v3850 = vpop.f32.mrb[0].mxu0
  %v3851 = vadd.f32 0.0, %v3850
  %v3852 = vpop.f32.mrb[0].mxu0
  %3853 = vdwg.mxu0
  %3854 = vmatprep.subr.bf16.mxu0 0
  %3855 = vmatpush1.bf16.msra.mxu0 %v3342
  %3856 = vmatprep.subr.bf16.mxu0 0
  %3857 = vmatpush1.bf16.msra.mxu0 %v3343
  %3858 = vmatprep.subr.bf16.mxu0 0
  %3859 = vmatpush1.bf16.msra.mxu0 %v3344
  %3860 = vmatprep.subr.bf16.mxu0 0
  %3861 = vmatpush1.bf16.msra.mxu0 %v3345
  %3862 = vmatprep.subr.bf16.mxu0 0
  %3863 = vmatpush1.bf16.msra.mxu0 %v3364
  %3864 = vmatprep.subr.bf16.mxu0 0
  %3865 = vmatpush1.bf16.msra.mxu0 0
  %3866 = vmatprep.subr.bf16.mxu0 0
  %3867 = vmatpush1.bf16.msra.mxu0 0
  %3868 = vmatprep.subr.bf16.mxu0 0
  %3869 = vmatpush1.bf16.msra.mxu0 0
  %3870 = vmatprep.subr.bf16.mxu0 0
  %3871 = vmatpush1.bf16.msra.mxu0 0
  %3872 = vmatprep.subr.bf16.mxu0 0
  %3873 = vmatpush1.bf16.msra.mxu0 0
  %3874 = vmatprep.subr.bf16.mxu0 0
  %3875 = vmatpush1.bf16.msra.mxu0 0
  %3876 = vmatprep.subr.bf16.mxu0 0
  %3877 = vmatpush1.bf16.msra.mxu0 0
  %3878 = vmatprep.subr.bf16.mxu0 0
  %3879 = vmatpush1.bf16.msra.mxu0 0
  %3880 = vmatprep.subr.bf16.mxu0 0
  %3881 = vmatpush1.bf16.msra.mxu0 0
  %3882 = vmatprep.subr.bf16.mxu0 0
  %3883 = vmatpush1.bf16.msra.mxu0 0
  %3884 = vmatprep.subr.bf16.mxu0 0
  %3885 = vmatpush1.bf16.msra.mxu0 0
  %3886 = vmatprep.mubr.bf16.mxu0 0
  %3887 = vmatmul.mubr.bf16.gmra.mrb[0].mxu0 %v3244
  %v3888 = vpop.f32.mrb[0].mxu0
  %v3889 = vadd.f32 %v3824, %v3888
  %v3890 = vpop.f32.mrb[0].mxu0
  %v3891 = vpop.f32.mrb[0].mxu0
  %v3892 = vadd.f32 %v3827, %v3891
  %v3893 = vpop.f32.mrb[0].mxu0
  %3894 = vmatprep.mubr.bf16.mxu0 0
  %3895 = vmatmul.mubr.bf16.gmra.mrb[0].mxu0 %v3247
  %v3896 = vpop.f32.mrb[0].mxu0
  %v3897 = vadd.f32 %v3832, %v3896
  %v3898 = vpop.f32.mrb[0].mxu0
  %v3899 = vpop.f32.mrb[0].mxu0
  %v3900 = vadd.f32 %v3835, %v3899
  %v3901 = vpop.f32.mrb[0].mxu0
  %3902 = vmatprep.mubr.bf16.mxu0 0
  %3903 = vmatmul.mubr.bf16.gmra.mrb[0].mxu0 %v3250
  %v3904 = vpop.f32.mrb[0].mxu0
  %v3905 = vadd.f32 %v3840, %v3904
  %v3906 = vpop.f32.mrb[0].mxu0
  %v3907 = vpop.f32.mrb[0].mxu0
  %v3908 = vadd.f32 %v3843, %v3907
  %v3909 = vpop.f32.mrb[0].mxu0
  %3910 = vmatprep.mubr.bf16.mxu0 0
  %3911 = vmatmul.mubr.bf16.gmra.mrb[0].mxu0 %v3253
  %v3912 = vpop.f32.mrb[0].mxu0
  %v3913 = vadd.f32 %v3848, %v3912
  %v3914 = vpop.f32.mrb[0].mxu0
  %v3915 = vpop.f32.mrb[0].mxu0
  %v3916 = vadd.f32 %v3851, %v3915
  %v3917 = vpop.f32.mrb[0].mxu0
  %3918 = vdwg.mxu0
  %3919 = vmatprep.subr.bf16.mxu0 0
  %3920 = vmatpush1.bf16.msra.mxu0 %v3449
  %3921 = vmatprep.subr.bf16.mxu0 0
  %3922 = vmatpush1.bf16.msra.mxu0 %v3450
  %3923 = vmatprep.subr.bf16.mxu0 0
  %3924 = vmatpush1.bf16.msra.mxu0 %v3451
  %3925 = vmatprep.subr.bf16.mxu0 0
  %3926 = vmatpush1.bf16.msra.mxu0 %v3452
  %3927 = vmatprep.subr.bf16.mxu0 0
  %3928 = vmatpush1.bf16.msra.mxu0 %v3462
  %3929 = vmatprep.subr.bf16.mxu0 0
  %3930 = vmatpush1.bf16.msra.mxu0 0
  %3931 = vmatprep.subr.bf16.mxu0 0
  %3932 = vmatpush1.bf16.msra.mxu0 0
  %3933 = vmatprep.subr.bf16.mxu0 0
  %3934 = vmatpush1.bf16.msra.mxu0 0
  %3935 = vmatprep.subr.bf16.mxu0 0
  %3936 = vmatpush1.bf16.msra.mxu0 0
  %3937 = vmatprep.subr.bf16.mxu0 0
  %3938 = vmatpush1.bf16.msra.mxu0 0
  %3939 = vmatprep.subr.bf16.mxu0 0
  %3940 = vmatpush1.bf16.msra.mxu0 0
  %3941 = vmatprep.subr.bf16.mxu0 0
  %3942 = vmatpush1.bf16.msra.mxu0 0
  %3943 = vmatprep.subr.bf16.mxu0 0
  %3944 = vmatpush1.bf16.msra.mxu0 0
  %3945 = vmatprep.subr.bf16.mxu0 0
  %3946 = vmatpush1.bf16.msra.mxu0 0
  %3947 = vmatprep.subr.bf16.mxu0 0
  %3948 = vmatpush1.bf16.msra.mxu0 0
  %3949 = vmatprep.subr.bf16.mxu0 0
  %3950 = vmatpush1.bf16.msra.mxu0 0
  %3951 = vmatprep.mubr.bf16.mxu0 0
  %3952 = vmatmul.mubr.bf16.gmra.mrb[0].mxu0 %v3247
  %v3953 = vpop.f32.mrb[0].mxu0
  %v3954 = vadd.f32 0.0, %v3953
  %v3955 = vpop.f32.mrb[0].mxu0
  %v3956 = vpop.f32.mrb[0].mxu0
  %v3957 = vadd.f32 0.0, %v3956
  %v3958 = vpop.f32.mrb[0].mxu0
  %3959 = vmatprep.mubr.bf16.mxu0 0
  %3960 = vmatmul.mubr.bf16.gmra.mrb[0].mxu0 %v3250
  %v3961 = vpop.f32.mrb[0].mxu0
  %v3962 = vadd.f32 0.0, %v3961
  %v3963 = vpop.f32.mrb[0].mxu0
  %v3964 = vpop.f32.mrb[0].mxu0
  %v3965 = vadd.f32 0.0, %v3964
  %v3966 = vpop.f32.mrb[0].mxu0
  %3967 = vmatprep.mubr.bf16.mxu0 0
  %3968 = vmatmul.mubr.bf16.gmra.mrb[0].mxu0 %v3253
  %v3969 = vpop.f32.mrb[0].mxu0
  %v3970 = vadd.f32 0.0, %v3969
  %v3971 = vpop.f32.mrb[0].mxu0
  %v3972 = vpop.f32.mrb[0].mxu0
  %v3973 = vadd.f32 0.0, %v3972
  %v3974 = vpop.f32.mrb[0].mxu0
  %3975 = vmatprep.mubr.bf16.mxu0 0
  %3976 = vmatmul.mubr.bf16.gmra.mrb[0].mxu0 %v3565
  %v3977 = vpop.f32.mrb[0].mxu0
  %v3978 = vadd.f32 0.0, %v3977
  %v3979 = vpop.f32.mrb[0].mxu0
  %v3980 = vpop.f32.mrb[0].mxu0
  %v3981 = vadd.f32 0.0, %v3980
  %v3982 = vpop.f32.mrb[0].mxu0
  %3983 = vdwg.mxu0
  %v3984 = vadd.f32 %v3889, %v3954
  %v3985 = vadd.f32 %v3892, %v3957
  %v3986 = vadd.f32 %v3897, %v3962
  %v3987 = vadd.f32 %v3900, %v3965
  %v3988 = vadd.f32 %v3905, %v3970
  %v3989 = vadd.f32 %v3908, %v3973
  %v3990 = vadd.f32 %v3913, %v3978
  %v3991 = vadd.f32 %v3916, %v3981
  %3992 = vmatprep.subr.bf16.mxu0 0
  %3993 = vmatpush1.bf16.msra.mxu0 %v3555
  %3994 = vmatprep.subr.bf16.mxu0 0
  %3995 = vmatpush1.bf16.msra.mxu0 %v3556
  %3996 = vmatprep.subr.bf16.mxu0 0
  %3997 = vmatpush1.bf16.msra.mxu0 %v3557
  %3998 = vmatprep.subr.bf16.mxu0 0
  %3999 = vmatpush1.bf16.msra.mxu0 %v3558
  %4000 = vmatprep.subr.bf16.mxu0 0
  %4001 = vmatpush1.bf16.msra.mxu0 %v3568
  %4002 = vmatprep.subr.bf16.mxu0 0
  %4003 = vmatpush1.bf16.msra.mxu0 0
  %4004 = vmatprep.subr.bf16.mxu0 0
  %4005 = vmatpush1.bf16.msra.mxu0 0
  %4006 = vmatprep.subr.bf16.mxu0 0
  %4007 = vmatpush1.bf16.msra.mxu0 0
  %4008 = vmatprep.subr.bf16.mxu0 0
  %4009 = vmatpush1.bf16.msra.mxu0 0
  %4010 = vmatprep.subr.bf16.mxu0 0
  %4011 = vmatpush1.bf16.msra.mxu0 0
  %4012 = vmatprep.subr.bf16.mxu0 0
  %4013 = vmatpush1.bf16.msra.mxu0 0
  %4014 = vmatprep.subr.bf16.mxu0 0
  %4015 = vmatpush1.bf16.msra.mxu0 0
  %4016 = vmatprep.subr.bf16.mxu0 0
  %4017 = vmatpush1.bf16.msra.mxu0 0
  %4018 = vmatprep.subr.bf16.mxu0 0
  %4019 = vmatpush1.bf16.msra.mxu0 0
  %4020 = vmatprep.subr.bf16.mxu0 0
  %4021 = vmatpush1.bf16.msra.mxu0 0
  %4022 = vmatprep.subr.bf16.mxu0 0
  %4023 = vmatpush1.bf16.msra.mxu0 0
  %4024 = vmatprep.mubr.bf16.mxu0 0
  %4025 = vmatmul.mubr.bf16.gmra.mrb[0].mxu0 %v3358
  %v4026 = vpop.f32.mrb[0].mxu0
  %v4027 = vadd.f32 0.0, %v4026
  %v4028 = vpop.f32.mrb[0].mxu0
  %v4029 = vpop.f32.mrb[0].mxu0
  %v4030 = vadd.f32 0.0, %v4029
  %v4031 = vpop.f32.mrb[0].mxu0
  %4032 = vmatprep.mubr.bf16.mxu0 0
  %4033 = vmatmul.mubr.bf16.gmra.mrb[0].mxu0 %v3361
  %v4034 = vpop.f32.mrb[0].mxu0
  %v4035 = vadd.f32 0.0, %v4034
  %v4036 = vpop.f32.mrb[0].mxu0
  %v4037 = vpop.f32.mrb[0].mxu0
  %v4038 = vadd.f32 0.0, %v4037
  %v4039 = vpop.f32.mrb[0].mxu0
  %4040 = vmatprep.mubr.bf16.mxu0 0
  %4041 = vmatmul.mubr.bf16.gmra.mrb[0].mxu0 %v3459
  %v4042 = vpop.f32.mrb[0].mxu0
  %v4043 = vadd.f32 0.0, %v4042
  %v4044 = vpop.f32.mrb[0].mxu0
  %v4045 = vpop.f32.mrb[0].mxu0
  %v4046 = vadd.f32 0.0, %v4045
  %v4047 = vpop.f32.mrb[0].mxu0
  %4048 = vmatprep.mubr.bf16.mxu0 0
  %4049 = vmatmul.mubr.bf16.gmra.mrb[0].mxu0 %v3671
  %v4050 = vpop.f32.mrb[0].mxu0
  %v4051 = vadd.f32 0.0, %v4050
  %v4052 = vpop.f32.mrb[0].mxu0
  %v4053 = vpop.f32.mrb[0].mxu0
  %v4054 = vadd.f32 0.0, %v4053
  %v4055 = vpop.f32.mrb[0].mxu0
  %4056 = vdwg.mxu0
  %v4057 = vadd.f32 %v3984, %v4027
  %v4058 = vadd.f32 %v3985, %v4030
  %v4059 = vadd.f32 %v3986, %v4035
  %v4060 = vadd.f32 %v3987, %v4038
  %v4061 = vadd.f32 %v3988, %v4043
  %v4062 = vadd.f32 %v3989, %v4046
  %v4063 = vadd.f32 %v3990, %v4051
  %v4064 = vadd.f32 %v3991, %v4054
  %v4066 = vsel %vm3242, %v3214, 0
  %4068 = vmatprep.subr.bf16.mxu0 0
  %4069 = vmatpush1.bf16.msra.mxu0 %v3661
  %4070 = vmatprep.subr.bf16.mxu0 0
  %4071 = vmatpush1.bf16.msra.mxu0 %v3662
  %4072 = vmatprep.subr.bf16.mxu0 0
  %4073 = vmatpush1.bf16.msra.mxu0 %v3663
  %4074 = vmatprep.subr.bf16.mxu0 0
  %4075 = vmatpush1.bf16.msra.mxu0 %v3664
  %4076 = vmatprep.subr.bf16.mxu0 0
  %4077 = vmatpush1.bf16.msra.mxu0 %v3674
  %4078 = vmatprep.subr.bf16.mxu0 0
  %4079 = vmatpush1.bf16.msra.mxu0 0
  %4080 = vmatprep.subr.bf16.mxu0 0
  %4081 = vmatpush1.bf16.msra.mxu0 0
  %4082 = vmatprep.subr.bf16.mxu0 0
  %4083 = vmatpush1.bf16.msra.mxu0 0
  %4084 = vmatprep.subr.bf16.mxu0 0
  %4085 = vmatpush1.bf16.msra.mxu0 0
  %4086 = vmatprep.subr.bf16.mxu0 0
  %4087 = vmatpush1.bf16.msra.mxu0 0
  %4088 = vmatprep.subr.bf16.mxu0 0
  %4089 = vmatpush1.bf16.msra.mxu0 0
  %4090 = vmatprep.subr.bf16.mxu0 0
  %4091 = vmatpush1.bf16.msra.mxu0 0
  %4092 = vmatprep.subr.bf16.mxu0 0
  %4093 = vmatpush1.bf16.msra.mxu0 0
  %4094 = vmatprep.subr.bf16.mxu0 0
  %4095 = vmatpush1.bf16.msra.mxu0 0
  %4096 = vmatprep.subr.bf16.mxu0 0
  %4097 = vmatpush1.bf16.msra.mxu0 0
  %4098 = vmatprep.subr.bf16.mxu0 0
  %4099 = vmatpush1.bf16.msra.mxu0 0
  %4100 = vmatprep.mubr.bf16.mxu0 0
  %4101 = vmatmul.mubr.bf16.gmra.mrb[0].mxu0 %v3250
  %v4102 = vpop.f32.mrb[0].mxu0
  %v4103 = vadd.f32 0.0, %v4102
  %v4104 = vpop.f32.mrb[0].mxu0
  %v4105 = vpop.f32.mrb[0].mxu0
  %v4106 = vadd.f32 0.0, %v4105
  %v4107 = vpop.f32.mrb[0].mxu0
  %4108 = vmatprep.mubr.bf16.mxu0 0
  %4109 = vmatmul.mubr.bf16.gmra.mrb[0].mxu0 %v3253
  %v4110 = vpop.f32.mrb[0].mxu0
  %v4111 = vadd.f32 0.0, %v4110
  %v4112 = vpop.f32.mrb[0].mxu0
  %v4113 = vpop.f32.mrb[0].mxu0
  %v4114 = vadd.f32 0.0, %v4113
  %v4115 = vpop.f32.mrb[0].mxu0
  %4116 = vmatprep.mubr.bf16.mxu0 0
  %4117 = vmatmul.mubr.bf16.gmra.mrb[0].mxu0 %v3565
  %v4118 = vpop.f32.mrb[0].mxu0
  %v4119 = vadd.f32 0.0, %v4118
  %v4120 = vpop.f32.mrb[0].mxu0
  %v4121 = vpop.f32.mrb[0].mxu0
  %v4122 = vadd.f32 0.0, %v4121
  %v4123 = vpop.f32.mrb[0].mxu0
  %4124 = vmatprep.mubr.bf16.mxu0 0
  %4125 = vmatmul.mubr.bf16.gmra.mrb[0].mxu0 %v4066
  %v4126 = vpop.f32.mrb[0].mxu0
  %v4127 = vadd.f32 0.0, %v4126
  %v4128 = vpop.f32.mrb[0].mxu0
  %v4129 = vpop.f32.mrb[0].mxu0
  %v4130 = vadd.f32 0.0, %v4129
  %v4131 = vpop.f32.mrb[0].mxu0
  %4132 = vdwg.mxu0
  %v4133 = vadd.f32 %v4057, %v4103
  %v4134 = vadd.f32 %v4058, %v4106
  %v4135 = vadd.f32 %v4059, %v4111
  %v4136 = vadd.f32 %v4060, %v4114
  %v4137 = vadd.f32 %v4061, %v4119
  %v4138 = vadd.f32 %v4062, %v4122
  %v4139 = vadd.f32 %v4063, %v4127
  %v4140 = vadd.f32 %v4064, %v4130
  %4149 = vrot.lane.b32.xlu0 %v4133, 64
  %v4150 = vpop.permute.xlu0 %4149
  %4151 = vrot.lane.b32.xlu0 %v4134, 64
  %v4152 = vpop.permute.xlu0 %4151
  %4153 = vrot.lane.b32.xlu0 %v4135, 64
  %v4154 = vpop.permute.xlu0 %4153
  %4155 = vrot.lane.b32.xlu0 %v4136, 64
  %v4156 = vpop.permute.xlu0 %4155
  %4157 = vrot.lane.b32.xlu0 %v4137, 64
  %v4158 = vpop.permute.xlu0 %4157
  %4159 = vrot.lane.b32.xlu0 %v4138, 64
  %v4160 = vpop.permute.xlu0 %4159
  %4161 = vrot.lane.b32.xlu0 %v4139, 64
  %v4162 = vpop.permute.xlu0 %4161
  %4163 = vrot.lane.b32.xlu0 %v4140, 64
  %v4164 = vpop.permute.xlu0 %4163
  %v4173 = vmax.f32 %v4133, %v4150
  %v4174 = vmax.f32 %v4134, %v4152
  %v4175 = vmax.f32 %v4135, %v4154
  %v4176 = vmax.f32 %v4136, %v4156
  %v4177 = vmax.f32 %v4137, %v4158
  %v4178 = vmax.f32 %v4138, %v4160
  %v4179 = vmax.f32 %v4139, %v4162
  %v4180 = vmax.f32 %v4140, %v4164
  %v4181 = vmax.f32 %v3781, %v4173
  %v4182 = vmax.f32 %v3782, %v4174
  %v4183 = vmax.f32 %v3783, %v4175
  %v4184 = vmax.f32 %v3784, %v4176
  %v4185 = vmax.f32 %v3785, %v4177
  %v4186 = vmax.f32 %v3786, %v4178
  %v4187 = vmax.f32 %v3787, %v4179
  %v4188 = vmax.f32 %v3788, %v4180
  %v4189 = vld [vmem:[%s4] sm:$0x1]
  %v4191 = vlaneseq
  %v4192 = vshrl.u32 %v4191, 7
  %v4193 = vsub.s32 0, %v4192
  %v4194 = vrot.slane %v4189, %v4193
  %v4196 = vadd.f32 %v4181, %v4194
  %v4197 = vadd.f32 %v4182, %v4194
  %v4198 = vadd.f32 %v4183, %v4194
  %v4199 = vadd.f32 %v4184, %v4194
  %v4200 = vadd.f32 %v4185, %v4194
  %v4201 = vadd.f32 %v4186, %v4194
  %v4202 = vadd.f32 %v4187, %v4194
  %v4203 = vadd.f32 %v4188, %v4194
  %v4204 = vmax.f32 %v4196, 0.0
  %v4205 = vmax.f32 %v4197, 0.0
  %v4206 = vmax.f32 %v4198, 0.0
  %v4207 = vmax.f32 %v4199, 0.0
  %v4208 = vmax.f32 %v4200, 0.0
  %v4209 = vmax.f32 %v4201, 0.0
  %v4210 = vmax.f32 %v4202, 0.0
  %v4211 = vmax.f32 %v4203, 0.0
  %v4212 = vpack.c.bf16 %v4205, %v4204
  %v4213 = vpack.c.bf16 %v4207, %v4206
  %v4214 = vpack.c.bf16 %v4209, %v4208
  %v4215 = vpack.c.bf16 %v4211, %v4210
  %v4224 = vunpack.c.l.b16 %v166
  %v4225 = vunpack.c.l.b16 %v167
  %v4226 = vunpack.c.l.b16 %v168
  %v4227 = vunpack.c.l.b16 %v169
  %v4228 = vunpack.c.l.b16 %v170
  %v4229 = vunpack.c.l.b16 %v171
  %v4230 = vunpack.c.l.b16 %v172
  %v4231 = vunpack.c.l.b16 %v173
  %v4232 = vpack.c.b16 %v4225, %v4224
  %v4233 = vpack.c.b16 %v4227, %v4226
  %v4234 = vpack.c.b16 %v4229, %v4228
  %v4235 = vpack.c.b16 %v4231, %v4230
  %vm4240 = vcmask 523264
  %v4242 = vsel %vm4240, %v4213, 0
  %4244 = vmatprep.subr.bf16.mxu0 0
  %4245 = vmatpush1.bf16.msra.mxu0 %v4232
  %4246 = vmatprep.subr.bf16.mxu0 0
  %4247 = vmatpush1.bf16.msra.mxu0 %v4233
  %4248 = vmatprep.subr.bf16.mxu0 0
  %4249 = vmatpush1.bf16.msra.mxu0 %v4234
  %4250 = vmatprep.subr.bf16.mxu0 0
  %4251 = vmatpush1.bf16.msra.mxu0 %v4235
  %4252 = vmatprep.subr.bf16.mxu0 0
  %4253 = vmatpush1.bf16.msra.mxu0 0
  %4254 = vmatprep.subr.bf16.mxu0 0
  %4255 = vmatpush1.bf16.msra.mxu0 0
  %4256 = vmatprep.subr.bf16.mxu0 0
  %4257 = vmatpush1.bf16.msra.mxu0 0
  %4258 = vmatprep.subr.bf16.mxu0 0
  %4259 = vmatpush1.bf16.msra.mxu0 0
  %4260 = vmatprep.subr.bf16.mxu0 0
  %4261 = vmatpush1.bf16.msra.mxu0 0
  %4262 = vmatprep.subr.bf16.mxu0 0
  %4263 = vmatpush1.bf16.msra.mxu0 0
  %4264 = vmatprep.subr.bf16.mxu0 0
  %4265 = vmatpush1.bf16.msra.mxu0 0
  %4266 = vmatprep.subr.bf16.mxu0 0
  %4267 = vmatpush1.bf16.msra.mxu0 0
  %4268 = vmatprep.subr.bf16.mxu0 0
  %4269 = vmatpush1.bf16.msra.mxu0 0
  %4270 = vmatprep.subr.bf16.mxu0 0
  %4271 = vmatpush1.bf16.msra.mxu0 0
  %4272 = vmatprep.subr.bf16.mxu0 0
  %4273 = vmatpush1.bf16.msra.mxu0 0
  %4274 = vmatprep.subr.bf16.mxu0 0
  %4275 = vmatpush1.bf16.msra.mxu0 0
  %4276 = vmatprep.mubr.bf16.mxu0 0
  %4277 = vmatmul.mubr.bf16.gmra.mrb[0].mxu0 %v4242
  %v4278 = vpop.f32.mrb[0].mxu0
  %v4279 = vadd.f32 0.0, %v4278
  %v4280 = vpop.f32.mrb[0].mxu0
  %v4281 = vpop.f32.mrb[0].mxu0
  %v4282 = vadd.f32 0.0, %v4281
  %v4283 = vpop.f32.mrb[0].mxu0
  %4284 = vdwg.mxu0
  %v4293 = vunpack.c.l.b16 %v158
  %v4294 = vunpack.c.l.b16 %v159
  %v4295 = vunpack.c.l.b16 %v160
  %v4296 = vunpack.c.l.b16 %v161
  %v4297 = vunpack.c.l.b16 %v162
  %v4298 = vunpack.c.l.b16 %v163
  %v4299 = vunpack.c.l.b16 %v164
  %v4300 = vunpack.c.l.b16 %v165
  %v4301 = vpack.c.b16 %v4294, %v4293
  %v4302 = vpack.c.b16 %v4296, %v4295
  %v4303 = vpack.c.b16 %v4298, %v4297
  %v4304 = vpack.c.b16 %v4300, %v4299
  %v4310 = vsel %vm4240, %v4212, 0
  %4312 = vmatprep.subr.bf16.mxu0 0
  %4313 = vmatpush1.bf16.msra.mxu0 %v4301
  %4314 = vmatprep.subr.bf16.mxu0 0
  %4315 = vmatpush1.bf16.msra.mxu0 %v4302
  %4316 = vmatprep.subr.bf16.mxu0 0
  %4317 = vmatpush1.bf16.msra.mxu0 %v4303
  %4318 = vmatprep.subr.bf16.mxu0 0
  %4319 = vmatpush1.bf16.msra.mxu0 %v4304
  %4320 = vmatprep.subr.bf16.mxu0 0
  %4321 = vmatpush1.bf16.msra.mxu0 0
  %4322 = vmatprep.subr.bf16.mxu0 0
  %4323 = vmatpush1.bf16.msra.mxu0 0
  %4324 = vmatprep.subr.bf16.mxu0 0
  %4325 = vmatpush1.bf16.msra.mxu0 0
  %4326 = vmatprep.subr.bf16.mxu0 0
  %4327 = vmatpush1.bf16.msra.mxu0 0
  %4328 = vmatprep.subr.bf16.mxu0 0
  %4329 = vmatpush1.bf16.msra.mxu0 0
  %4330 = vmatprep.subr.bf16.mxu0 0
  %4331 = vmatpush1.bf16.msra.mxu0 0
  %4332 = vmatprep.subr.bf16.mxu0 0
  %4333 = vmatpush1.bf16.msra.mxu0 0
  %4334 = vmatprep.subr.bf16.mxu0 0
  %4335 = vmatpush1.bf16.msra.mxu0 0
  %4336 = vmatprep.subr.bf16.mxu0 0
  %4337 = vmatpush1.bf16.msra.mxu0 0
  %4338 = vmatprep.subr.bf16.mxu0 0
  %4339 = vmatpush1.bf16.msra.mxu0 0
  %4340 = vmatprep.subr.bf16.mxu0 0
  %4341 = vmatpush1.bf16.msra.mxu0 0
  %4342 = vmatprep.subr.bf16.mxu0 0
  %4343 = vmatpush1.bf16.msra.mxu0 0
  %4344 = vmatprep.mubr.bf16.mxu0 0
  %4345 = vmatmul.mubr.bf16.gmra.mrb[0].mxu0 %v4310
  %v4346 = vpop.f32.mrb[0].mxu0
  %v4347 = vadd.f32 %v4279, %v4346
  %v4348 = vpop.f32.mrb[0].mxu0
  %v4349 = vpop.f32.mrb[0].mxu0
  %v4350 = vadd.f32 %v4282, %v4349
  %v4351 = vpop.f32.mrb[0].mxu0
  %4352 = vdwg.mxu0
  %v4361 = vunpack.c.l.b16 %v174
  %v4362 = vunpack.c.l.b16 %v175
  %v4363 = vunpack.c.l.b16 %v176
  %v4364 = vunpack.c.l.b16 %v177
  %v4365 = vunpack.c.l.b16 %v178
  %v4366 = vunpack.c.l.b16 %v179
  %v4367 = vunpack.c.l.b16 %v180
  %v4368 = vunpack.c.l.b16 %v181
  %v4369 = vpack.c.b16 %v4362, %v4361
  %v4370 = vpack.c.b16 %v4364, %v4363
  %v4371 = vpack.c.b16 %v4366, %v4365
  %v4372 = vpack.c.b16 %v4368, %v4367
  %v4378 = vsel %vm4240, %v4214, 0
  %4380 = vmatprep.subr.bf16.mxu0 0
  %4381 = vmatpush1.bf16.msra.mxu0 %v4369
  %4382 = vmatprep.subr.bf16.mxu0 0
  %4383 = vmatpush1.bf16.msra.mxu0 %v4370
  %4384 = vmatprep.subr.bf16.mxu0 0
  %4385 = vmatpush1.bf16.msra.mxu0 %v4371
  %4386 = vmatprep.subr.bf16.mxu0 0
  %4387 = vmatpush1.bf16.msra.mxu0 %v4372
  %4388 = vmatprep.subr.bf16.mxu0 0
  %4389 = vmatpush1.bf16.msra.mxu0 0
  %4390 = vmatprep.subr.bf16.mxu0 0
  %4391 = vmatpush1.bf16.msra.mxu0 0
  %4392 = vmatprep.subr.bf16.mxu0 0
  %4393 = vmatpush1.bf16.msra.mxu0 0
  %4394 = vmatprep.subr.bf16.mxu0 0
  %4395 = vmatpush1.bf16.msra.mxu0 0
  %4396 = vmatprep.subr.bf16.mxu0 0
  %4397 = vmatpush1.bf16.msra.mxu0 0
  %4398 = vmatprep.subr.bf16.mxu0 0
  %4399 = vmatpush1.bf16.msra.mxu0 0
  %4400 = vmatprep.subr.bf16.mxu0 0
  %4401 = vmatpush1.bf16.msra.mxu0 0
  %4402 = vmatprep.subr.bf16.mxu0 0
  %4403 = vmatpush1.bf16.msra.mxu0 0
  %4404 = vmatprep.subr.bf16.mxu0 0
  %4405 = vmatpush1.bf16.msra.mxu0 0
  %4406 = vmatprep.subr.bf16.mxu0 0
  %4407 = vmatpush1.bf16.msra.mxu0 0
  %4408 = vmatprep.subr.bf16.mxu0 0
  %4409 = vmatpush1.bf16.msra.mxu0 0
  %4410 = vmatprep.subr.bf16.mxu0 0
  %4411 = vmatpush1.bf16.msra.mxu0 0
  %4412 = vmatprep.mubr.bf16.mxu0 0
  %4413 = vmatmul.mubr.bf16.gmra.mrb[0].mxu0 %v4378
  %v4414 = vpop.f32.mrb[0].mxu0
  %v4415 = vadd.f32 0.0, %v4414
  %v4416 = vpop.f32.mrb[0].mxu0
  %v4417 = vpop.f32.mrb[0].mxu0
  %v4418 = vadd.f32 0.0, %v4417
  %v4419 = vpop.f32.mrb[0].mxu0
  %4420 = vdwg.mxu0
  %v4421 = vadd.f32 %v4347, %v4415
  %v4422 = vadd.f32 %v4350, %v4418
  %v4431 = vunpack.c.l.b16 %v182
  %v4432 = vunpack.c.l.b16 %v183
  %v4433 = vunpack.c.l.b16 %v184
  %v4434 = vunpack.c.l.b16 %v185
  %v4435 = vunpack.c.l.b16 %v186
  %v4436 = vunpack.c.l.b16 %v187
  %v4437 = vunpack.c.l.b16 %v188
  %v4438 = vunpack.c.l.b16 %v189
  %v4439 = vpack.c.b16 %v4432, %v4431
  %v4440 = vpack.c.b16 %v4434, %v4433
  %v4441 = vpack.c.b16 %v4436, %v4435
  %v4442 = vpack.c.b16 %v4438, %v4437
  %v4448 = vsel %vm4240, %v4215, 0
  %4450 = vmatprep.subr.bf16.mxu0 0
  %4451 = vmatpush1.bf16.msra.mxu0 %v4439
  %4452 = vmatprep.subr.bf16.mxu0 0
  %4453 = vmatpush1.bf16.msra.mxu0 %v4440
  %4454 = vmatprep.subr.bf16.mxu0 0
  %4455 = vmatpush1.bf16.msra.mxu0 %v4441
  %4456 = vmatprep.subr.bf16.mxu0 0
  %4457 = vmatpush1.bf16.msra.mxu0 %v4442
  %4458 = vmatprep.subr.bf16.mxu0 0
  %4459 = vmatpush1.bf16.msra.mxu0 0
  %4460 = vmatprep.subr.bf16.mxu0 0
  %4461 = vmatpush1.bf16.msra.mxu0 0
  %4462 = vmatprep.subr.bf16.mxu0 0
  %4463 = vmatpush1.bf16.msra.mxu0 0
  %4464 = vmatprep.subr.bf16.mxu0 0
  %4465 = vmatpush1.bf16.msra.mxu0 0
  %4466 = vmatprep.subr.bf16.mxu0 0
  %4467 = vmatpush1.bf16.msra.mxu0 0
  %4468 = vmatprep.subr.bf16.mxu0 0
  %4469 = vmatpush1.bf16.msra.mxu0 0
  %4470 = vmatprep.subr.bf16.mxu0 0
  %4471 = vmatpush1.bf16.msra.mxu0 0
  %4472 = vmatprep.subr.bf16.mxu0 0
  %4473 = vmatpush1.bf16.msra.mxu0 0
  %4474 = vmatprep.subr.bf16.mxu0 0
  %4475 = vmatpush1.bf16.msra.mxu0 0
  %4476 = vmatprep.subr.bf16.mxu0 0
  %4477 = vmatpush1.bf16.msra.mxu0 0
  %4478 = vmatprep.subr.bf16.mxu0 0
  %4479 = vmatpush1.bf16.msra.mxu0 0
  %4480 = vmatprep.subr.bf16.mxu0 0
  %4481 = vmatpush1.bf16.msra.mxu0 0
  %4482 = vmatprep.mubr.bf16.mxu0 0
  %4483 = vmatmul.mubr.bf16.gmra.mrb[0].mxu0 %v4448
  %v4484 = vpop.f32.mrb[0].mxu0
  %v4485 = vadd.f32 0.0, %v4484
  %v4486 = vpop.f32.mrb[0].mxu0
  %v4487 = vpop.f32.mrb[0].mxu0
  %v4488 = vadd.f32 0.0, %v4487
  %v4489 = vpop.f32.mrb[0].mxu0
  %4490 = vdwg.mxu0
  %v4491 = vadd.f32 %v4421, %v4485
  %v4492 = vadd.f32 %v4422, %v4488
  %v4493 = vld [vmem:[%s6] sm:$0x1]
  %v4495 = vlaneseq
  %v4496 = vshrl.u32 %v4495, 7
  %v4497 = vsub.s32 0, %v4496
  %v4498 = vrot.slane %v4493, %v4497
  %v4500 = vadd.f32 %v4491, %v4498
  %v4501 = vadd.f32 %v4492, %v4498
  %v4502 = vmax.f32 %v4500, 0.0
  %v4503 = vmax.f32 %v4501, 0.0
  %v4504 = vpack.c.bf16 %v4503, %v4502
  %v4505 = vld [vmem:[%s7] sm:$0xf]
  %v4506 = vld [vmem:[%s7 + $0x4] sm:$0xf]
  %v4507 = vld [vmem:[%s7 + $0x8] sm:$0xf]
  %v4508 = vld [vmem:[%s7 + $0xc] sm:$0xf]
  %v4509 = vld [vmem:[%s7 + $0x10] sm:$0xf]
  %v4510 = vld [vmem:[%s7 + $0x14] sm:$0xf]
  %v4511 = vld [vmem:[%s7 + $0x18] sm:$0xf]
  %v4512 = vld [vmem:[%s7 + $0x1c] sm:$0xf]
  %v4513 = vld [vmem:[%s7 + $0x20] sm:$0xf]
  %v4514 = vld [vmem:[%s7 + $0x24] sm:$0xf]
  %v4515 = vld [vmem:[%s7 + $0x28] sm:$0xf]
  %v4516 = vld [vmem:[%s7 + $0x2c] sm:$0xf]
  %v4517 = vld [vmem:[%s7 + $0x30] sm:$0xf]
  %v4518 = vld [vmem:[%s7 + $0x34] sm:$0xf]
  %v4519 = vld [vmem:[%s7 + $0x38] sm:$0xf]
  %v4520 = vld [vmem:[%s8] sm:$0x1]
  %v4522 = vlaneseq
  %v4523 = vshrl.u32 %v4522, 7
  %v4524 = vsub.s32 0, %v4523
  %v4525 = vrot.slane %v4520, %v4524
  %v4542 = vunpack.c.l.b16 %v4505
  %v4543 = vunpack.c.l.b16 %v4506
  %v4544 = vunpack.c.l.b16 %v4507
  %v4545 = vunpack.c.l.b16 %v4508
  %v4546 = vunpack.c.l.b16 %v4509
  %v4547 = vunpack.c.l.b16 %v4510
  %v4548 = vunpack.c.l.b16 %v4511
  %v4549 = vunpack.c.l.b16 %v4512
  %v4550 = vunpack.c.l.b16 %v4513
  %v4551 = vunpack.c.l.b16 %v4514
  %v4552 = vunpack.c.l.b16 %v4515
  %v4553 = vunpack.c.l.b16 %v4516
  %v4554 = vunpack.c.l.b16 %v4517
  %v4555 = vunpack.c.l.b16 %v4518
  %v4556 = vunpack.c.l.b16 %v4519
  %v4557 = vpack.c.b16 %v4543, %v4542
  %v4558 = vpack.c.b16 %v4545, %v4544
  %v4559 = vpack.c.b16 %v4547, %v4546
  %v4560 = vpack.c.b16 %v4549, %v4548
  %v4561 = vpack.c.b16 %v4551, %v4550
  %v4562 = vpack.c.b16 %v4553, %v4552
  %v4563 = vpack.c.b16 %v4555, %v4554
  %v4564 = vpack.c.b16 %v4556, %v4556
  %vm4572 = vcmask 982016
  %v4574 = vsel %vm4572, %v4504, 0
  %v4577 = vsel %vm3255, %v4564, 0
  %4579 = vmatprep.subr.bf16.mxu0 0
  %4580 = vmatpush1.bf16.msra.mxu0 %v4557
  %4581 = vmatprep.subr.bf16.mxu0 0
  %4582 = vmatpush1.bf16.msra.mxu0 %v4558
  %4583 = vmatprep.subr.bf16.mxu0 0
  %4584 = vmatpush1.bf16.msra.mxu0 %v4559
  %4585 = vmatprep.subr.bf16.mxu0 0
  %4586 = vmatpush1.bf16.msra.mxu0 %v4560
  %4587 = vmatprep.subr.bf16.mxu0 0
  %4588 = vmatpush1.bf16.msra.mxu0 %v4561
  %4589 = vmatprep.subr.bf16.mxu0 0
  %4590 = vmatpush1.bf16.msra.mxu0 %v4562
  %4591 = vmatprep.subr.bf16.mxu0 0
  %4592 = vmatpush1.bf16.msra.mxu0 %v4563
  %4593 = vmatprep.subr.bf16.mxu0 0
  %4594 = vmatpush1.bf16.msra.mxu0 %v4577
  %4595 = vmatprep.subr.bf16.mxu0 0
  %4596 = vmatpush1.bf16.msra.mxu0 0
  %4597 = vmatprep.subr.bf16.mxu0 0
  %4598 = vmatpush1.bf16.msra.mxu0 0
  %4599 = vmatprep.subr.bf16.mxu0 0
  %4600 = vmatpush1.bf16.msra.mxu0 0
  %4601 = vmatprep.subr.bf16.mxu0 0
  %4602 = vmatpush1.bf16.msra.mxu0 0
  %4603 = vmatprep.subr.bf16.mxu0 0
  %4604 = vmatpush1.bf16.msra.mxu0 0
  %4605 = vmatprep.subr.bf16.mxu0 0
  %4606 = vmatpush1.bf16.msra.mxu0 0
  %4607 = vmatprep.subr.bf16.mxu0 0
  %4608 = vmatpush1.bf16.msra.mxu0 0
  %4609 = vmatprep.subr.bf16.mxu0 0
  %4610 = vmatpush1.bf16.msra.mxu0 0
  %4611 = vmatprep.mubr.bf16.mxu0 0
  %4612 = vmatmul.mubr.bf16.gmra.mrb[0].mxu0 %v4574
  %v4613 = vpop.f32.mrb[0].mxu0
  %v4614 = vadd.f32 %v4525, %v4613
  %v4615 = vpop.f32.mrb[0].mxu0
  %v4616 = vpop.f32.mrb[0].mxu0
  %v4617 = vadd.f32 %v4525, %v4616
  %v4618 = vpop.f32.mrb[0].mxu0
  %4619 = vdwg.mxu0
  %vm4620 = vcmp.gt.f32.partialorder %v4614, 0.0
  %vm4621 = vcmp.gt.f32.partialorder %v4617, 0.0
  %v4622 = vmul.f32 %v4614, 1.442695
  %v4623 = vpow.pop %v4622
  %v4624 = vmul.f32 %v4617, 1.442695
  %v4625 = vpow.pop %v4624
  %v4626 = vsub.f32 %v4623, 1.0
  %v4627 = vsub.f32 %v4625, 1.0
  %v4628 = vmul.f32 %v4626, 1.6732632
  %v4629 = vmul.f32 %v4627, 1.6732632
  %v4630 = vsel %vm4620, %v4614, %v4628
  %v4631 = vsel %vm4621, %v4617, %v4629
  %v4632 = vmul.f32 %v4630, 1.050701
  %v4633 = vmul.f32 %v4631, 1.050701
  %v4634 = vpack.c.bf16 %v4633, %v4632
  %v4635 = vld [vmem:[%s9] sm:$0xf]
  %v4636 = vld [vmem:[%s9 + $0x4] sm:$0xf]
  %v4637 = vld [vmem:[%s9 + $0x8] sm:$0xf]
  %v4638 = vld [vmem:[%s9 + $0xc] sm:$0xf]
  %v4639 = vld [vmem:[%s9 + $0x10] sm:$0xf]
  %v4640 = vld [vmem:[%s9 + $0x14] sm:$0xf]
  %v4641 = vld [vmem:[%s9 + $0x18] sm:$0xf]
  %v4642 = vld [vmem:[%s9 + $0x1c] sm:$0xf]
  %v4643 = vld [vmem:[%s9 + $0x20] sm:$0xf]
  %v4644 = vld [vmem:[%s9 + $0x24] sm:$0xf]
  %v4645 = vld [vmem:[%s9 + $0x28] sm:$0x3]
  %v4646 = vld [vmem:[%s10] sm:$0x1]
  %v4648 = vlaneseq
  %v4649 = vshrl.u32 %v4648, 7
  %v4650 = vsub.s32 0, %v4649
  %v4651 = vrot.slane %v4646, %v4650
  %v4664 = vunpack.c.l.b16 %v4635
  %v4665 = vunpack.c.l.b16 %v4636
  %v4666 = vunpack.c.l.b16 %v4637
  %v4667 = vunpack.c.l.b16 %v4638
  %v4668 = vunpack.c.l.b16 %v4639
  %v4669 = vunpack.c.l.b16 %v4640
  %v4670 = vunpack.c.l.b16 %v4641
  %v4671 = vunpack.c.l.b16 %v4642
  %v4672 = vunpack.c.l.b16 %v4643
  %v4673 = vunpack.c.l.b16 %v4644
  %v4674 = vunpack.c.l.b16 %v4645
  %v4675 = vpack.c.b16 %v4665, %v4664
  %v4676 = vpack.c.b16 %v4667, %v4666
  %v4677 = vpack.c.b16 %v4669, %v4668
  %v4678 = vpack.c.b16 %v4671, %v4670
  %v4679 = vpack.c.b16 %v4673, %v4672
  %v4680 = vpack.c.b16 %v4674, %v4674
  %vm4686 = vcmask 687104
  %v4688 = vsel %vm4686, %v4634, 0
  %vm4690 = vcmask 1041408
  %v4692 = vsel %vm4690, %v4680, 0
  %4694 = vmatprep.subr.bf16.mxu0 0
  %4695 = vmatpush1.bf16.msra.mxu0 %v4675
  %4696 = vmatprep.subr.bf16.mxu0 0
  %4697 = vmatpush1.bf16.msra.mxu0 %v4676
  %4698 = vmatprep.subr.bf16.mxu0 0
  %4699 = vmatpush1.bf16.msra.mxu0 %v4677
  %4700 = vmatprep.subr.bf16.mxu0 0
  %4701 = vmatpush1.bf16.msra.mxu0 %v4678
  %4702 = vmatprep.subr.bf16.mxu0 0
  %4703 = vmatpush1.bf16.msra.mxu0 %v4679
  %4704 = vmatprep.subr.bf16.mxu0 0
  %4705 = vmatpush1.bf16.msra.mxu0 %v4692
  %4706 = vmatprep.subr.bf16.mxu0 0
  %4707 = vmatpush1.bf16.msra.mxu0 0
  %4708 = vmatprep.subr.bf16.mxu0 0
  %4709 = vmatpush1.bf16.msra.mxu0 0
  %4710 = vmatprep.subr.bf16.mxu0 0
  %4711 = vmatpush1.bf16.msra.mxu0 0
  %4712 = vmatprep.subr.bf16.mxu0 0
  %4713 = vmatpush1.bf16.msra.mxu0 0
  %4714 = vmatprep.subr.bf16.mxu0 0
  %4715 = vmatpush1.bf16.msra.mxu0 0
  %4716 = vmatprep.subr.bf16.mxu0 0
  %4717 = vmatpush1.bf16.msra.mxu0 0
  %4718 = vmatprep.subr.bf16.mxu0 0
  %4719 = vmatpush1.bf16.msra.mxu0 0
  %4720 = vmatprep.subr.bf16.mxu0 0
  %4721 = vmatpush1.bf16.msra.mxu0 0
  %4722 = vmatprep.subr.bf16.mxu0 0
  %4723 = vmatpush1.bf16.msra.mxu0 0
  %4724 = vmatprep.subr.bf16.mxu0 0
  %4725 = vmatpush1.bf16.msra.mxu0 0
  %4726 = vmatprep.mubr.bf16.mxu0 0
  %4727 = vmatmul.mubr.bf16.gmra.mrb[0].mxu0 %v4688
  %v4728 = vpop.f32.mrb[0].mxu0
  %v4729 = vadd.f32 %v4651, %v4728
  %v4730 = vpop.f32.mrb[0].mxu0
  %v4731 = vpop.f32.mrb[0].mxu0
  %v4732 = vadd.f32 %v4651, %v4731
  %v4733 = vpop.f32.mrb[0].mxu0
  %4734 = vdwg.mxu0
  %vm4735 = vcmask 80896
  %v4736 = vsel %vm4735, %v4729, -inf
  %4737 = vmax.xlane.f32.xlu0 %v4736
  %v4738 = vpop.xlane.xlu0 %4737
  %v4739 = vsel %vm4735, %v4732, -inf
  %4740 = vmax.xlane.f32.xlu0 %v4739
  %v4741 = vpop.xlane.xlu0 %4740
  %v4742 = vsub.f32 %v4729, %v4738
  %v4743 = vsub.f32 %v4732, %v4741
  %v4744 = vmul.f32 %v4742, 1.442695
  %v4745 = vpow.pop %v4744
  %v4746 = vmul.f32 %v4743, 1.442695
  %v4747 = vpow.pop %v4746
  %v4748 = vsel %vm4735, %v4745, 0.0
  %4749 = vadd.xlane.f32.xlu0 %v4748
  %v4750 = vpop.xlane.xlu0 %4749
  %v4751 = vsel %vm4735, %v4747, 0.0
  %4752 = vadd.xlane.f32.xlu0 %v4751
  %v4753 = vpop.xlane.xlu0 %4752
  %v4754 = vlog2.pop %v4750
  %v4755 = vmul.f32 %v4754, 0.6931472
  %v4756 = vlog2.pop %v4753
  %v4757 = vmul.f32 %v4756, 0.6931472
  %v4758 = vadd.f32 %v4755, %v4738
  %v4759 = vadd.f32 %v4757, %v4741
  %v4760 = vsub.f32 %v4729, %v4758
  %v4761 = vsub.f32 %v4732, %v4759
  %4762 = vst.msk [vmem:[%s11] sm:$0xff] %vm4735, %v4760
  %4763 = vst.msk [vmem:[%s11 + $0x8] sm:$0xff] %vm4735, %v4761
  // Predicated region
  $region46: #{convnet_forward.1} parent=0 // pred_check
    _
  $region47: #{convnet_forward.1} parent=0 // pred_check_branch
    %4765 = sbr.rel (0) target = $region49
  $region48: #{convnet_forward.1} parent=0 // pred_region
    _
  $region49: #{convnet_forward.1} parent=0 // pred_fallthru
    _
  // Predicated region
  $region50: #{convnet_forward.1} parent=0 // pred_check
    _
  $region51: #{convnet_forward.1} parent=0 // pred_check_branch
    %4767 = sbr.rel (0) target = $region53
  $region52: #{convnet_forward.1} parent=0 // pred_region
    _
  $region53: #{convnet_forward.1} parent=0 // pred_fallthru
    _

</llo_original>
